<compile_context>
chip_gen: v5e
topology: v5e:2x2
jax: 0.10.0
libtpu: 0.0.40
codegen_flags: <defaults>
</compile_context>

<pallas_src>
import math

import jax
import jax.numpy as jnp
from jax.experimental import pallas as pl
from jax.experimental.pallas import tpu as pltpu


# ----------------------------- config (small) -------------------------------
def find_multiple(n: int, k: int) -> int:
    if n % k == 0:
        return n
    return n + k - n % k


DIM = 256
N_HEAD = 2
N_LOCAL_HEADS = 2                       # == n_head (as in default ModelArgs)
HEAD_DIM = DIM // N_HEAD                # 128
KV_SIZE = N_LOCAL_HEADS * HEAD_DIM      # 256
TOTAL_HEAD_DIM = (N_HEAD + 2 * N_LOCAL_HEADS + N_HEAD) * HEAD_DIM  # 1024
INTER = find_multiple(int(2 * (4 * DIM) / 3), 256)                 # 768
EPS = 1e-5
SEQ = 8
BSZ = 2
ROPE_BASE = 40000.0

# Column layout of the fused (perm-folded, next_q-trimmed) QKV weight.
Q_OFF = 0
K_OFF = DIM
V_OFF = DIM + KV_SIZE
QP_OFF = DIM + 2 * KV_SIZE
KP_OFF = 2 * DIM + 2 * KV_SIZE
QKV_COLS = 2 * DIM + 3 * KV_SIZE        # 1280


# ------------------------------- kernel -------------------------------------
def transformer_block_kernel(x_ref, cos_q_ref, sin_q_ref, cos_k_ref, sin_k_ref,
                             wqkv_ref, wo_ref, w13_ref, w2_ref,
                             attn_nw_ref, ffn_nw_ref, mask_ref, out_ref):
    x = x_ref[...]                        # (B*S, D) f32

    def rmsnorm(v, w):
        ms = jnp.mean(v * v, axis=-1, keepdims=True)
        return v * jax.lax.rsqrt(ms + EPS) * w

    # ---- attention norm + fused QKV(+perm columns) projection (bf16 MXU) ----
    xn = rmsnorm(x, attn_nw_ref[...]).astype(jnp.bfloat16)
    qkv = jnp.dot(xn, wqkv_ref[...], preferred_element_type=jnp.float32)

    # ---- rotary embedding (perm folded into weights; scale folded into Q) ----
    q = (qkv[:, Q_OFF:Q_OFF + DIM] * cos_q_ref[...]
         + qkv[:, QP_OFF:QP_OFF + DIM] * sin_q_ref[...])
    k = (qkv[:, K_OFF:K_OFF + KV_SIZE] * cos_k_ref[...]
         + qkv[:, KP_OFF:KP_OFF + KV_SIZE] * sin_k_ref[...])
    v = qkv[:, V_OFF:V_OFF + KV_SIZE]

    # ---- attention (block-diagonal mask keeps batches independent) ----
    mask = mask_ref[...]                  # (B*S, B*S)
    rep = N_HEAD // N_LOCAL_HEADS         # repeat_interleave factor
    attn = jnp.zeros_like(x)              # (B*S, D) f32 accumulator
    for h in range(N_HEAD):
        kvh = h // rep
        qh = q[:, h * HEAD_DIM:(h + 1) * HEAD_DIM].astype(jnp.bfloat16)
        kh = k[:, kvh * HEAD_DIM:(kvh + 1) * HEAD_DIM].astype(jnp.bfloat16)
        vh = v[:, kvh * HEAD_DIM:(kvh + 1) * HEAD_DIM].astype(jnp.bfloat16)
        s = jax.lax.dot_general(qh, kh, (((1,), (1,)), ((), ())),
                                preferred_element_type=jnp.float32) + mask
        m = jnp.max(s, axis=-1, keepdims=True)
        p = jnp.exp(s - m)
        denom = jnp.sum(p, axis=-1, keepdims=True)
        p = p * pl.reciprocal(denom, approx=True)
        ph = jnp.dot(p.astype(jnp.bfloat16), vh,
                     preferred_element_type=jnp.float32)
        # accumulate partial Wo product (no lane-dim concatenate)
        attn = attn + jnp.dot(ph.astype(jnp.bfloat16),
                              wo_ref[h * HEAD_DIM:(h + 1) * HEAD_DIM, :],
                              preferred_element_type=jnp.float32)

    # ---- residual + SwiGLU FFN (w1/w3 fused into one matmul) ----
    h_res = x + attn
    hn = rmsnorm(h_res, ffn_nw_ref[...]).astype(jnp.bfloat16)
    gu = jnp.dot(hn, w13_ref[...], preferred_element_type=jnp.float32)
    g = gu[:, :INTER]
    u = gu[:, INTER:]
    act = (g * jax.nn.sigmoid(g) * u).astype(jnp.bfloat16)
    ff = jnp.dot(act, w2_ref[...], preferred_element_type=jnp.float32)
    out_ref[...] = h_res + ff


# ------------------------------- wrapper -------------------------------------
def transformer_block(x, input_pos, freqs_cis, mask1, mask2, params):
    del input_pos, mask2  # kv-cache / offloading side effects not modeled
    bsz, seq, dim = x.shape
    rows = bsz * seq
    scale = 1.0 / math.sqrt(HEAD_DIM)

    # Interleaved rotary tables, tiled per head and per batch (rows = b*S + s).
    cos = jnp.repeat(freqs_cis[:, :, 0], 2, axis=-1)          # (S, HEAD_DIM)
    sin = jnp.repeat(freqs_cis[:, :, 1], 2, axis=-1)          # (S, HEAD_DIM)
    sign = jnp.tile(jnp.array([-1.0, 1.0], jnp.float32), HEAD_DIM // 2)
    sin_signed = sin * sign[None, :]
    cos_q = jnp.tile(jnp.tile(cos, (1, N_HEAD)), (bsz, 1))            # (B*S, DIM)
    sin_q = jnp.tile(jnp.tile(sin_signed, (1, N_HEAD)), (bsz, 1))
    cos_k = jnp.tile(jnp.tile(cos, (1, N_LOCAL_HEADS)), (bsz, 1))     # (B*S, KV)
    sin_k = jnp.tile(jnp.tile(sin_signed, (1, N_LOCAL_HEADS)), (bsz, 1))

    # Fused QKV weight: drop next_q rows, append perm-folded q/k columns, and
    # fold the attention score scale into the Q columns.  (in, out) layout.
    wqkv = params["wqkv"]                                     # (TOTAL_HEAD_DIM, DIM)
    wq_t = wqkv[:DIM, :].T                                    # (DIM, DIM)
    wk_t = wqkv[DIM:DIM + KV_SIZE, :].T                       # (DIM, KV)
    wv_t = wqkv[DIM + KV_SIZE:DIM + 2 * KV_SIZE, :].T         # (DIM, KV)
    idx_q = jnp.arange(DIM)
    idx_k = jnp.arange(KV_SIZE)
    wqkv_fused = jnp.concatenate(
        [wq_t * scale, wk_t, wv_t,
         wq_t[:, idx_q ^ 1] * scale, wk_t[:, idx_k ^ 1]],
        axis=1).astype(jnp.bfloat16)                          # (DIM, QKV_COLS)

    wo_t = params["wo"].T.astype(jnp.bfloat16)                # (DIM, DIM)
    w13_t = jnp.concatenate([params["w1"].T, params["w3"].T],
                            axis=1).astype(jnp.bfloat16)      # (DIM, 2*INTER)
    w2_t = params["w2"].T.astype(jnp.bfloat16)                # (INTER, DIM)
    attn_nw = params["attn_norm_w"].reshape(1, dim).astype(jnp.float32)
    ffn_nw = params["ffn_norm_w"].reshape(1, dim).astype(jnp.float32)

    # Block-diagonal causal mask keeps the two batches from attending to each
    # other while letting all projections and attention run at M = B*S rows.
    mask2d = mask1[0, 0]
    mask_full = jnp.full((rows, rows), -jnp.inf, jnp.float32)
    for b in range(bsz):
        mask_full = mask_full.at[b * seq:(b + 1) * seq,
                                 b * seq:(b + 1) * seq].set(mask2d)

    x2d = x.reshape(rows, dim)

    full = lambda shape: pl.BlockSpec(shape, lambda i: (0,) * len(shape))
    in_specs = [
        full((rows, dim)),                                   # x
        full((rows, dim)), full((rows, dim)),                # cos_q, sin_q
        full((rows, KV_SIZE)), full((rows, KV_SIZE)),        # cos_k, sin_k
        full((dim, QKV_COLS)),                               # fused wqkv
        full((dim, dim)),                                    # wo^T
        full((dim, 2 * INTER)),                              # w13^T
        full((INTER, dim)),                                  # w2^T
        full((1, dim)), full((1, dim)),                      # norm weights
        full((rows, rows)),                                  # mask
    ]
    out_specs = full((rows, dim))

    out2d = pl.pallas_call(
        transformer_block_kernel,
        out_shape=jax.ShapeDtypeStruct((rows, dim), jnp.float32),
        grid_spec=pltpu.PrefetchScalarGridSpec(
            num_scalar_prefetch=0,
            grid=(1,),
            in_specs=in_specs,
            out_specs=out_specs,
        ),
        compiler_params=pltpu.CompilerParams(
            dimension_semantics=("arbitrary",),
            vmem_limit_bytes=32 << 20,
        ),
    )(x2d, cos_q, sin_q, cos_k, sin_k, wqkv_fused, wo_t, w13_t, w2_t,
      attn_nw, ffn_nw, mask_full)
    return out2d.reshape(bsz, seq, dim)


# --------------------------- pure-JAX reference -------------------------------
def reference_block(x, freqs_cis, mask1, params):
    def rmsnorm(v, w):
        return v * jax.lax.rsqrt(jnp.mean(v * v, -1, keepdims=True) + EPS) * w

    def rope(t):  # t: (B, S, H, HD)
        ts = t.reshape(*t.shape[:-1], -1, 2)
        fc = freqs_cis.reshape(1, ts.shape[1], 1, ts.shape[3], 2)
        out = jnp.stack([ts[..., 0] * fc[..., 0] - ts[..., 1] * fc[..., 1],
                         ts[..., 1] * fc[..., 0] + ts[..., 0] * fc[..., 1]], -1)
        return out.reshape(*t.shape)

    b, s, d = x.shape
    xn = rmsnorm(x, params["attn_norm_w"])
    qkv = xn @ params["wqkv"].T
    q = qkv[..., :DIM].reshape(b, s, N_HEAD, HEAD_DIM)
    k = qkv[..., DIM:DIM + KV_SIZE].reshape(b, s, N_LOCAL_HEADS, HEAD_DIM)
    v = qkv[..., DIM + KV_SIZE:DIM + 2 * KV_SIZE].reshape(b, s, N_LOCAL_HEADS, HEAD_DIM)
    q, k = rope(q), rope(k)
    q, k, v = (t.transpose(0, 2, 1, 3) for t in (q, k, v))
    rep = N_HEAD // N_LOCAL_HEADS
    k = jnp.repeat(k, rep, axis=1)
    v = jnp.repeat(v, rep, axis=1)
    scores = jnp.einsum("bhqd,bhkd->bhqk", q, k) / math.sqrt(HEAD_DIM) + mask1
    p = jax.nn.softmax(scores, axis=-1)
    y = jnp.einsum("bhqk,bhkd->bhqd", p, v).transpose(0, 2, 1, 3).reshape(b, s, d)
    h = x + y @ params["wo"].T
    hn = rmsnorm(h, params["ffn_norm_w"])
    ff = (jax.nn.silu(hn @ params["w1"].T) * (hn @ params["w3"].T)) @ params["w2"].T
    return h + ff


# ------------------------------- main -----------------------------------------
if __name__ == "__main__":
    key = jax.random.PRNGKey(0)
    ks = jax.random.split(key, 8)
    wscale = 0.02

    # Weights in torch nn.Linear layout: (out_features, in_features).
    params = {
        "wqkv": wscale * jax.random.normal(ks[0], (TOTAL_HEAD_DIM, DIM), jnp.float32),
        "wo":   wscale * jax.random.normal(ks[1], (DIM, DIM), jnp.float32),
        "w1":   wscale * jax.random.normal(ks[2], (INTER, DIM), jnp.float32),
        "w3":   wscale * jax.random.normal(ks[3], (INTER, DIM), jnp.float32),
        "w2":   wscale * jax.random.normal(ks[4], (DIM, INTER), jnp.float32),
        "attn_norm_w": jnp.ones((DIM,), jnp.float32),   # RMSNorm init = ones
        "ffn_norm_w":  jnp.ones((DIM,), jnp.float32),
    }

    x = jax.random.normal(ks[5], (BSZ, SEQ, DIM), jnp.float32)
    input_pos = jnp.arange(SEQ, dtype=jnp.int32)

    # rotary tables: (SEQ, HEAD_DIM//2, 2) = stack([cos, sin], -1)
    inv_freq = 1.0 / (ROPE_BASE ** (jnp.arange(0, HEAD_DIM, 2, dtype=jnp.float32) / HEAD_DIM))
    angles = jnp.outer(jnp.arange(SEQ, dtype=jnp.float32), inv_freq)
    freqs_cis = jnp.stack([jnp.cos(angles), jnp.sin(angles)], axis=-1)

    causal = jnp.tril(jnp.ones((SEQ, SEQ), dtype=bool))
    mask1 = jnp.where(causal, 0.0, -jnp.inf).astype(jnp.float32)[None, None]
    mask2 = jnp.zeros_like(mask1)

    out = transformer_block(x, input_pos, freqs_cis, mask1, mask2, params)
    out = jax.block_until_ready(out)

    ref = reference_block(x, freqs_cis, mask1, params)
    assert out.shape == (BSZ, SEQ, DIM)
    assert bool(jnp.all(jnp.isfinite(out)))
    assert bool(jnp.allclose(out, ref, atol=2e-2, rtol=2e-2)), \
        f"max diff {float(jnp.max(jnp.abs(out - ref)))}"

    print("KERNEL_OK")
</pallas_src>

<mosaic_0001>
module attributes {stable_mosaic.version = 11 : i64} {
  func.func @transformer_block_kernel(%arg0: i32, %arg1: memref<16x256xf32, #tpu.memory_space<vmem>>, %arg2: memref<16x256xf32, #tpu.memory_space<vmem>>, %arg3: memref<16x256xf32, #tpu.memory_space<vmem>>, %arg4: memref<16x256xf32, #tpu.memory_space<vmem>>, %arg5: memref<16x256xf32, #tpu.memory_space<vmem>>, %arg6: memref<256x1280xbf16, #tpu.memory_space<vmem>>, %arg7: memref<256x256xbf16, #tpu.memory_space<vmem>>, %arg8: memref<256x1536xbf16, #tpu.memory_space<vmem>>, %arg9: memref<768x256xbf16, #tpu.memory_space<vmem>>, %arg10: memref<1x256xf32, #tpu.memory_space<vmem>>, %arg11: memref<1x256xf32, #tpu.memory_space<vmem>>, %arg12: memref<16x16xf32, #tpu.memory_space<vmem>>, %arg13: memref<16x256xf32, #tpu.memory_space<vmem>>) attributes {dimension_semantics = [#tpu.dimension_semantics<arbitrary>], iteration_bounds = array<i64: 1>, scalar_prefetch = 0 : i64, scratch_operands = 0 : i64, tpu.core_type = #tpu.core_type<tc>, window_params = [{pipeline_mode = #tpu.pipeline_mode<synchronous>, transform_indices = @transform_0, window_bounds = array<i64: 16, 256>}, {pipeline_mode = #tpu.pipeline_mode<synchronous>, transform_indices = @transform_1, window_bounds = array<i64: 16, 256>}, {pipeline_mode = #tpu.pipeline_mode<synchronous>, transform_indices = @transform_2, window_bounds = array<i64: 16, 256>}, {pipeline_mode = #tpu.pipeline_mode<synchronous>, transform_indices = @transform_3, window_bounds = array<i64: 16, 256>}, {pipeline_mode = #tpu.pipeline_mode<synchronous>, transform_indices = @transform_4, window_bounds = array<i64: 16, 256>}, {pipeline_mode = #tpu.pipeline_mode<synchronous>, transform_indices = @transform_5, window_bounds = array<i64: 256, 1280>}, {pipeline_mode = #tpu.pipeline_mode<synchronous>, transform_indices = @transform_6, window_bounds = array<i64: 256, 256>}, {pipeline_mode = #tpu.pipeline_mode<synchronous>, transform_indices = @transform_7, window_bounds = array<i64: 256, 1536>}, {pipeline_mode = #tpu.pipeline_mode<synchronous>, transform_indices = @transform_8, window_bounds = array<i64: 768, 256>}, {pipeline_mode = #tpu.pipeline_mode<synchronous>, transform_indices = @transform_9, window_bounds = array<i64: 1, 256>}, {pipeline_mode = #tpu.pipeline_mode<synchronous>, transform_indices = @transform_10, window_bounds = array<i64: 1, 256>}, {pipeline_mode = #tpu.pipeline_mode<synchronous>, transform_indices = @transform_11, window_bounds = array<i64: 16, 16>}, {pipeline_mode = #tpu.pipeline_mode<synchronous>, transform_indices = @transform_12, window_bounds = array<i64: 16, 256>}]} {
    %c0 = arith.constant 0 : index
    %c0_0 = arith.constant 0 : index
    %0 = vector.load %arg1[%c0, %c0_0] : memref<16x256xf32, #tpu.memory_space<vmem>>, vector<16x256xf32>
    %c0_1 = arith.constant 0 : index
    %c0_2 = arith.constant 0 : index
    %1 = vector.load %arg10[%c0_1, %c0_2] : memref<1x256xf32, #tpu.memory_space<vmem>>, vector<1x256xf32>
    %2 = arith.mulf %0, %0 : vector<16x256xf32>
    %cst = arith.constant dense<0.000000e+00> : vector<16xf32>
    %3 = vector.multi_reduction <add>, %2, %cst [1] : vector<16x256xf32> to vector<16xf32>
    %4 = vector.shape_cast %3 : vector<16xf32> to vector<16x1xf32>
    %cst_3 = arith.constant 2.560000e+02 : f32
    %5 = vector.broadcast %cst_3 : f32 to vector<16x1xf32>
    %6 = arith.divf %4, %5 : vector<16x1xf32>
    %cst_4 = arith.constant 9.99999974E-6 : f32
    %7 = vector.broadcast %cst_4 : f32 to vector<16x1xf32>
    %8 = arith.addf %6, %7 : vector<16x1xf32>
    %9 = math.rsqrt %8 : vector<16x1xf32>
    %10 = vector.broadcast %9 : vector<16x1xf32> to vector<16x256xf32>
    %11 = arith.mulf %0, %10 : vector<16x256xf32>
    %12 = vector.broadcast %1 : vector<1x256xf32> to vector<16x256xf32>
    %13 = arith.mulf %11, %12 : vector<16x256xf32>
    %14 = arith.truncf %13 : vector<16x256xf32> to vector<16x256xbf16>
    %c0_5 = arith.constant 0 : index
    %c0_6 = arith.constant 0 : index
    %15 = vector.load %arg6[%c0_5, %c0_6] : memref<256x1280xbf16, #tpu.memory_space<vmem>>, vector<256x1280xbf16>
    %cst_7 = arith.constant dense<0.000000e+00> : vector<16x1280xf32>
    %16 = tpu.matmul %14, %15, %cst_7 {dimension_numbers = #tpu.dot_dimension_numbers<[1], [0], [0], [1], [0, 0, 1, 1], [], []>} : vector<16x256xbf16>, vector<256x1280xbf16>, vector<16x1280xf32> -> vector<16x1280xf32>
    %17 = vector.extract_strided_slice %16 {offsets = [0, 0], sizes = [16, 256], strides = [1, 1]} : vector<16x1280xf32> to vector<16x256xf32>
    %c0_8 = arith.constant 0 : index
    %c0_9 = arith.constant 0 : index
    %18 = vector.load %arg2[%c0_8, %c0_9] : memref<16x256xf32, #tpu.memory_space<vmem>>, vector<16x256xf32>
    %19 = arith.mulf %17, %18 : vector<16x256xf32>
    %20 = vector.extract_strided_slice %16 {offsets = [0, 768], sizes = [16, 256], strides = [1, 1]} : vector<16x1280xf32> to vector<16x256xf32>
    %c0_10 = arith.constant 0 : index
    %c0_11 = arith.constant 0 : index
    %21 = vector.load %arg3[%c0_10, %c0_11] : memref<16x256xf32, #tpu.memory_space<vmem>>, vector<16x256xf32>
    %22 = arith.mulf %20, %21 : vector<16x256xf32>
    %23 = arith.addf %19, %22 : vector<16x256xf32>
    %24 = vector.extract_strided_slice %16 {offsets = [0, 256], sizes = [16, 256], strides = [1, 1]} : vector<16x1280xf32> to vector<16x256xf32>
    %c0_12 = arith.constant 0 : index
    %c0_13 = arith.constant 0 : index
    %25 = vector.load %arg4[%c0_12, %c0_13] : memref<16x256xf32, #tpu.memory_space<vmem>>, vector<16x256xf32>
    %26 = arith.mulf %24, %25 : vector<16x256xf32>
    %27 = vector.extract_strided_slice %16 {offsets = [0, 1024], sizes = [16, 256], strides = [1, 1]} : vector<16x1280xf32> to vector<16x256xf32>
    %c0_14 = arith.constant 0 : index
    %c0_15 = arith.constant 0 : index
    %28 = vector.load %arg5[%c0_14, %c0_15] : memref<16x256xf32, #tpu.memory_space<vmem>>, vector<16x256xf32>
    %29 = arith.mulf %27, %28 : vector<16x256xf32>
    %30 = arith.addf %26, %29 : vector<16x256xf32>
    %31 = vector.extract_strided_slice %16 {offsets = [0, 512], sizes = [16, 256], strides = [1, 1]} : vector<16x1280xf32> to vector<16x256xf32>
    %c0_16 = arith.constant 0 : index
    %c0_17 = arith.constant 0 : index
    %32 = vector.load %arg12[%c0_16, %c0_17] : memref<16x16xf32, #tpu.memory_space<vmem>>, vector<16x16xf32>
    %cst_18 = arith.constant 0.000000e+00 : f32
    %33 = vector.broadcast %cst_18 : f32 to vector<16x256xf32>
    %34 = vector.extract_strided_slice %23 {offsets = [0, 0], sizes = [16, 128], strides = [1, 1]} : vector<16x256xf32> to vector<16x128xf32>
    %35 = arith.truncf %34 : vector<16x128xf32> to vector<16x128xbf16>
    %36 = vector.extract_strided_slice %30 {offsets = [0, 0], sizes = [16, 128], strides = [1, 1]} : vector<16x256xf32> to vector<16x128xf32>
    %37 = arith.truncf %36 : vector<16x128xf32> to vector<16x128xbf16>
    %38 = vector.extract_strided_slice %31 {offsets = [0, 0], sizes = [16, 128], strides = [1, 1]} : vector<16x256xf32> to vector<16x128xf32>
    %39 = arith.truncf %38 : vector<16x128xf32> to vector<16x128xbf16>
    %cst_19 = arith.constant dense<0.000000e+00> : vector<16x16xf32>
    %40 = tpu.matmul %35, %37, %cst_19 {dimension_numbers = #tpu.dot_dimension_numbers<[1], [1], [0], [0], [0, 0, 1, 0], [], []>} : vector<16x128xbf16>, vector<16x128xbf16>, vector<16x16xf32> -> vector<16x16xf32>
    %41 = arith.addf %40, %32 : vector<16x16xf32>
    %cst_20 = arith.constant dense<0xFF800000> : vector<16xf32>
    %42 = vector.multi_reduction <maximumf>, %41, %cst_20 [1] : vector<16x16xf32> to vector<16xf32>
    %43 = vector.shape_cast %42 : vector<16xf32> to vector<16x1xf32>
    %44 = vector.broadcast %43 : vector<16x1xf32> to vector<16x16xf32>
    %45 = arith.subf %41, %44 : vector<16x16xf32>
    %46 = math.exp %45 : vector<16x16xf32>
    %cst_21 = arith.constant dense<0.000000e+00> : vector<16xf32>
    %47 = vector.multi_reduction <add>, %46, %cst_21 [1] : vector<16x16xf32> to vector<16xf32>
    %48 = vector.shape_cast %47 : vector<16xf32> to vector<16x1xf32>
    %49 = tpu.reciprocal %48 {approx = true} : vector<16x1xf32> -> vector<16x1xf32>
    %50 = vector.broadcast %49 : vector<16x1xf32> to vector<16x16xf32>
    %51 = arith.mulf %46, %50 : vector<16x16xf32>
    %52 = arith.truncf %51 : vector<16x16xf32> to vector<16x16xbf16>
    %cst_22 = arith.constant dense<0.000000e+00> : vector<16x128xf32>
    %53 = tpu.matmul %52, %39, %cst_22 {dimension_numbers = #tpu.dot_dimension_numbers<[1], [0], [0], [1], [0, 0, 1, 1], [], []>} : vector<16x16xbf16>, vector<16x128xbf16>, vector<16x128xf32> -> vector<16x128xf32>
    %54 = arith.truncf %53 : vector<16x128xf32> to vector<16x128xbf16>
    %c0_23 = arith.constant 0 : index
    %c0_24 = arith.constant 0 : index
    %55 = vector.load %arg7[%c0_23, %c0_24] : memref<256x256xbf16, #tpu.memory_space<vmem>>, vector<128x256xbf16>
    %cst_25 = arith.constant dense<0.000000e+00> : vector<16x256xf32>
    %56 = tpu.matmul %54, %55, %cst_25 {dimension_numbers = #tpu.dot_dimension_numbers<[1], [0], [0], [1], [0, 0, 1, 1], [], []>} : vector<16x128xbf16>, vector<128x256xbf16>, vector<16x256xf32> -> vector<16x256xf32>
    %57 = arith.addf %33, %56 : vector<16x256xf32>
    %58 = vector.extract_strided_slice %23 {offsets = [0, 128], sizes = [16, 128], strides = [1, 1]} : vector<16x256xf32> to vector<16x128xf32>
    %59 = arith.truncf %58 : vector<16x128xf32> to vector<16x128xbf16>
    %60 = vector.extract_strided_slice %30 {offsets = [0, 128], sizes = [16, 128], strides = [1, 1]} : vector<16x256xf32> to vector<16x128xf32>
    %61 = arith.truncf %60 : vector<16x128xf32> to vector<16x128xbf16>
    %62 = vector.extract_strided_slice %31 {offsets = [0, 128], sizes = [16, 128], strides = [1, 1]} : vector<16x256xf32> to vector<16x128xf32>
    %63 = arith.truncf %62 : vector<16x128xf32> to vector<16x128xbf16>
    %cst_26 = arith.constant dense<0.000000e+00> : vector<16x16xf32>
    %64 = tpu.matmul %59, %61, %cst_26 {dimension_numbers = #tpu.dot_dimension_numbers<[1], [1], [0], [0], [0, 0, 1, 0], [], []>} : vector<16x128xbf16>, vector<16x128xbf16>, vector<16x16xf32> -> vector<16x16xf32>
    %65 = arith.addf %64, %32 : vector<16x16xf32>
    %cst_27 = arith.constant dense<0xFF800000> : vector<16xf32>
    %66 = vector.multi_reduction <maximumf>, %65, %cst_27 [1] : vector<16x16xf32> to vector<16xf32>
    %67 = vector.shape_cast %66 : vector<16xf32> to vector<16x1xf32>
    %68 = vector.broadcast %67 : vector<16x1xf32> to vector<16x16xf32>
    %69 = arith.subf %65, %68 : vector<16x16xf32>
    %70 = math.exp %69 : vector<16x16xf32>
    %cst_28 = arith.constant dense<0.000000e+00> : vector<16xf32>
    %71 = vector.multi_reduction <add>, %70, %cst_28 [1] : vector<16x16xf32> to vector<16xf32>
    %72 = vector.shape_cast %71 : vector<16xf32> to vector<16x1xf32>
    %73 = tpu.reciprocal %72 {approx = true} : vector<16x1xf32> -> vector<16x1xf32>
    %74 = vector.broadcast %73 : vector<16x1xf32> to vector<16x16xf32>
    %75 = arith.mulf %70, %74 : vector<16x16xf32>
    %76 = arith.truncf %75 : vector<16x16xf32> to vector<16x16xbf16>
    %cst_29 = arith.constant dense<0.000000e+00> : vector<16x128xf32>
    %77 = tpu.matmul %76, %63, %cst_29 {dimension_numbers = #tpu.dot_dimension_numbers<[1], [0], [0], [1], [0, 0, 1, 1], [], []>} : vector<16x16xbf16>, vector<16x128xbf16>, vector<16x128xf32> -> vector<16x128xf32>
    %78 = arith.truncf %77 : vector<16x128xf32> to vector<16x128xbf16>
    %c128 = arith.constant 128 : index
    %c0_30 = arith.constant 0 : index
    %79 = vector.load %arg7[%c128, %c0_30] : memref<256x256xbf16, #tpu.memory_space<vmem>>, vector<128x256xbf16>
    %cst_31 = arith.constant dense<0.000000e+00> : vector<16x256xf32>
    %80 = tpu.matmul %78, %79, %cst_31 {dimension_numbers = #tpu.dot_dimension_numbers<[1], [0], [0], [1], [0, 0, 1, 1], [], []>} : vector<16x128xbf16>, vector<128x256xbf16>, vector<16x256xf32> -> vector<16x256xf32>
    %81 = arith.addf %57, %80 : vector<16x256xf32>
    %82 = arith.addf %0, %81 : vector<16x256xf32>
    %c0_32 = arith.constant 0 : index
    %c0_33 = arith.constant 0 : index
    %83 = vector.load %arg11[%c0_32, %c0_33] : memref<1x256xf32, #tpu.memory_space<vmem>>, vector<1x256xf32>
    %84 = arith.mulf %82, %82 : vector<16x256xf32>
    %cst_34 = arith.constant dense<0.000000e+00> : vector<16xf32>
    %85 = vector.multi_reduction <add>, %84, %cst_34 [1] : vector<16x256xf32> to vector<16xf32>
    %86 = vector.shape_cast %85 : vector<16xf32> to vector<16x1xf32>
    %cst_35 = arith.constant 2.560000e+02 : f32
    %87 = vector.broadcast %cst_35 : f32 to vector<16x1xf32>
    %88 = arith.divf %86, %87 : vector<16x1xf32>
    %cst_36 = arith.constant 9.99999974E-6 : f32
    %89 = vector.broadcast %cst_36 : f32 to vector<16x1xf32>
    %90 = arith.addf %88, %89 : vector<16x1xf32>
    %91 = math.rsqrt %90 : vector<16x1xf32>
    %92 = vector.broadcast %91 : vector<16x1xf32> to vector<16x256xf32>
    %93 = arith.mulf %82, %92 : vector<16x256xf32>
    %94 = vector.broadcast %83 : vector<1x256xf32> to vector<16x256xf32>
    %95 = arith.mulf %93, %94 : vector<16x256xf32>
    %96 = arith.truncf %95 : vector<16x256xf32> to vector<16x256xbf16>
    %c0_37 = arith.constant 0 : index
    %c0_38 = arith.constant 0 : index
    %97 = vector.load %arg8[%c0_37, %c0_38] : memref<256x1536xbf16, #tpu.memory_space<vmem>>, vector<256x1536xbf16>
    %cst_39 = arith.constant dense<0.000000e+00> : vector<16x1536xf32>
    %98 = tpu.matmul %96, %97, %cst_39 {dimension_numbers = #tpu.dot_dimension_numbers<[1], [0], [0], [1], [0, 0, 1, 1], [], []>} : vector<16x256xbf16>, vector<256x1536xbf16>, vector<16x1536xf32> -> vector<16x1536xf32>
    %99 = vector.extract_strided_slice %98 {offsets = [0, 0], sizes = [16, 768], strides = [1, 1]} : vector<16x1536xf32> to vector<16x768xf32>
    %100 = vector.extract_strided_slice %98 {offsets = [0, 768], sizes = [16, 768], strides = [1, 1]} : vector<16x1536xf32> to vector<16x768xf32>
    %101 = arith.negf %99 : vector<16x768xf32>
    %102 = math.exp %101 : vector<16x768xf32>
    %cst_40 = arith.constant 1.000000e+00 : f32
    %103 = vector.broadcast %cst_40 : f32 to vector<16x768xf32>
    %104 = arith.addf %103, %102 : vector<16x768xf32>
    %105 = arith.divf %103, %104 : vector<16x768xf32>
    %106 = arith.mulf %99, %105 : vector<16x768xf32>
    %107 = arith.mulf %106, %100 : vector<16x768xf32>
    %108 = arith.truncf %107 : vector<16x768xf32> to vector<16x768xbf16>
    %c0_41 = arith.constant 0 : index
    %c0_42 = arith.constant 0 : index
    %109 = vector.load %arg9[%c0_41, %c0_42] : memref<768x256xbf16, #tpu.memory_space<vmem>>, vector<768x256xbf16>
    %cst_43 = arith.constant dense<0.000000e+00> : vector<16x256xf32>
    %110 = tpu.matmul %108, %109, %cst_43 {dimension_numbers = #tpu.dot_dimension_numbers<[1], [0], [0], [1], [0, 0, 1, 1], [], []>} : vector<16x768xbf16>, vector<768x256xbf16>, vector<16x256xf32> -> vector<16x256xf32>
    %111 = arith.addf %82, %110 : vector<16x256xf32>
    %c0_44 = arith.constant 0 : index
    %c0_45 = arith.constant 0 : index
    %112 = vector.load %arg13[%c0_44, %c0_45] : memref<16x256xf32, #tpu.memory_space<vmem>>, vector<16x256xf32>
    tpu.vector_store %arg13[%c0_44, %c0_45], %111 {strides = array<i32>} : memref<16x256xf32, #tpu.memory_space<vmem>>, vector<16x256xf32>,
    return
  }
  func.func @transform_0(%arg0: i32) -> (i32, i32) {
    %c0_i32 = arith.constant 0 : i32
    %c0_i32_0 = arith.constant 0 : i32
    %c0_i32_1 = arith.constant 0 : i32
    return %c0_i32, %c0_i32_0 : i32, i32
  }
  func.func @transform_1(%arg0: i32) -> (i32, i32) {
    %c0_i32 = arith.constant 0 : i32
    %c0_i32_0 = arith.constant 0 : i32
    %c0_i32_1 = arith.constant 0 : i32
    return %c0_i32, %c0_i32_0 : i32, i32
  }
  func.func @transform_2(%arg0: i32) -> (i32, i32) {
    %c0_i32 = arith.constant 0 : i32
    %c0_i32_0 = arith.constant 0 : i32
    %c0_i32_1 = arith.constant 0 : i32
    return %c0_i32, %c0_i32_0 : i32, i32
  }
  func.func @transform_3(%arg0: i32) -> (i32, i32) {
    %c0_i32 = arith.constant 0 : i32
    %c0_i32_0 = arith.constant 0 : i32
    %c0_i32_1 = arith.constant 0 : i32
    return %c0_i32, %c0_i32_0 : i32, i32
  }
  func.func @transform_4(%arg0: i32) -> (i32, i32) {
    %c0_i32 = arith.constant 0 : i32
    %c0_i32_0 = arith.constant 0 : i32
    %c0_i32_1 = arith.constant 0 : i32
    return %c0_i32, %c0_i32_0 : i32, i32
  }
  func.func @transform_5(%arg0: i32) -> (i32, i32) {
    %c0_i32 = arith.constant 0 : i32
    %c0_i32_0 = arith.constant 0 : i32
    %c0_i32_1 = arith.constant 0 : i32
    return %c0_i32, %c0_i32_0 : i32, i32
  }
  func.func @transform_6(%arg0: i32) -> (i32, i32) {
    %c0_i32 = arith.constant 0 : i32
    %c0_i32_0 = arith.constant 0 : i32
    %c0_i32_1 = arith.constant 0 : i32
    return %c0_i32, %c0_i32_0 : i32, i32
  }
  func.func @transform_7(%arg0: i32) -> (i32, i32) {
    %c0_i32 = arith.constant 0 : i32
    %c0_i32_0 = arith.constant 0 : i32
    %c0_i32_1 = arith.constant 0 : i32
    return %c0_i32, %c0_i32_0 : i32, i32
  }
  func.func @transform_8(%arg0: i32) -> (i32, i32) {
    %c0_i32 = arith.constant 0 : i32
    %c0_i32_0 = arith.constant 0 : i32
    %c0_i32_1 = arith.constant 0 : i32
    return %c0_i32, %c0_i32_0 : i32, i32
  }
  func.func @transform_9(%arg0: i32) -> (i32, i32) {
    %c0_i32 = arith.constant 0 : i32
    %c0_i32_0 = arith.constant 0 : i32
    %c0_i32_1 = arith.constant 0 : i32
    return %c0_i32, %c0_i32_0 : i32, i32
  }
  func.func @transform_10(%arg0: i32) -> (i32, i32) {
    %c0_i32 = arith.constant 0 : i32
    %c0_i32_0 = arith.constant 0 : i32
    %c0_i32_1 = arith.constant 0 : i32
    return %c0_i32, %c0_i32_0 : i32, i32
  }
  func.func @transform_11(%arg0: i32) -> (i32, i32) {
    %c0_i32 = arith.constant 0 : i32
    %c0_i32_0 = arith.constant 0 : i32
    %c0_i32_1 = arith.constant 0 : i32
    return %c0_i32, %c0_i32_0 : i32, i32
  }
  func.func @transform_12(%arg0: i32) -> (i32, i32) {
    %c0_i32 = arith.constant 0 : i32
    %c0_i32_0 = arith.constant 0 : i32
    %c0_i32_1 = arith.constant 0 : i32
    return %c0_i32, %c0_i32_0 : i32, i32
  }
}

</mosaic_0001>

<llo_original>
// kernel: tpu_custom_call.1
$region0: #{tpu_custom_call.1}
  #allocation0 [shape = 'u32[]', space=smem, size = 0x4, offset = 0x4, fixed_abs, tag = 'smem constant byte address 0x4 - core index']
  #allocation1 [shape = 'u32[72,128]{1,0:T(1,128)}', space=vmem, size = 0x9000, scoped, tag = 'internal scratch']
  %s0 = inlined_call_operand.hbm [shape: f32[16,256], index: 0, kind: input, shape index: {}]
  %s1 = inlined_call_operand.hbm [shape: f32[16,256], index: 1, kind: input, shape index: {}]
  %s2 = inlined_call_operand.hbm [shape: f32[16,256], index: 2, kind: input, shape index: {}]
  %s3 = inlined_call_operand.hbm [shape: f32[16,256], index: 3, kind: input, shape index: {}]
  %s4 = inlined_call_operand.hbm [shape: f32[16,256], index: 4, kind: input, shape index: {}]
  %s5 = inlined_call_operand.hbm [shape: bf16[256,1280], index: 5, kind: input, shape index: {}]
  %s6 = inlined_call_operand.hbm [shape: bf16[256,256], index: 6, kind: input, shape index: {}]
  %s7 = inlined_call_operand.hbm [shape: bf16[256,1536], index: 7, kind: input, shape index: {}]
  %s8 = inlined_call_operand.hbm [shape: bf16[768,256], index: 8, kind: input, shape index: {}]
  %s9 = inlined_call_operand.vmem [shape: f32[1,256], index: 9, kind: input, shape index: {}]
  %s10 = inlined_call_operand.vmem [shape: f32[1,256], index: 10, kind: input, shape index: {}]
  %s11 = inlined_call_operand.hbm [shape: f32[16,16], index: 11, kind: input, shape index: {}]
  %s12 = inlined_call_operand.hbm [shape: f32[16,256], index: 12, kind: output, shape index: {}]
  %s13 = sld [smem:[#allocation0]]
  $region98: #{tpu_custom_call.1} parent=0
    _
  %s15 = ssub.s32 1, %s13
  %s16 = scalar_select 0, %s15, %s13
  $region1: #{tpu_custom_call.1} parent=0
    #allocation2 [shape = 'u8[16384]{0}', space=vmem, size = 0x4000, scoped, tag = 'input window, operand 0, single buffered']
    #allocation3 [shape = 's32[1]{0}', space=sflag, size = 0x4, scoped, tag = 'scoped memory for tpu_custom_call.1']
    #allocation4 [shape = 's32[1]{0}', space=sflag, size = 0x4, scoped, tag = 'scoped memory for tpu_custom_call.1']
    #allocation5 [shape = 'u8[16384]{0}', space=vmem, size = 0x4000, scoped, tag = 'input window, operand 1, single buffered']
    #allocation6 [shape = 's32[1]{0}', space=sflag, size = 0x4, scoped, tag = 'scoped memory for tpu_custom_call.1']
    #allocation7 [shape = 'u8[16384]{0}', space=vmem, size = 0x4000, scoped, tag = 'input window, operand 2, single buffered']
    #allocation8 [shape = 'u8[16384]{0}', space=vmem, size = 0x4000, scoped, tag = 'input window, operand 3, single buffered']
    #allocation9 [shape = 's32[1]{0}', space=sflag, size = 0x4, scoped, tag = 'scoped memory for tpu_custom_call.1']
    #allocation10 [shape = 'u8[16384]{0}', space=vmem, size = 0x4000, scoped, tag = 'input window, operand 4, single buffered']
    #allocation11 [shape = 'u8[655360]{0}', space=vmem, size = 0xa0000, scoped, tag = 'input window, operand 5, single buffered']
    #allocation12 [shape = 's32[1]{0}', space=sflag, size = 0x4, scoped, tag = 'scoped memory for tpu_custom_call.1']
    #allocation13 [shape = 'u8[131072]{0}', space=vmem, size = 0x20000, scoped, tag = 'input window, operand 6, single buffered']
    #allocation14 [shape = 'u8[786432]{0}', space=vmem, size = 0xc0000, scoped, tag = 'input window, operand 7, single buffered']
    #allocation15 [shape = 's32[1]{0}', space=sflag, size = 0x4, scoped, tag = 'scoped memory for tpu_custom_call.1']
    #allocation16 [shape = 'u8[393216]{0}', space=vmem, size = 0x60000, scoped, tag = 'input window, operand 8, single buffered']
    #allocation17 [shape = 'u8[8192]{0}', space=vmem, size = 0x2000, scoped, tag = 'input window, operand 11, single buffered']
    #allocation18 [shape = 's32[1]{0}', space=sflag, size = 0x4, scoped, tag = 'scoped memory for tpu_custom_call.1']
    #allocation19 [shape = 'u8[16384]{0}', space=vmem, size = 0x4000, scoped, tag = 'output window, operand 0, single buffered']
    %17 = vsyncpa [#allocation3], 0
    %18 = vsyncpa [#allocation6], 0
    %19 = vsyncpa [#allocation9], 0
    %20 = vsyncpa [#allocation12], 0
    %21 = vsyncpa [#allocation15], 0
    %22 = vsyncpa [#allocation18], 0
    %23 = vsyncpa [#allocation4], 0
    // Predicated region
    $region2: #{tpu_custom_call.1} parent=1 // pred_check
      _
    $region3: #{tpu_custom_call.1} parent=1 // pred_check_branch
      %25 = sbr.rel (0) target = $region5
    $region4: #{tpu_custom_call.1} parent=1 // pred_region
      %27 = vsyncadd [#allocation3], 0
      %s28 = sshll.u32 %s0, 4
      %s29 = int_to_ptr.hbm [resolvable:$true] %s28
      %s30 = sshll.u32 [#allocation2], 4
      %s31 = int_to_ptr.vmem [resolvable:$true] %s30
      %36 = dma.hbm_to_vmem [thread:$0]  %s29, 512, %s31, [#allocation3], 256, 256, 16
    $region5: #{tpu_custom_call.1} parent=1 // pred_fallthru
      _
    // Predicated region
    $region6: #{tpu_custom_call.1} parent=1 // pred_check
      _
    $region7: #{tpu_custom_call.1} parent=1 // pred_check_branch
      %38 = sbr.rel (0) target = $region9
    $region8: #{tpu_custom_call.1} parent=1 // pred_region
      %40 = vsyncadd [#allocation6], 0
      %s41 = sshll.u32 %s1, 4
      %s42 = int_to_ptr.hbm [resolvable:$true] %s41
      %s43 = sshll.u32 [#allocation5], 4
      %s44 = int_to_ptr.vmem [resolvable:$true] %s43
      %49 = dma.hbm_to_vmem [thread:$0]  %s42, 512, %s44, [#allocation6], 256, 256, 16
    $region9: #{tpu_custom_call.1} parent=1 // pred_fallthru
      _
    // Predicated region
    $region10: #{tpu_custom_call.1} parent=1 // pred_check
      _
    $region11: #{tpu_custom_call.1} parent=1 // pred_check_branch
      %51 = sbr.rel (0) target = $region13
    $region12: #{tpu_custom_call.1} parent=1 // pred_region
      %53 = vsyncadd [#allocation6], 0
      %s54 = sshll.u32 %s2, 4
      %s55 = int_to_ptr.hbm [resolvable:$true] %s54
      %s56 = sshll.u32 [#allocation7], 4
      %s57 = int_to_ptr.vmem [resolvable:$true] %s56
      %62 = dma.hbm_to_vmem [thread:$0]  %s55, 512, %s57, [#allocation6], 256, 256, 16
    $region13: #{tpu_custom_call.1} parent=1 // pred_fallthru
      _
    // Predicated region
    $region14: #{tpu_custom_call.1} parent=1 // pred_check
      _
    $region15: #{tpu_custom_call.1} parent=1 // pred_check_branch
      %64 = sbr.rel (0) target = $region17
    $region16: #{tpu_custom_call.1} parent=1 // pred_region
      %66 = vsyncadd [#allocation9], 0
      %s67 = sshll.u32 %s3, 4
      %s68 = int_to_ptr.hbm [resolvable:$true] %s67
      %s69 = sshll.u32 [#allocation8], 4
      %s70 = int_to_ptr.vmem [resolvable:$true] %s69
      %75 = dma.hbm_to_vmem [thread:$0]  %s68, 512, %s70, [#allocation9], 256, 256, 16
    $region17: #{tpu_custom_call.1} parent=1 // pred_fallthru
      _
    // Predicated region
    $region18: #{tpu_custom_call.1} parent=1 // pred_check
      _
    $region19: #{tpu_custom_call.1} parent=1 // pred_check_branch
      %77 = sbr.rel (0) target = $region21
    $region20: #{tpu_custom_call.1} parent=1 // pred_region
      %79 = vsyncadd [#allocation9], 0
      %s80 = sshll.u32 %s4, 4
      %s81 = int_to_ptr.hbm [resolvable:$true] %s80
      %s82 = sshll.u32 [#allocation10], 4
      %s83 = int_to_ptr.vmem [resolvable:$true] %s82
      %88 = dma.hbm_to_vmem [thread:$0]  %s81, 512, %s83, [#allocation9], 256, 256, 16
    $region21: #{tpu_custom_call.1} parent=1 // pred_fallthru
      _
    // Predicated region
    $region22: #{tpu_custom_call.1} parent=1 // pred_check
      _
    $region23: #{tpu_custom_call.1} parent=1 // pred_check_branch
      %90 = sbr.rel (0) target = $region25
    $region24: #{tpu_custom_call.1} parent=1 // pred_region
      %92 = vsyncadd [#allocation12], 0
      %s93 = sshll.u32 %s5, 4
      %s94 = int_to_ptr.hbm [resolvable:$true] %s93
      %s95 = sshll.u32 [#allocation11], 4
      %s96 = int_to_ptr.vmem [resolvable:$true] %s95
      %101 = dma.hbm_to_vmem [thread:$0]  %s94, 20480, %s96, [#allocation12], 640, 640, 40
    $region25: #{tpu_custom_call.1} parent=1 // pred_fallthru
      _
    // Predicated region
    $region26: #{tpu_custom_call.1} parent=1 // pred_check
      _
    $region27: #{tpu_custom_call.1} parent=1 // pred_check_branch
      %103 = sbr.rel (0) target = $region29
    $region28: #{tpu_custom_call.1} parent=1 // pred_region
      %105 = vsyncadd [#allocation12], 0
      %s106 = sshll.u32 %s6, 4
      %s107 = int_to_ptr.hbm [resolvable:$true] %s106
      %s108 = sshll.u32 [#allocation13], 4
      %s109 = int_to_ptr.vmem [resolvable:$true] %s108
      %114 = dma.hbm_to_vmem [thread:$0]  %s107, 4096, %s109, [#allocation12], 128, 128, 8
    $region29: #{tpu_custom_call.1} parent=1 // pred_fallthru
      _
    // Predicated region
    $region30: #{tpu_custom_call.1} parent=1 // pred_check
      _
    $region31: #{tpu_custom_call.1} parent=1 // pred_check_branch
      %116 = sbr.rel (0) target = $region33
    $region32: #{tpu_custom_call.1} parent=1 // pred_region
      %118 = vsyncadd [#allocation15], 0
      %s119 = sshll.u32 %s7, 4
      %s120 = int_to_ptr.hbm [resolvable:$true] %s119
      %s121 = sshll.u32 [#allocation14], 4
      %s122 = int_to_ptr.vmem [resolvable:$true] %s121
      %127 = dma.hbm_to_vmem [thread:$0]  %s120, 24576, %s122, [#allocation15], 768, 768, 48
    $region33: #{tpu_custom_call.1} parent=1 // pred_fallthru
      _
    // Predicated region
    $region34: #{tpu_custom_call.1} parent=1 // pred_check
      _
    $region35: #{tpu_custom_call.1} parent=1 // pred_check_branch
      %129 = sbr.rel (0) target = $region37
    $region36: #{tpu_custom_call.1} parent=1 // pred_region
      %131 = vsyncadd [#allocation15], 0
      %s132 = sshll.u32 %s8, 4
      %s133 = int_to_ptr.hbm [resolvable:$true] %s132
      %s134 = sshll.u32 [#allocation16], 4
      %s135 = int_to_ptr.vmem [resolvable:$true] %s134
      %140 = dma.hbm_to_vmem [thread:$0]  %s133, 12288, %s135, [#allocation15], 128, 128, 8
    $region37: #{tpu_custom_call.1} parent=1 // pred_fallthru
      _
    // Predicated region
    $region38: #{tpu_custom_call.1} parent=1 // pred_check
      _
    $region39: #{tpu_custom_call.1} parent=1 // pred_check_branch
      %142 = sbr.rel (0) target = $region41
    $region40: #{tpu_custom_call.1} parent=1 // pred_region
      _
    $region41: #{tpu_custom_call.1} parent=1 // pred_fallthru
      _
    // Predicated region
    $region42: #{tpu_custom_call.1} parent=1 // pred_check
      _
    $region43: #{tpu_custom_call.1} parent=1 // pred_check_branch
      %144 = sbr.rel (0) target = $region45
    $region44: #{tpu_custom_call.1} parent=1 // pred_region
      _
    $region45: #{tpu_custom_call.1} parent=1 // pred_fallthru
      _
    // Predicated region
    $region46: #{tpu_custom_call.1} parent=1 // pred_check
      _
    $region47: #{tpu_custom_call.1} parent=1 // pred_check_branch
      %146 = sbr.rel (0) target = $region49
    $region48: #{tpu_custom_call.1} parent=1 // pred_region
      %148 = vsyncadd [#allocation18], 0
      %s149 = sshll.u32 %s11, 4
      %s150 = int_to_ptr.hbm [resolvable:$true] %s149
      %s151 = sshll.u32 [#allocation17], 4
      %s152 = int_to_ptr.vmem [resolvable:$true] %s151
      %157 = dma.hbm_to_vmem [thread:$0]  %s150, 256, %s152, [#allocation18], 128, 128, 8
    $region49: #{tpu_custom_call.1} parent=1 // pred_fallthru
      _
    // Predicated region
    $region50: #{tpu_custom_call.1} parent=1 // pred_check
      _
    $region51: #{tpu_custom_call.1} parent=1 // pred_check_branch
      %159 = sbr.rel (0) target = $region53
    $region52: #{tpu_custom_call.1} parent=1 // pred_region
      %161 = dma.done [#allocation3], 512
    $region53: #{tpu_custom_call.1} parent=1 // pred_fallthru
      _
    // Predicated region
    $region54: #{tpu_custom_call.1} parent=1 // pred_check
      _
    $region55: #{tpu_custom_call.1} parent=1 // pred_check_branch
      %163 = sbr.rel (0) target = $region57
    $region56: #{tpu_custom_call.1} parent=1 // pred_region
      %165 = dma.done [#allocation6], 512
    $region57: #{tpu_custom_call.1} parent=1 // pred_fallthru
      _
    // Predicated region
    $region58: #{tpu_custom_call.1} parent=1 // pred_check
      _
    $region59: #{tpu_custom_call.1} parent=1 // pred_check_branch
      %167 = sbr.rel (0) target = $region61
    $region60: #{tpu_custom_call.1} parent=1 // pred_region
      %169 = dma.done [#allocation6], 512
    $region61: #{tpu_custom_call.1} parent=1 // pred_fallthru
      _
    // Predicated region
    $region62: #{tpu_custom_call.1} parent=1 // pred_check
      _
    $region63: #{tpu_custom_call.1} parent=1 // pred_check_branch
      %171 = sbr.rel (0) target = $region65
    $region64: #{tpu_custom_call.1} parent=1 // pred_region
      %173 = dma.done [#allocation9], 512
    $region65: #{tpu_custom_call.1} parent=1 // pred_fallthru
      _
    // Predicated region
    $region66: #{tpu_custom_call.1} parent=1 // pred_check
      _
    $region67: #{tpu_custom_call.1} parent=1 // pred_check_branch
      %175 = sbr.rel (0) target = $region69
    $region68: #{tpu_custom_call.1} parent=1 // pred_region
      %177 = dma.done [#allocation9], 512
    $region69: #{tpu_custom_call.1} parent=1 // pred_fallthru
      _
    // Predicated region
    $region70: #{tpu_custom_call.1} parent=1 // pred_check
      _
    $region71: #{tpu_custom_call.1} parent=1 // pred_check_branch
      %179 = sbr.rel (0) target = $region73
    $region72: #{tpu_custom_call.1} parent=1 // pred_region
      %181 = dma.done [#allocation12], 20480
    $region73: #{tpu_custom_call.1} parent=1 // pred_fallthru
      _
    // Predicated region
    $region74: #{tpu_custom_call.1} parent=1 // pred_check
      _
    $region75: #{tpu_custom_call.1} parent=1 // pred_check_branch
      %183 = sbr.rel (0) target = $region77
    $region76: #{tpu_custom_call.1} parent=1 // pred_region
      %185 = dma.done [#allocation12], 4096
    $region77: #{tpu_custom_call.1} parent=1 // pred_fallthru
      _
    // Predicated region
    $region78: #{tpu_custom_call.1} parent=1 // pred_check
      _
    $region79: #{tpu_custom_call.1} parent=1 // pred_check_branch
      %187 = sbr.rel (0) target = $region81
    $region80: #{tpu_custom_call.1} parent=1 // pred_region
      %189 = dma.done [#allocation15], 24576
    $region81: #{tpu_custom_call.1} parent=1 // pred_fallthru
      _
    // Predicated region
    $region82: #{tpu_custom_call.1} parent=1 // pred_check
      _
    $region83: #{tpu_custom_call.1} parent=1 // pred_check_branch
      %191 = sbr.rel (0) target = $region85
    $region84: #{tpu_custom_call.1} parent=1 // pred_region
      %193 = dma.done [#allocation15], 12288
    $region85: #{tpu_custom_call.1} parent=1 // pred_fallthru
      _
    // Predicated region
    $region86: #{tpu_custom_call.1} parent=1 // pred_check
      _
    $region87: #{tpu_custom_call.1} parent=1 // pred_check_branch
      %195 = sbr.rel (0) target = $region89
    $region88: #{tpu_custom_call.1} parent=1 // pred_region
      %197 = dma.done [#allocation18], 256
    $region89: #{tpu_custom_call.1} parent=1 // pred_fallthru
      _
    %v199 = vld [vmem:[#allocation2] sm:$0xff]
    %v200 = vld [vmem:[#allocation2 + $0x8] sm:$0xff]
    %v201 = vld [vmem:[#allocation2 + $0x10] sm:$0xff]
    %v202 = vld [vmem:[#allocation2 + $0x18] sm:$0xff]
    %v203 = vld [vmem:[%s9] sm:$0x3]
    %v204 = vmul.f32 %v199, %v199
    %v205 = vmul.f32 %v200, %v200
    %v206 = vmul.f32 %v201, %v201
    %v207 = vmul.f32 %v202, %v202
    %v208 = vadd.f32 %v204, %v205
    %209 = vadd.xlane.f32.xlu0 %v208
    %v210 = vpop.xlane.xlu0 %209
    %v211 = vadd.f32 %v206, %v207
    %212 = vadd.xlane.f32.xlu0 %v211
    %v213 = vpop.xlane.xlu0 %212
    %v214 = vrcp.pop 256.0
    %v215 = vmul.f32 256.0, %v214
    %v216 = vsub.f32 1.0, %v215
    %v217 = vmul.f32 %v214, %v216
    %v218 = vadd.f32 %v214, %v217
    %vm219 = vweird.f32 %v214
    %v220 = vsel %vm219, %v214, %v218
    %v221 = vmul.f32 %v210, %v220
    %v222 = vmul.f32 %v213, %v220
    %v223 = vadd.f32 %v221, 1e-05
    %v224 = vadd.f32 %v222, 1e-05
    %v225 = vrsqrt.pop %v223
    %v226 = vmul.f32 %v225, %v223
    %v227 = vmul.f32 %v226, %v225
    %v228 = vmul.f32 0.5, %v227
    %v229 = vsub.f32 1.5, %v228
    %v230 = vmul.f32 %v225, %v229
    %vm231 = vweird.f32 %v223
    %vm232 = vweird.f32 %v225
    %vm233 = vmor %vm231, %vm232
    %v234 = vsel %vm233, %v225, %v230
    %v235 = vrsqrt.pop %v224
    %v236 = vmul.f32 %v235, %v224
    %v237 = vmul.f32 %v236, %v235
    %v238 = vmul.f32 0.5, %v237
    %v239 = vsub.f32 1.5, %v238
    %v240 = vmul.f32 %v235, %v239
    %vm241 = vweird.f32 %v224
    %vm242 = vweird.f32 %v235
    %vm243 = vmor %vm241, %vm242
    %v244 = vsel %vm243, %v235, %v240
    %v245 = vmul.f32 %v199, %v234
    %v246 = vmul.f32 %v200, %v234
    %v247 = vmul.f32 %v201, %v244
    %v248 = vmul.f32 %v202, %v244
    %v250 = vperm.slane %v203, 0
    %v251 = vperm.slane %v203, 1
    %v254 = vmul.f32 %v245, %v250
    %v255 = vmul.f32 %v246, %v251
    %v256 = vmul.f32 %v247, %v250
    %v257 = vmul.f32 %v248, %v251
    %v258 = vpack.c.bf16 %v256, %v254
    %v259 = vpack.c.bf16 %v257, %v255
    %v260 = vld [vmem:[#allocation11] sm:$0xff]
    %v261 = vld [vmem:[#allocation11 + $0x8] sm:$0xff]
    %v262 = vld [vmem:[#allocation11 + $0x10] sm:$0xff]
    %v263 = vld [vmem:[#allocation11 + $0x18] sm:$0xff]
    %v264 = vld [vmem:[#allocation11 + $0x20] sm:$0xff]
    %v265 = vld [vmem:[#allocation11 + $0x28] sm:$0xff]
    %v266 = vld [vmem:[#allocation11 + $0x30] sm:$0xff]
    %v267 = vld [vmem:[#allocation11 + $0x38] sm:$0xff]
    %v268 = vld [vmem:[#allocation11 + $0x40] sm:$0xff]
    %v269 = vld [vmem:[#allocation11 + $0x48] sm:$0xff]
    %v270 = vld [vmem:[#allocation11 + $0x50] sm:$0xff]
    %v271 = vld [vmem:[#allocation11 + $0x58] sm:$0xff]
    %v272 = vld [vmem:[#allocation11 + $0x60] sm:$0xff]
    %v273 = vld [vmem:[#allocation11 + $0x68] sm:$0xff]
    %v274 = vld [vmem:[#allocation11 + $0x70] sm:$0xff]
    %v275 = vld [vmem:[#allocation11 + $0x78] sm:$0xff]
    %v276 = vld [vmem:[#allocation11 + $0x80] sm:$0xff]
    %v277 = vld [vmem:[#allocation11 + $0x88] sm:$0xff]
    %v278 = vld [vmem:[#allocation11 + $0x90] sm:$0xff]
    %v279 = vld [vmem:[#allocation11 + $0x98] sm:$0xff]
    %v280 = vld [vmem:[#allocation11 + $0xa0] sm:$0xff]
    %v281 = vld [vmem:[#allocation11 + $0xa8] sm:$0xff]
    %v282 = vld [vmem:[#allocation11 + $0xb0] sm:$0xff]
    %v283 = vld [vmem:[#allocation11 + $0xb8] sm:$0xff]
    %v284 = vld [vmem:[#allocation11 + $0xc0] sm:$0xff]
    %v285 = vld [vmem:[#allocation11 + $0xc8] sm:$0xff]
    %v286 = vld [vmem:[#allocation11 + $0xd0] sm:$0xff]
    %v287 = vld [vmem:[#allocation11 + $0xd8] sm:$0xff]
    %v288 = vld [vmem:[#allocation11 + $0xe0] sm:$0xff]
    %v289 = vld [vmem:[#allocation11 + $0xe8] sm:$0xff]
    %v290 = vld [vmem:[#allocation11 + $0xf0] sm:$0xff]
    %v291 = vld [vmem:[#allocation11 + $0xf8] sm:$0xff]
    %v292 = vld [vmem:[#allocation11 + $0x100] sm:$0xff]
    %v293 = vld [vmem:[#allocation11 + $0x108] sm:$0xff]
    %v294 = vld [vmem:[#allocation11 + $0x110] sm:$0xff]
    %v295 = vld [vmem:[#allocation11 + $0x118] sm:$0xff]
    %v296 = vld [vmem:[#allocation11 + $0x120] sm:$0xff]
    %v297 = vld [vmem:[#allocation11 + $0x128] sm:$0xff]
    %v298 = vld [vmem:[#allocation11 + $0x130] sm:$0xff]
    %v299 = vld [vmem:[#allocation11 + $0x138] sm:$0xff]
    %v300 = vld [vmem:[#allocation11 + $0x140] sm:$0xff]
    %v301 = vld [vmem:[#allocation11 + $0x148] sm:$0xff]
    %v302 = vld [vmem:[#allocation11 + $0x150] sm:$0xff]
    %v303 = vld [vmem:[#allocation11 + $0x158] sm:$0xff]
    %v304 = vld [vmem:[#allocation11 + $0x160] sm:$0xff]
    %v305 = vld [vmem:[#allocation11 + $0x168] sm:$0xff]
    %v306 = vld [vmem:[#allocation11 + $0x170] sm:$0xff]
    %v307 = vld [vmem:[#allocation11 + $0x178] sm:$0xff]
    %v308 = vld [vmem:[#allocation11 + $0x180] sm:$0xff]
    %v309 = vld [vmem:[#allocation11 + $0x188] sm:$0xff]
    %v310 = vld [vmem:[#allocation11 + $0x190] sm:$0xff]
    %v311 = vld [vmem:[#allocation11 + $0x198] sm:$0xff]
    %v312 = vld [vmem:[#allocation11 + $0x1a0] sm:$0xff]
    %v313 = vld [vmem:[#allocation11 + $0x1a8] sm:$0xff]
    %v314 = vld [vmem:[#allocation11 + $0x1b0] sm:$0xff]
    %v315 = vld [vmem:[#allocation11 + $0x1b8] sm:$0xff]
    %v316 = vld [vmem:[#allocation11 + $0x1c0] sm:$0xff]
    %v317 = vld [vmem:[#allocation11 + $0x1c8] sm:$0xff]
    %v318 = vld [vmem:[#allocation11 + $0x1d0] sm:$0xff]
    %v319 = vld [vmem:[#allocation11 + $0x1d8] sm:$0xff]
    %v320 = vld [vmem:[#allocation11 + $0x1e0] sm:$0xff]
    %v321 = vld [vmem:[#allocation11 + $0x1e8] sm:$0xff]
    %v322 = vld [vmem:[#allocation11 + $0x1f0] sm:$0xff]
    %v323 = vld [vmem:[#allocation11 + $0x1f8] sm:$0xff]
    %v324 = vld [vmem:[#allocation11 + $0x200] sm:$0xff]
    %v325 = vld [vmem:[#allocation11 + $0x208] sm:$0xff]
    %v326 = vld [vmem:[#allocation11 + $0x210] sm:$0xff]
    %v327 = vld [vmem:[#allocation11 + $0x218] sm:$0xff]
    %v328 = vld [vmem:[#allocation11 + $0x220] sm:$0xff]
    %v329 = vld [vmem:[#allocation11 + $0x228] sm:$0xff]
    %v330 = vld [vmem:[#allocation11 + $0x230] sm:$0xff]
    %v331 = vld [vmem:[#allocation11 + $0x238] sm:$0xff]
    %v332 = vld [vmem:[#allocation11 + $0x240] sm:$0xff]
    %v333 = vld [vmem:[#allocation11 + $0x248] sm:$0xff]
    %v334 = vld [vmem:[#allocation11 + $0x250] sm:$0xff]
    %v335 = vld [vmem:[#allocation11 + $0x258] sm:$0xff]
    %v336 = vld [vmem:[#allocation11 + $0x260] sm:$0xff]
    %v337 = vld [vmem:[#allocation11 + $0x268] sm:$0xff]
    %v338 = vld [vmem:[#allocation11 + $0x270] sm:$0xff]
    %v339 = vld [vmem:[#allocation11 + $0x278] sm:$0xff]
    %v340 = vld [vmem:[#allocation11 + $0x280] sm:$0xff]
    %v341 = vld [vmem:[#allocation11 + $0x288] sm:$0xff]
    %v342 = vld [vmem:[#allocation11 + $0x290] sm:$0xff]
    %v343 = vld [vmem:[#allocation11 + $0x298] sm:$0xff]
    %v344 = vld [vmem:[#allocation11 + $0x2a0] sm:$0xff]
    %v345 = vld [vmem:[#allocation11 + $0x2a8] sm:$0xff]
    %v346 = vld [vmem:[#allocation11 + $0x2b0] sm:$0xff]
    %v347 = vld [vmem:[#allocation11 + $0x2b8] sm:$0xff]
    %v348 = vld [vmem:[#allocation11 + $0x2c0] sm:$0xff]
    %v349 = vld [vmem:[#allocation11 + $0x2c8] sm:$0xff]
    %v350 = vld [vmem:[#allocation11 + $0x2d0] sm:$0xff]
    %v351 = vld [vmem:[#allocation11 + $0x2d8] sm:$0xff]
    %v352 = vld [vmem:[#allocation11 + $0x2e0] sm:$0xff]
    %v353 = vld [vmem:[#allocation11 + $0x2e8] sm:$0xff]
    %v354 = vld [vmem:[#allocation11 + $0x2f0] sm:$0xff]
    %v355 = vld [vmem:[#allocation11 + $0x2f8] sm:$0xff]
    %v356 = vld [vmem:[#allocation11 + $0x300] sm:$0xff]
    %v357 = vld [vmem:[#allocation11 + $0x308] sm:$0xff]
    %v358 = vld [vmem:[#allocation11 + $0x310] sm:$0xff]
    %v359 = vld [vmem:[#allocation11 + $0x318] sm:$0xff]
    %v360 = vld [vmem:[#allocation11 + $0x320] sm:$0xff]
    %v361 = vld [vmem:[#allocation11 + $0x328] sm:$0xff]
    %v362 = vld [vmem:[#allocation11 + $0x330] sm:$0xff]
    %v363 = vld [vmem:[#allocation11 + $0x338] sm:$0xff]
    %v364 = vld [vmem:[#allocation11 + $0x340] sm:$0xff]
    %v365 = vld [vmem:[#allocation11 + $0x348] sm:$0xff]
    %v366 = vld [vmem:[#allocation11 + $0x350] sm:$0xff]
    %v367 = vld [vmem:[#allocation11 + $0x358] sm:$0xff]
    %v368 = vld [vmem:[#allocation11 + $0x360] sm:$0xff]
    %v369 = vld [vmem:[#allocation11 + $0x368] sm:$0xff]
    %v370 = vld [vmem:[#allocation11 + $0x370] sm:$0xff]
    %v371 = vld [vmem:[#allocation11 + $0x378] sm:$0xff]
    %v372 = vld [vmem:[#allocation11 + $0x380] sm:$0xff]
    %v373 = vld [vmem:[#allocation11 + $0x388] sm:$0xff]
    %v374 = vld [vmem:[#allocation11 + $0x390] sm:$0xff]
    %v375 = vld [vmem:[#allocation11 + $0x398] sm:$0xff]
    %v376 = vld [vmem:[#allocation11 + $0x3a0] sm:$0xff]
    %v377 = vld [vmem:[#allocation11 + $0x3a8] sm:$0xff]
    %v378 = vld [vmem:[#allocation11 + $0x3b0] sm:$0xff]
    %v379 = vld [vmem:[#allocation11 + $0x3b8] sm:$0xff]
    %v380 = vld [vmem:[#allocation11 + $0x3c0] sm:$0xff]
    %v381 = vld [vmem:[#allocation11 + $0x3c8] sm:$0xff]
    %v382 = vld [vmem:[#allocation11 + $0x3d0] sm:$0xff]
    %v383 = vld [vmem:[#allocation11 + $0x3d8] sm:$0xff]
    %v384 = vld [vmem:[#allocation11 + $0x3e0] sm:$0xff]
    %v385 = vld [vmem:[#allocation11 + $0x3e8] sm:$0xff]
    %v386 = vld [vmem:[#allocation11 + $0x3f0] sm:$0xff]
    %v387 = vld [vmem:[#allocation11 + $0x3f8] sm:$0xff]
    %v388 = vld [vmem:[#allocation11 + $0x400] sm:$0xff]
    %v389 = vld [vmem:[#allocation11 + $0x408] sm:$0xff]
    %v390 = vld [vmem:[#allocation11 + $0x410] sm:$0xff]
    %v391 = vld [vmem:[#allocation11 + $0x418] sm:$0xff]
    %v392 = vld [vmem:[#allocation11 + $0x420] sm:$0xff]
    %v393 = vld [vmem:[#allocation11 + $0x428] sm:$0xff]
    %v394 = vld [vmem:[#allocation11 + $0x430] sm:$0xff]
    %v395 = vld [vmem:[#allocation11 + $0x438] sm:$0xff]
    %v396 = vld [vmem:[#allocation11 + $0x440] sm:$0xff]
    %v397 = vld [vmem:[#allocation11 + $0x448] sm:$0xff]
    %v398 = vld [vmem:[#allocation11 + $0x450] sm:$0xff]
    %v399 = vld [vmem:[#allocation11 + $0x458] sm:$0xff]
    %v400 = vld [vmem:[#allocation11 + $0x460] sm:$0xff]
    %v401 = vld [vmem:[#allocation11 + $0x468] sm:$0xff]
    %v402 = vld [vmem:[#allocation11 + $0x470] sm:$0xff]
    %v403 = vld [vmem:[#allocation11 + $0x478] sm:$0xff]
    %v404 = vld [vmem:[#allocation11 + $0x480] sm:$0xff]
    %v405 = vld [vmem:[#allocation11 + $0x488] sm:$0xff]
    %v406 = vld [vmem:[#allocation11 + $0x490] sm:$0xff]
    %v407 = vld [vmem:[#allocation11 + $0x498] sm:$0xff]
    %v408 = vld [vmem:[#allocation11 + $0x4a0] sm:$0xff]
    %v409 = vld [vmem:[#allocation11 + $0x4a8] sm:$0xff]
    %v410 = vld [vmem:[#allocation11 + $0x4b0] sm:$0xff]
    %v411 = vld [vmem:[#allocation11 + $0x4b8] sm:$0xff]
    %v412 = vld [vmem:[#allocation11 + $0x4c0] sm:$0xff]
    %v413 = vld [vmem:[#allocation11 + $0x4c8] sm:$0xff]
    %v414 = vld [vmem:[#allocation11 + $0x4d0] sm:$0xff]
    %v415 = vld [vmem:[#allocation11 + $0x4d8] sm:$0xff]
    %v416 = vld [vmem:[#allocation11 + $0x4e0] sm:$0xff]
    %v417 = vld [vmem:[#allocation11 + $0x4e8] sm:$0xff]
    %v418 = vld [vmem:[#allocation11 + $0x4f0] sm:$0xff]
    %v419 = vld [vmem:[#allocation11 + $0x4f8] sm:$0xff]
    %v580 = vunpack.c.l.b16 %v260
    %v581 = vunpack.c.h.b16 %v260
    %v582 = vunpack.c.l.b16 %v261
    %v583 = vunpack.c.h.b16 %v261
    %v584 = vunpack.c.l.b16 %v262
    %v585 = vunpack.c.h.b16 %v262
    %v586 = vunpack.c.l.b16 %v263
    %v587 = vunpack.c.h.b16 %v263
    %v588 = vunpack.c.l.b16 %v264
    %v589 = vunpack.c.h.b16 %v264
    %v590 = vunpack.c.l.b16 %v265
    %v591 = vunpack.c.h.b16 %v265
    %v592 = vunpack.c.l.b16 %v266
    %v593 = vunpack.c.h.b16 %v266
    %v594 = vunpack.c.l.b16 %v267
    %v595 = vunpack.c.h.b16 %v267
    %v596 = vunpack.c.l.b16 %v268
    %v597 = vunpack.c.h.b16 %v268
    %v598 = vunpack.c.l.b16 %v269
    %v599 = vunpack.c.h.b16 %v269
    %v600 = vunpack.c.l.b16 %v270
    %v601 = vunpack.c.h.b16 %v270
    %v602 = vunpack.c.l.b16 %v271
    %v603 = vunpack.c.h.b16 %v271
    %v604 = vunpack.c.l.b16 %v272
    %v605 = vunpack.c.h.b16 %v272
    %v606 = vunpack.c.l.b16 %v273
    %v607 = vunpack.c.h.b16 %v273
    %v608 = vunpack.c.l.b16 %v274
    %v609 = vunpack.c.h.b16 %v274
    %v610 = vunpack.c.l.b16 %v275
    %v611 = vunpack.c.h.b16 %v275
    %v612 = vunpack.c.l.b16 %v276
    %v613 = vunpack.c.h.b16 %v276
    %v614 = vunpack.c.l.b16 %v277
    %v615 = vunpack.c.h.b16 %v277
    %v616 = vunpack.c.l.b16 %v278
    %v617 = vunpack.c.h.b16 %v278
    %v618 = vunpack.c.l.b16 %v279
    %v619 = vunpack.c.h.b16 %v279
    %v620 = vunpack.c.l.b16 %v280
    %v621 = vunpack.c.h.b16 %v280
    %v622 = vunpack.c.l.b16 %v281
    %v623 = vunpack.c.h.b16 %v281
    %v624 = vunpack.c.l.b16 %v282
    %v625 = vunpack.c.h.b16 %v282
    %v626 = vunpack.c.l.b16 %v283
    %v627 = vunpack.c.h.b16 %v283
    %v628 = vunpack.c.l.b16 %v284
    %v629 = vunpack.c.h.b16 %v284
    %v630 = vunpack.c.l.b16 %v285
    %v631 = vunpack.c.h.b16 %v285
    %v632 = vunpack.c.l.b16 %v286
    %v633 = vunpack.c.h.b16 %v286
    %v634 = vunpack.c.l.b16 %v287
    %v635 = vunpack.c.h.b16 %v287
    %v636 = vunpack.c.l.b16 %v288
    %v637 = vunpack.c.h.b16 %v288
    %v638 = vunpack.c.l.b16 %v289
    %v639 = vunpack.c.h.b16 %v289
    %v640 = vunpack.c.l.b16 %v290
    %v641 = vunpack.c.h.b16 %v290
    %v642 = vunpack.c.l.b16 %v291
    %v643 = vunpack.c.h.b16 %v291
    %v644 = vunpack.c.l.b16 %v292
    %v645 = vunpack.c.h.b16 %v292
    %v646 = vunpack.c.l.b16 %v293
    %v647 = vunpack.c.h.b16 %v293
    %v648 = vunpack.c.l.b16 %v294
    %v649 = vunpack.c.h.b16 %v294
    %v650 = vunpack.c.l.b16 %v295
    %v651 = vunpack.c.h.b16 %v295
    %v652 = vunpack.c.l.b16 %v296
    %v653 = vunpack.c.h.b16 %v296
    %v654 = vunpack.c.l.b16 %v297
    %v655 = vunpack.c.h.b16 %v297
    %v656 = vunpack.c.l.b16 %v298
    %v657 = vunpack.c.h.b16 %v298
    %v658 = vunpack.c.l.b16 %v299
    %v659 = vunpack.c.h.b16 %v299
    %v660 = vunpack.c.l.b16 %v300
    %v661 = vunpack.c.h.b16 %v300
    %v662 = vunpack.c.l.b16 %v301
    %v663 = vunpack.c.h.b16 %v301
    %v664 = vunpack.c.l.b16 %v302
    %v665 = vunpack.c.h.b16 %v302
    %v666 = vunpack.c.l.b16 %v303
    %v667 = vunpack.c.h.b16 %v303
    %v668 = vunpack.c.l.b16 %v304
    %v669 = vunpack.c.h.b16 %v304
    %v670 = vunpack.c.l.b16 %v305
    %v671 = vunpack.c.h.b16 %v305
    %v672 = vunpack.c.l.b16 %v306
    %v673 = vunpack.c.h.b16 %v306
    %v674 = vunpack.c.l.b16 %v307
    %v675 = vunpack.c.h.b16 %v307
    %v676 = vunpack.c.l.b16 %v308
    %v677 = vunpack.c.h.b16 %v308
    %v678 = vunpack.c.l.b16 %v309
    %v679 = vunpack.c.h.b16 %v309
    %v680 = vunpack.c.l.b16 %v310
    %v681 = vunpack.c.h.b16 %v310
    %v682 = vunpack.c.l.b16 %v311
    %v683 = vunpack.c.h.b16 %v311
    %v684 = vunpack.c.l.b16 %v312
    %v685 = vunpack.c.h.b16 %v312
    %v686 = vunpack.c.l.b16 %v313
    %v687 = vunpack.c.h.b16 %v313
    %v688 = vunpack.c.l.b16 %v314
    %v689 = vunpack.c.h.b16 %v314
    %v690 = vunpack.c.l.b16 %v315
    %v691 = vunpack.c.h.b16 %v315
    %v692 = vunpack.c.l.b16 %v316
    %v693 = vunpack.c.h.b16 %v316
    %v694 = vunpack.c.l.b16 %v317
    %v695 = vunpack.c.h.b16 %v317
    %v696 = vunpack.c.l.b16 %v318
    %v697 = vunpack.c.h.b16 %v318
    %v698 = vunpack.c.l.b16 %v319
    %v699 = vunpack.c.h.b16 %v319
    %v700 = vunpack.c.l.b16 %v320
    %v701 = vunpack.c.h.b16 %v320
    %v702 = vunpack.c.l.b16 %v321
    %v703 = vunpack.c.h.b16 %v321
    %v704 = vunpack.c.l.b16 %v322
    %v705 = vunpack.c.h.b16 %v322
    %v706 = vunpack.c.l.b16 %v323
    %v707 = vunpack.c.h.b16 %v323
    %v708 = vunpack.c.l.b16 %v324
    %v709 = vunpack.c.h.b16 %v324
    %v710 = vunpack.c.l.b16 %v325
    %v711 = vunpack.c.h.b16 %v325
    %v712 = vunpack.c.l.b16 %v326
    %v713 = vunpack.c.h.b16 %v326
    %v714 = vunpack.c.l.b16 %v327
    %v715 = vunpack.c.h.b16 %v327
    %v716 = vunpack.c.l.b16 %v328
    %v717 = vunpack.c.h.b16 %v328
    %v718 = vunpack.c.l.b16 %v329
    %v719 = vunpack.c.h.b16 %v329
    %v720 = vunpack.c.l.b16 %v330
    %v721 = vunpack.c.h.b16 %v330
    %v722 = vunpack.c.l.b16 %v331
    %v723 = vunpack.c.h.b16 %v331
    %v724 = vunpack.c.l.b16 %v332
    %v725 = vunpack.c.h.b16 %v332
    %v726 = vunpack.c.l.b16 %v333
    %v727 = vunpack.c.h.b16 %v333
    %v728 = vunpack.c.l.b16 %v334
    %v729 = vunpack.c.h.b16 %v334
    %v730 = vunpack.c.l.b16 %v335
    %v731 = vunpack.c.h.b16 %v335
    %v732 = vunpack.c.l.b16 %v336
    %v733 = vunpack.c.h.b16 %v336
    %v734 = vunpack.c.l.b16 %v337
    %v735 = vunpack.c.h.b16 %v337
    %v736 = vunpack.c.l.b16 %v338
    %v737 = vunpack.c.h.b16 %v338
    %v738 = vunpack.c.l.b16 %v339
    %v739 = vunpack.c.h.b16 %v339
    %v740 = vunpack.c.l.b16 %v340
    %v741 = vunpack.c.h.b16 %v340
    %v742 = vunpack.c.l.b16 %v341
    %v743 = vunpack.c.h.b16 %v341
    %v744 = vunpack.c.l.b16 %v342
    %v745 = vunpack.c.h.b16 %v342
    %v746 = vunpack.c.l.b16 %v343
    %v747 = vunpack.c.h.b16 %v343
    %v748 = vunpack.c.l.b16 %v344
    %v749 = vunpack.c.h.b16 %v344
    %v750 = vunpack.c.l.b16 %v345
    %v751 = vunpack.c.h.b16 %v345
    %v752 = vunpack.c.l.b16 %v346
    %v753 = vunpack.c.h.b16 %v346
    %v754 = vunpack.c.l.b16 %v347
    %v755 = vunpack.c.h.b16 %v347
    %v756 = vunpack.c.l.b16 %v348
    %v757 = vunpack.c.h.b16 %v348
    %v758 = vunpack.c.l.b16 %v349
    %v759 = vunpack.c.h.b16 %v349
    %v760 = vunpack.c.l.b16 %v350
    %v761 = vunpack.c.h.b16 %v350
    %v762 = vunpack.c.l.b16 %v351
    %v763 = vunpack.c.h.b16 %v351
    %v764 = vunpack.c.l.b16 %v352
    %v765 = vunpack.c.h.b16 %v352
    %v766 = vunpack.c.l.b16 %v353
    %v767 = vunpack.c.h.b16 %v353
    %v768 = vunpack.c.l.b16 %v354
    %v769 = vunpack.c.h.b16 %v354
    %v770 = vunpack.c.l.b16 %v355
    %v771 = vunpack.c.h.b16 %v355
    %v772 = vunpack.c.l.b16 %v356
    %v773 = vunpack.c.h.b16 %v356
    %v774 = vunpack.c.l.b16 %v357
    %v775 = vunpack.c.h.b16 %v357
    %v776 = vunpack.c.l.b16 %v358
    %v777 = vunpack.c.h.b16 %v358
    %v778 = vunpack.c.l.b16 %v359
    %v779 = vunpack.c.h.b16 %v359
    %v780 = vunpack.c.l.b16 %v360
    %v781 = vunpack.c.h.b16 %v360
    %v782 = vunpack.c.l.b16 %v361
    %v783 = vunpack.c.h.b16 %v361
    %v784 = vunpack.c.l.b16 %v362
    %v785 = vunpack.c.h.b16 %v362
    %v786 = vunpack.c.l.b16 %v363
    %v787 = vunpack.c.h.b16 %v363
    %v788 = vunpack.c.l.b16 %v364
    %v789 = vunpack.c.h.b16 %v364
    %v790 = vunpack.c.l.b16 %v365
    %v791 = vunpack.c.h.b16 %v365
    %v792 = vunpack.c.l.b16 %v366
    %v793 = vunpack.c.h.b16 %v366
    %v794 = vunpack.c.l.b16 %v367
    %v795 = vunpack.c.h.b16 %v367
    %v796 = vunpack.c.l.b16 %v368
    %v797 = vunpack.c.h.b16 %v368
    %v798 = vunpack.c.l.b16 %v369
    %v799 = vunpack.c.h.b16 %v369
    %v800 = vunpack.c.l.b16 %v370
    %v801 = vunpack.c.h.b16 %v370
    %v802 = vunpack.c.l.b16 %v371
    %v803 = vunpack.c.h.b16 %v371
    %v804 = vunpack.c.l.b16 %v372
    %v805 = vunpack.c.h.b16 %v372
    %v806 = vunpack.c.l.b16 %v373
    %v807 = vunpack.c.h.b16 %v373
    %v808 = vunpack.c.l.b16 %v374
    %v809 = vunpack.c.h.b16 %v374
    %v810 = vunpack.c.l.b16 %v375
    %v811 = vunpack.c.h.b16 %v375
    %v812 = vunpack.c.l.b16 %v376
    %v813 = vunpack.c.h.b16 %v376
    %v814 = vunpack.c.l.b16 %v377
    %v815 = vunpack.c.h.b16 %v377
    %v816 = vunpack.c.l.b16 %v378
    %v817 = vunpack.c.h.b16 %v378
    %v818 = vunpack.c.l.b16 %v379
    %v819 = vunpack.c.h.b16 %v379
    %v820 = vunpack.c.l.b16 %v380
    %v821 = vunpack.c.h.b16 %v380
    %v822 = vunpack.c.l.b16 %v381
    %v823 = vunpack.c.h.b16 %v381
    %v824 = vunpack.c.l.b16 %v382
    %v825 = vunpack.c.h.b16 %v382
    %v826 = vunpack.c.l.b16 %v383
    %v827 = vunpack.c.h.b16 %v383
    %v828 = vunpack.c.l.b16 %v384
    %v829 = vunpack.c.h.b16 %v384
    %v830 = vunpack.c.l.b16 %v385
    %v831 = vunpack.c.h.b16 %v385
    %v832 = vunpack.c.l.b16 %v386
    %v833 = vunpack.c.h.b16 %v386
    %v834 = vunpack.c.l.b16 %v387
    %v835 = vunpack.c.h.b16 %v387
    %v836 = vunpack.c.l.b16 %v388
    %v837 = vunpack.c.h.b16 %v388
    %v838 = vunpack.c.l.b16 %v389
    %v839 = vunpack.c.h.b16 %v389
    %v840 = vunpack.c.l.b16 %v390
    %v841 = vunpack.c.h.b16 %v390
    %v842 = vunpack.c.l.b16 %v391
    %v843 = vunpack.c.h.b16 %v391
    %v844 = vunpack.c.l.b16 %v392
    %v845 = vunpack.c.h.b16 %v392
    %v846 = vunpack.c.l.b16 %v393
    %v847 = vunpack.c.h.b16 %v393
    %v848 = vunpack.c.l.b16 %v394
    %v849 = vunpack.c.h.b16 %v394
    %v850 = vunpack.c.l.b16 %v395
    %v851 = vunpack.c.h.b16 %v395
    %v852 = vunpack.c.l.b16 %v396
    %v853 = vunpack.c.h.b16 %v396
    %v854 = vunpack.c.l.b16 %v397
    %v855 = vunpack.c.h.b16 %v397
    %v856 = vunpack.c.l.b16 %v398
    %v857 = vunpack.c.h.b16 %v398
    %v858 = vunpack.c.l.b16 %v399
    %v859 = vunpack.c.h.b16 %v399
    %v860 = vunpack.c.l.b16 %v400
    %v861 = vunpack.c.h.b16 %v400
    %v862 = vunpack.c.l.b16 %v401
    %v863 = vunpack.c.h.b16 %v401
    %v864 = vunpack.c.l.b16 %v402
    %v865 = vunpack.c.h.b16 %v402
    %v866 = vunpack.c.l.b16 %v403
    %v867 = vunpack.c.h.b16 %v403
    %v868 = vunpack.c.l.b16 %v404
    %v869 = vunpack.c.h.b16 %v404
    %v870 = vunpack.c.l.b16 %v405
    %v871 = vunpack.c.h.b16 %v405
    %v872 = vunpack.c.l.b16 %v406
    %v873 = vunpack.c.h.b16 %v406
    %v874 = vunpack.c.l.b16 %v407
    %v875 = vunpack.c.h.b16 %v407
    %v876 = vunpack.c.l.b16 %v408
    %v877 = vunpack.c.h.b16 %v408
    %v878 = vunpack.c.l.b16 %v409
    %v879 = vunpack.c.h.b16 %v409
    %v880 = vunpack.c.l.b16 %v410
    %v881 = vunpack.c.h.b16 %v410
    %v882 = vunpack.c.l.b16 %v411
    %v883 = vunpack.c.h.b16 %v411
    %v884 = vunpack.c.l.b16 %v412
    %v885 = vunpack.c.h.b16 %v412
    %v886 = vunpack.c.l.b16 %v413
    %v887 = vunpack.c.h.b16 %v413
    %v888 = vunpack.c.l.b16 %v414
    %v889 = vunpack.c.h.b16 %v414
    %v890 = vunpack.c.l.b16 %v415
    %v891 = vunpack.c.h.b16 %v415
    %v892 = vunpack.c.l.b16 %v416
    %v893 = vunpack.c.h.b16 %v416
    %v894 = vunpack.c.l.b16 %v417
    %v895 = vunpack.c.h.b16 %v417
    %v896 = vunpack.c.l.b16 %v418
    %v897 = vunpack.c.h.b16 %v418
    %v898 = vunpack.c.l.b16 %v419
    %v899 = vunpack.c.h.b16 %v419
    %v900 = vpack.c.b16 %v590, %v580
    %v901 = vpack.c.b16 %v591, %v581
    %v902 = vpack.c.b16 %v592, %v582
    %v903 = vpack.c.b16 %v593, %v583
    %v904 = vpack.c.b16 %v594, %v584
    %v905 = vpack.c.b16 %v595, %v585
    %v906 = vpack.c.b16 %v596, %v586
    %v907 = vpack.c.b16 %v597, %v587
    %v908 = vpack.c.b16 %v598, %v588
    %v909 = vpack.c.b16 %v599, %v589
    %v910 = vpack.c.b16 %v610, %v600
    %v911 = vpack.c.b16 %v611, %v601
    %v912 = vpack.c.b16 %v612, %v602
    %v913 = vpack.c.b16 %v613, %v603
    %v914 = vpack.c.b16 %v614, %v604
    %v915 = vpack.c.b16 %v615, %v605
    %v916 = vpack.c.b16 %v616, %v606
    %v917 = vpack.c.b16 %v617, %v607
    %v918 = vpack.c.b16 %v618, %v608
    %v919 = vpack.c.b16 %v619, %v609
    %v920 = vpack.c.b16 %v630, %v620
    %v921 = vpack.c.b16 %v631, %v621
    %v922 = vpack.c.b16 %v632, %v622
    %v923 = vpack.c.b16 %v633, %v623
    %v924 = vpack.c.b16 %v634, %v624
    %v925 = vpack.c.b16 %v635, %v625
    %v926 = vpack.c.b16 %v636, %v626
    %v927 = vpack.c.b16 %v637, %v627
    %v928 = vpack.c.b16 %v638, %v628
    %v929 = vpack.c.b16 %v639, %v629
    %v930 = vpack.c.b16 %v650, %v640
    %v931 = vpack.c.b16 %v651, %v641
    %v932 = vpack.c.b16 %v652, %v642
    %v933 = vpack.c.b16 %v653, %v643
    %v934 = vpack.c.b16 %v654, %v644
    %v935 = vpack.c.b16 %v655, %v645
    %v936 = vpack.c.b16 %v656, %v646
    %v937 = vpack.c.b16 %v657, %v647
    %v938 = vpack.c.b16 %v658, %v648
    %v939 = vpack.c.b16 %v659, %v649
    %v940 = vpack.c.b16 %v670, %v660
    %v941 = vpack.c.b16 %v671, %v661
    %v942 = vpack.c.b16 %v672, %v662
    %v943 = vpack.c.b16 %v673, %v663
    %v944 = vpack.c.b16 %v674, %v664
    %v945 = vpack.c.b16 %v675, %v665
    %v946 = vpack.c.b16 %v676, %v666
    %v947 = vpack.c.b16 %v677, %v667
    %v948 = vpack.c.b16 %v678, %v668
    %v949 = vpack.c.b16 %v679, %v669
    %v950 = vpack.c.b16 %v690, %v680
    %v951 = vpack.c.b16 %v691, %v681
    %v952 = vpack.c.b16 %v692, %v682
    %v953 = vpack.c.b16 %v693, %v683
    %v954 = vpack.c.b16 %v694, %v684
    %v955 = vpack.c.b16 %v695, %v685
    %v956 = vpack.c.b16 %v696, %v686
    %v957 = vpack.c.b16 %v697, %v687
    %v958 = vpack.c.b16 %v698, %v688
    %v959 = vpack.c.b16 %v699, %v689
    %v960 = vpack.c.b16 %v710, %v700
    %v961 = vpack.c.b16 %v711, %v701
    %v962 = vpack.c.b16 %v712, %v702
    %v963 = vpack.c.b16 %v713, %v703
    %v964 = vpack.c.b16 %v714, %v704
    %v965 = vpack.c.b16 %v715, %v705
    %v966 = vpack.c.b16 %v716, %v706
    %v967 = vpack.c.b16 %v717, %v707
    %v968 = vpack.c.b16 %v718, %v708
    %v969 = vpack.c.b16 %v719, %v709
    %v970 = vpack.c.b16 %v730, %v720
    %v971 = vpack.c.b16 %v731, %v721
    %v972 = vpack.c.b16 %v732, %v722
    %v973 = vpack.c.b16 %v733, %v723
    %v974 = vpack.c.b16 %v734, %v724
    %v975 = vpack.c.b16 %v735, %v725
    %v976 = vpack.c.b16 %v736, %v726
    %v977 = vpack.c.b16 %v737, %v727
    %v978 = vpack.c.b16 %v738, %v728
    %v979 = vpack.c.b16 %v739, %v729
    %v980 = vpack.c.b16 %v750, %v740
    %v981 = vpack.c.b16 %v751, %v741
    %v982 = vpack.c.b16 %v752, %v742
    %v983 = vpack.c.b16 %v753, %v743
    %v984 = vpack.c.b16 %v754, %v744
    %v985 = vpack.c.b16 %v755, %v745
    %v986 = vpack.c.b16 %v756, %v746
    %v987 = vpack.c.b16 %v757, %v747
    %v988 = vpack.c.b16 %v758, %v748
    %v989 = vpack.c.b16 %v759, %v749
    %v990 = vpack.c.b16 %v770, %v760
    %v991 = vpack.c.b16 %v771, %v761
    %v992 = vpack.c.b16 %v772, %v762
    %v993 = vpack.c.b16 %v773, %v763
    %v994 = vpack.c.b16 %v774, %v764
    %v995 = vpack.c.b16 %v775, %v765
    %v996 = vpack.c.b16 %v776, %v766
    %v997 = vpack.c.b16 %v777, %v767
    %v998 = vpack.c.b16 %v778, %v768
    %v999 = vpack.c.b16 %v779, %v769
    %v1000 = vpack.c.b16 %v790, %v780
    %v1001 = vpack.c.b16 %v791, %v781
    %v1002 = vpack.c.b16 %v792, %v782
    %v1003 = vpack.c.b16 %v793, %v783
    %v1004 = vpack.c.b16 %v794, %v784
    %v1005 = vpack.c.b16 %v795, %v785
    %v1006 = vpack.c.b16 %v796, %v786
    %v1007 = vpack.c.b16 %v797, %v787
    %v1008 = vpack.c.b16 %v798, %v788
    %v1009 = vpack.c.b16 %v799, %v789
    %v1010 = vpack.c.b16 %v810, %v800
    %v1011 = vpack.c.b16 %v811, %v801
    %v1012 = vpack.c.b16 %v812, %v802
    %v1013 = vpack.c.b16 %v813, %v803
    %v1014 = vpack.c.b16 %v814, %v804
    %v1015 = vpack.c.b16 %v815, %v805
    %v1016 = vpack.c.b16 %v816, %v806
    %v1017 = vpack.c.b16 %v817, %v807
    %v1018 = vpack.c.b16 %v818, %v808
    %v1019 = vpack.c.b16 %v819, %v809
    %v1020 = vpack.c.b16 %v830, %v820
    %v1021 = vpack.c.b16 %v831, %v821
    %v1022 = vpack.c.b16 %v832, %v822
    %v1023 = vpack.c.b16 %v833, %v823
    %v1024 = vpack.c.b16 %v834, %v824
    %v1025 = vpack.c.b16 %v835, %v825
    %v1026 = vpack.c.b16 %v836, %v826
    %v1027 = vpack.c.b16 %v837, %v827
    %v1028 = vpack.c.b16 %v838, %v828
    %v1029 = vpack.c.b16 %v839, %v829
    %v1030 = vpack.c.b16 %v850, %v840
    %v1031 = vpack.c.b16 %v851, %v841
    %v1032 = vpack.c.b16 %v852, %v842
    %v1033 = vpack.c.b16 %v853, %v843
    %v1034 = vpack.c.b16 %v854, %v844
    %v1035 = vpack.c.b16 %v855, %v845
    %v1036 = vpack.c.b16 %v856, %v846
    %v1037 = vpack.c.b16 %v857, %v847
    %v1038 = vpack.c.b16 %v858, %v848
    %v1039 = vpack.c.b16 %v859, %v849
    %v1040 = vpack.c.b16 %v870, %v860
    %v1041 = vpack.c.b16 %v871, %v861
    %v1042 = vpack.c.b16 %v872, %v862
    %v1043 = vpack.c.b16 %v873, %v863
    %v1044 = vpack.c.b16 %v874, %v864
    %v1045 = vpack.c.b16 %v875, %v865
    %v1046 = vpack.c.b16 %v876, %v866
    %v1047 = vpack.c.b16 %v877, %v867
    %v1048 = vpack.c.b16 %v878, %v868
    %v1049 = vpack.c.b16 %v879, %v869
    %v1050 = vpack.c.b16 %v890, %v880
    %v1051 = vpack.c.b16 %v891, %v881
    %v1052 = vpack.c.b16 %v892, %v882
    %v1053 = vpack.c.b16 %v893, %v883
    %v1054 = vpack.c.b16 %v894, %v884
    %v1055 = vpack.c.b16 %v895, %v885
    %v1056 = vpack.c.b16 %v896, %v886
    %v1057 = vpack.c.b16 %v897, %v887
    %v1058 = vpack.c.b16 %v898, %v888
    %v1059 = vpack.c.b16 %v899, %v889
    %1220 = vmatpush.bf16.msra.mxu0 %v970
    %1221 = vmatpush.bf16.msra.mxu0 %v960
    %1222 = vmatpush.bf16.msra.mxu0 %v950
    %1223 = vmatpush.bf16.msra.mxu0 %v940
    %1224 = vmatpush.bf16.msra.mxu0 %v930
    %1225 = vmatpush.bf16.msra.mxu0 %v920
    %1226 = vmatpush.bf16.msra.mxu0 %v910
    %1227 = vmatpush.bf16.msra.mxu0 %v900
    %1228 = vmatmul.bf16.gmra.mxu0 %v258
    %v1229 = vpop.f32.mrf.mxu0
    %v1230 = vadd.f32 0.0, %v1229
    %v1231 = vpop.f32.mrf.mxu0
    %v1232 = vadd.f32 0.0, %v1231
    %1233 = vdwg.mxu0
    %1234 = vmatpush.bf16.msra.mxu0 %v1050
    %1235 = vmatpush.bf16.msra.mxu0 %v1040
    %1236 = vmatpush.bf16.msra.mxu0 %v1030
    %1237 = vmatpush.bf16.msra.mxu0 %v1020
    %1238 = vmatpush.bf16.msra.mxu0 %v1010
    %1239 = vmatpush.bf16.msra.mxu0 %v1000
    %1240 = vmatpush.bf16.msra.mxu0 %v990
    %1241 = vmatpush.bf16.msra.mxu0 %v980
    %1242 = vmatmul.bf16.gmra.mxu0 %v259
    %v1243 = vpop.f32.mrf.mxu0
    %v1244 = vadd.f32 %v1230, %v1243
    %v1245 = vpop.f32.mrf.mxu0
    %v1246 = vadd.f32 %v1232, %v1245
    %1247 = vdwg.mxu0
    %1248 = vmatpush.bf16.msra.mxu0 %v971
    %1249 = vmatpush.bf16.msra.mxu0 %v961
    %1250 = vmatpush.bf16.msra.mxu0 %v951
    %1251 = vmatpush.bf16.msra.mxu0 %v941
    %1252 = vmatpush.bf16.msra.mxu0 %v931
    %1253 = vmatpush.bf16.msra.mxu0 %v921
    %1254 = vmatpush.bf16.msra.mxu0 %v911
    %1255 = vmatpush.bf16.msra.mxu0 %v901
    %1256 = vmatmul.bf16.gmra.mxu0 %v258
    %v1257 = vpop.f32.mrf.mxu0
    %v1258 = vadd.f32 0.0, %v1257
    %v1259 = vpop.f32.mrf.mxu0
    %v1260 = vadd.f32 0.0, %v1259
    %1261 = vdwg.mxu0
    %1262 = vmatpush.bf16.msra.mxu0 %v1051
    %1263 = vmatpush.bf16.msra.mxu0 %v1041
    %1264 = vmatpush.bf16.msra.mxu0 %v1031
    %1265 = vmatpush.bf16.msra.mxu0 %v1021
    %1266 = vmatpush.bf16.msra.mxu0 %v1011
    %1267 = vmatpush.bf16.msra.mxu0 %v1001
    %1268 = vmatpush.bf16.msra.mxu0 %v991
    %1269 = vmatpush.bf16.msra.mxu0 %v981
    %1270 = vmatmul.bf16.gmra.mxu0 %v259
    %v1271 = vpop.f32.mrf.mxu0
    %v1272 = vadd.f32 %v1258, %v1271
    %v1273 = vpop.f32.mrf.mxu0
    %v1274 = vadd.f32 %v1260, %v1273
    %1275 = vdwg.mxu0
    %1276 = vmatpush.bf16.msra.mxu0 %v972
    %1277 = vmatpush.bf16.msra.mxu0 %v962
    %1278 = vmatpush.bf16.msra.mxu0 %v952
    %1279 = vmatpush.bf16.msra.mxu0 %v942
    %1280 = vmatpush.bf16.msra.mxu0 %v932
    %1281 = vmatpush.bf16.msra.mxu0 %v922
    %1282 = vmatpush.bf16.msra.mxu0 %v912
    %1283 = vmatpush.bf16.msra.mxu0 %v902
    %1284 = vmatmul.bf16.gmra.mxu0 %v258
    %v1285 = vpop.f32.mrf.mxu0
    %v1286 = vadd.f32 0.0, %v1285
    %v1287 = vpop.f32.mrf.mxu0
    %v1288 = vadd.f32 0.0, %v1287
    %1289 = vdwg.mxu0
    %1290 = vmatpush.bf16.msra.mxu0 %v1052
    %1291 = vmatpush.bf16.msra.mxu0 %v1042
    %1292 = vmatpush.bf16.msra.mxu0 %v1032
    %1293 = vmatpush.bf16.msra.mxu0 %v1022
    %1294 = vmatpush.bf16.msra.mxu0 %v1012
    %1295 = vmatpush.bf16.msra.mxu0 %v1002
    %1296 = vmatpush.bf16.msra.mxu0 %v992
    %1297 = vmatpush.bf16.msra.mxu0 %v982
    %1298 = vmatmul.bf16.gmra.mxu0 %v259
    %v1299 = vpop.f32.mrf.mxu0
    %v1300 = vadd.f32 %v1286, %v1299
    %v1301 = vpop.f32.mrf.mxu0
    %v1302 = vadd.f32 %v1288, %v1301
    %1303 = vdwg.mxu0
    %1304 = vmatpush.bf16.msra.mxu0 %v973
    %1305 = vmatpush.bf16.msra.mxu0 %v963
    %1306 = vmatpush.bf16.msra.mxu0 %v953
    %1307 = vmatpush.bf16.msra.mxu0 %v943
    %1308 = vmatpush.bf16.msra.mxu0 %v933
    %1309 = vmatpush.bf16.msra.mxu0 %v923
    %1310 = vmatpush.bf16.msra.mxu0 %v913
    %1311 = vmatpush.bf16.msra.mxu0 %v903
    %1312 = vmatmul.bf16.gmra.mxu0 %v258
    %v1313 = vpop.f32.mrf.mxu0
    %v1314 = vadd.f32 0.0, %v1313
    %v1315 = vpop.f32.mrf.mxu0
    %v1316 = vadd.f32 0.0, %v1315
    %1317 = vdwg.mxu0
    %1318 = vmatpush.bf16.msra.mxu0 %v1053
    %1319 = vmatpush.bf16.msra.mxu0 %v1043
    %1320 = vmatpush.bf16.msra.mxu0 %v1033
    %1321 = vmatpush.bf16.msra.mxu0 %v1023
    %1322 = vmatpush.bf16.msra.mxu0 %v1013
    %1323 = vmatpush.bf16.msra.mxu0 %v1003
    %1324 = vmatpush.bf16.msra.mxu0 %v993
    %1325 = vmatpush.bf16.msra.mxu0 %v983
    %1326 = vmatmul.bf16.gmra.mxu0 %v259
    %v1327 = vpop.f32.mrf.mxu0
    %v1328 = vadd.f32 %v1314, %v1327
    %v1329 = vpop.f32.mrf.mxu0
    %v1330 = vadd.f32 %v1316, %v1329
    %1331 = vdwg.mxu0
    %1332 = vmatpush.bf16.msra.mxu0 %v974
    %1333 = vmatpush.bf16.msra.mxu0 %v964
    %1334 = vmatpush.bf16.msra.mxu0 %v954
    %1335 = vmatpush.bf16.msra.mxu0 %v944
    %1336 = vmatpush.bf16.msra.mxu0 %v934
    %1337 = vmatpush.bf16.msra.mxu0 %v924
    %1338 = vmatpush.bf16.msra.mxu0 %v914
    %1339 = vmatpush.bf16.msra.mxu0 %v904
    %1340 = vmatmul.bf16.gmra.mxu0 %v258
    %v1341 = vpop.f32.mrf.mxu0
    %v1342 = vadd.f32 0.0, %v1341
    %v1343 = vpop.f32.mrf.mxu0
    %v1344 = vadd.f32 0.0, %v1343
    %1345 = vdwg.mxu0
    %1346 = vmatpush.bf16.msra.mxu0 %v1054
    %1347 = vmatpush.bf16.msra.mxu0 %v1044
    %1348 = vmatpush.bf16.msra.mxu0 %v1034
    %1349 = vmatpush.bf16.msra.mxu0 %v1024
    %1350 = vmatpush.bf16.msra.mxu0 %v1014
    %1351 = vmatpush.bf16.msra.mxu0 %v1004
    %1352 = vmatpush.bf16.msra.mxu0 %v994
    %1353 = vmatpush.bf16.msra.mxu0 %v984
    %1354 = vmatmul.bf16.gmra.mxu0 %v259
    %v1355 = vpop.f32.mrf.mxu0
    %v1356 = vadd.f32 %v1342, %v1355
    %v1357 = vpop.f32.mrf.mxu0
    %v1358 = vadd.f32 %v1344, %v1357
    %1359 = vdwg.mxu0
    %1360 = vmatpush.bf16.msra.mxu0 %v975
    %1361 = vmatpush.bf16.msra.mxu0 %v965
    %1362 = vmatpush.bf16.msra.mxu0 %v955
    %1363 = vmatpush.bf16.msra.mxu0 %v945
    %1364 = vmatpush.bf16.msra.mxu0 %v935
    %1365 = vmatpush.bf16.msra.mxu0 %v925
    %1366 = vmatpush.bf16.msra.mxu0 %v915
    %1367 = vmatpush.bf16.msra.mxu0 %v905
    %1368 = vmatmul.bf16.gmra.mxu0 %v258
    %v1369 = vpop.f32.mrf.mxu0
    %v1370 = vadd.f32 0.0, %v1369
    %v1371 = vpop.f32.mrf.mxu0
    %v1372 = vadd.f32 0.0, %v1371
    %1373 = vdwg.mxu0
    %1374 = vmatpush.bf16.msra.mxu0 %v1055
    %1375 = vmatpush.bf16.msra.mxu0 %v1045
    %1376 = vmatpush.bf16.msra.mxu0 %v1035
    %1377 = vmatpush.bf16.msra.mxu0 %v1025
    %1378 = vmatpush.bf16.msra.mxu0 %v1015
    %1379 = vmatpush.bf16.msra.mxu0 %v1005
    %1380 = vmatpush.bf16.msra.mxu0 %v995
    %1381 = vmatpush.bf16.msra.mxu0 %v985
    %1382 = vmatmul.bf16.gmra.mxu0 %v259
    %v1383 = vpop.f32.mrf.mxu0
    %v1384 = vadd.f32 %v1370, %v1383
    %v1385 = vpop.f32.mrf.mxu0
    %v1386 = vadd.f32 %v1372, %v1385
    %1387 = vdwg.mxu0
    %1388 = vmatpush.bf16.msra.mxu0 %v976
    %1389 = vmatpush.bf16.msra.mxu0 %v966
    %1390 = vmatpush.bf16.msra.mxu0 %v956
    %1391 = vmatpush.bf16.msra.mxu0 %v946
    %1392 = vmatpush.bf16.msra.mxu0 %v936
    %1393 = vmatpush.bf16.msra.mxu0 %v926
    %1394 = vmatpush.bf16.msra.mxu0 %v916
    %1395 = vmatpush.bf16.msra.mxu0 %v906
    %1396 = vmatmul.bf16.gmra.mxu0 %v258
    %v1397 = vpop.f32.mrf.mxu0
    %v1398 = vadd.f32 0.0, %v1397
    %v1399 = vpop.f32.mrf.mxu0
    %v1400 = vadd.f32 0.0, %v1399
    %1401 = vdwg.mxu0
    %1402 = vmatpush.bf16.msra.mxu0 %v1056
    %1403 = vmatpush.bf16.msra.mxu0 %v1046
    %1404 = vmatpush.bf16.msra.mxu0 %v1036
    %1405 = vmatpush.bf16.msra.mxu0 %v1026
    %1406 = vmatpush.bf16.msra.mxu0 %v1016
    %1407 = vmatpush.bf16.msra.mxu0 %v1006
    %1408 = vmatpush.bf16.msra.mxu0 %v996
    %1409 = vmatpush.bf16.msra.mxu0 %v986
    %1410 = vmatmul.bf16.gmra.mxu0 %v259
    %v1411 = vpop.f32.mrf.mxu0
    %v1412 = vadd.f32 %v1398, %v1411
    %v1413 = vpop.f32.mrf.mxu0
    %v1414 = vadd.f32 %v1400, %v1413
    %1415 = vdwg.mxu0
    %1416 = vmatpush.bf16.msra.mxu0 %v977
    %1417 = vmatpush.bf16.msra.mxu0 %v967
    %1418 = vmatpush.bf16.msra.mxu0 %v957
    %1419 = vmatpush.bf16.msra.mxu0 %v947
    %1420 = vmatpush.bf16.msra.mxu0 %v937
    %1421 = vmatpush.bf16.msra.mxu0 %v927
    %1422 = vmatpush.bf16.msra.mxu0 %v917
    %1423 = vmatpush.bf16.msra.mxu0 %v907
    %1424 = vmatmul.bf16.gmra.mxu0 %v258
    %v1425 = vpop.f32.mrf.mxu0
    %v1426 = vadd.f32 0.0, %v1425
    %v1427 = vpop.f32.mrf.mxu0
    %v1428 = vadd.f32 0.0, %v1427
    %1429 = vdwg.mxu0
    %1430 = vmatpush.bf16.msra.mxu0 %v1057
    %1431 = vmatpush.bf16.msra.mxu0 %v1047
    %1432 = vmatpush.bf16.msra.mxu0 %v1037
    %1433 = vmatpush.bf16.msra.mxu0 %v1027
    %1434 = vmatpush.bf16.msra.mxu0 %v1017
    %1435 = vmatpush.bf16.msra.mxu0 %v1007
    %1436 = vmatpush.bf16.msra.mxu0 %v997
    %1437 = vmatpush.bf16.msra.mxu0 %v987
    %1438 = vmatmul.bf16.gmra.mxu0 %v259
    %v1439 = vpop.f32.mrf.mxu0
    %v1440 = vadd.f32 %v1426, %v1439
    %v1441 = vpop.f32.mrf.mxu0
    %v1442 = vadd.f32 %v1428, %v1441
    %1443 = vdwg.mxu0
    %1444 = vmatpush.bf16.msra.mxu0 %v978
    %1445 = vmatpush.bf16.msra.mxu0 %v968
    %1446 = vmatpush.bf16.msra.mxu0 %v958
    %1447 = vmatpush.bf16.msra.mxu0 %v948
    %1448 = vmatpush.bf16.msra.mxu0 %v938
    %1449 = vmatpush.bf16.msra.mxu0 %v928
    %1450 = vmatpush.bf16.msra.mxu0 %v918
    %1451 = vmatpush.bf16.msra.mxu0 %v908
    %1452 = vmatmul.bf16.gmra.mxu0 %v258
    %v1453 = vpop.f32.mrf.mxu0
    %v1454 = vadd.f32 0.0, %v1453
    %v1455 = vpop.f32.mrf.mxu0
    %v1456 = vadd.f32 0.0, %v1455
    %1457 = vdwg.mxu0
    %1458 = vmatpush.bf16.msra.mxu0 %v1058
    %1459 = vmatpush.bf16.msra.mxu0 %v1048
    %1460 = vmatpush.bf16.msra.mxu0 %v1038
    %1461 = vmatpush.bf16.msra.mxu0 %v1028
    %1462 = vmatpush.bf16.msra.mxu0 %v1018
    %1463 = vmatpush.bf16.msra.mxu0 %v1008
    %1464 = vmatpush.bf16.msra.mxu0 %v998
    %1465 = vmatpush.bf16.msra.mxu0 %v988
    %1466 = vmatmul.bf16.gmra.mxu0 %v259
    %v1467 = vpop.f32.mrf.mxu0
    %v1468 = vadd.f32 %v1454, %v1467
    %v1469 = vpop.f32.mrf.mxu0
    %v1470 = vadd.f32 %v1456, %v1469
    %1471 = vdwg.mxu0
    %1472 = vmatpush.bf16.msra.mxu0 %v979
    %1473 = vmatpush.bf16.msra.mxu0 %v969
    %1474 = vmatpush.bf16.msra.mxu0 %v959
    %1475 = vmatpush.bf16.msra.mxu0 %v949
    %1476 = vmatpush.bf16.msra.mxu0 %v939
    %1477 = vmatpush.bf16.msra.mxu0 %v929
    %1478 = vmatpush.bf16.msra.mxu0 %v919
    %1479 = vmatpush.bf16.msra.mxu0 %v909
    %1480 = vmatmul.bf16.gmra.mxu0 %v258
    %v1481 = vpop.f32.mrf.mxu0
    %v1482 = vadd.f32 0.0, %v1481
    %v1483 = vpop.f32.mrf.mxu0
    %v1484 = vadd.f32 0.0, %v1483
    %1485 = vdwg.mxu0
    %1486 = vmatpush.bf16.msra.mxu0 %v1059
    %1487 = vmatpush.bf16.msra.mxu0 %v1049
    %1488 = vmatpush.bf16.msra.mxu0 %v1039
    %1489 = vmatpush.bf16.msra.mxu0 %v1029
    %1490 = vmatpush.bf16.msra.mxu0 %v1019
    %1491 = vmatpush.bf16.msra.mxu0 %v1009
    %1492 = vmatpush.bf16.msra.mxu0 %v999
    %1493 = vmatpush.bf16.msra.mxu0 %v989
    %1494 = vmatmul.bf16.gmra.mxu0 %v259
    %v1495 = vpop.f32.mrf.mxu0
    %v1496 = vadd.f32 %v1482, %v1495
    %v1497 = vpop.f32.mrf.mxu0
    %v1498 = vadd.f32 %v1484, %v1497
    %1499 = vdwg.mxu0
    %v1500 = vld [vmem:[#allocation5] sm:$0xff]
    %v1501 = vld [vmem:[#allocation5 + $0x8] sm:$0xff]
    %v1502 = vld [vmem:[#allocation5 + $0x10] sm:$0xff]
    %v1503 = vld [vmem:[#allocation5 + $0x18] sm:$0xff]
    %v1504 = vmul.f32 %v1244, %v1500
    %v1505 = vmul.f32 %v1272, %v1501
    %v1506 = vmul.f32 %v1246, %v1502
    %v1507 = vmul.f32 %v1274, %v1503
    %v1508 = vld [vmem:[#allocation7] sm:$0xff]
    %v1509 = vld [vmem:[#allocation7 + $0x8] sm:$0xff]
    %v1510 = vld [vmem:[#allocation7 + $0x10] sm:$0xff]
    %v1511 = vld [vmem:[#allocation7 + $0x18] sm:$0xff]
    %v1512 = vmul.f32 %v1412, %v1508
    %v1513 = vmul.f32 %v1440, %v1509
    %v1514 = vmul.f32 %v1414, %v1510
    %v1515 = vmul.f32 %v1442, %v1511
    %v1516 = vadd.f32 %v1504, %v1512
    %v1517 = vadd.f32 %v1505, %v1513
    %v1518 = vadd.f32 %v1506, %v1514
    %v1519 = vadd.f32 %v1507, %v1515
    %v1520 = vld [vmem:[#allocation8] sm:$0xff]
    %v1521 = vld [vmem:[#allocation8 + $0x8] sm:$0xff]
    %v1522 = vld [vmem:[#allocation8 + $0x10] sm:$0xff]
    %v1523 = vld [vmem:[#allocation8 + $0x18] sm:$0xff]
    %v1524 = vmul.f32 %v1300, %v1520
    %v1525 = vmul.f32 %v1328, %v1521
    %v1526 = vmul.f32 %v1302, %v1522
    %v1527 = vmul.f32 %v1330, %v1523
    %v1528 = vld [vmem:[#allocation10] sm:$0xff]
    %v1529 = vld [vmem:[#allocation10 + $0x8] sm:$0xff]
    %v1530 = vld [vmem:[#allocation10 + $0x10] sm:$0xff]
    %v1531 = vld [vmem:[#allocation10 + $0x18] sm:$0xff]
    %v1532 = vmul.f32 %v1468, %v1528
    %v1533 = vmul.f32 %v1496, %v1529
    %v1534 = vmul.f32 %v1470, %v1530
    %v1535 = vmul.f32 %v1498, %v1531
    %v1536 = vadd.f32 %v1524, %v1532
    %v1537 = vadd.f32 %v1525, %v1533
    %v1538 = vadd.f32 %v1526, %v1534
    %v1539 = vadd.f32 %v1527, %v1535
    %v1540 = vld [vmem:[#allocation17] sm:$0xff]
    %v1541 = vld [vmem:[#allocation17 + $0x8] sm:$0xff]
    %v1542 = vpack.c.bf16 %v1518, %v1516
    %v1543 = vpack.c.bf16 %v1538, %v1536
    %v1544 = vpack.c.bf16 %v1358, %v1356
    %1545 = vmatpush.bf16.xpose.msra.mxu0 0
    %1546 = vmatpush.bf16.xpose.msra.mxu0 0
    %1547 = vmatpush.bf16.xpose.msra.mxu0 0
    %1548 = vmatpush.bf16.xpose.msra.mxu0 0
    %1549 = vmatpush.bf16.xpose.msra.mxu0 0
    %1550 = vmatpush.bf16.xpose.msra.mxu0 0
    %1551 = vmatpush.bf16.xpose.msra.mxu0 0
    %1552 = vmatpush.bf16.xpose.msra.mxu0 %v1543
    %1553 = vmatmul.bf16.gmra.mxu0 %v1542
    %v1554 = vpop.f32.mrf.mxu0
    %v1555 = vadd.f32 %v1540, %v1554
    %v1556 = vpop.f32.mrf.mxu0
    %v1557 = vadd.f32 %v1541, %v1556
    %1558 = vdwg.mxu0
    %vm1559 = vcmask 130048
    %v1560 = vsel %vm1559, %v1555, -inf
    %1561 = vmax.xlane.f32.xlu0 %v1560
    %v1562 = vpop.xlane.xlu0 %1561
    %v1563 = vsel %vm1559, %v1557, -inf
    %1564 = vmax.xlane.f32.xlu0 %v1563
    %v1565 = vpop.xlane.xlu0 %1564
    %v1566 = vsub.f32 %v1555, %v1562
    %v1567 = vsub.f32 %v1557, %v1565
    %v1568 = vmul.f32 %v1566, 1.442695
    %v1569 = vpow.pop %v1568
    %v1570 = vmul.f32 %v1567, 1.442695
    %v1571 = vpow.pop %v1570
    %v1572 = vsel %vm1559, %v1569, 0.0
    %1573 = vadd.xlane.f32.xlu0 %v1572
    %v1574 = vpop.xlane.xlu0 %1573
    %v1575 = vsel %vm1559, %v1571, 0.0
    %1576 = vadd.xlane.f32.xlu0 %v1575
    %v1577 = vpop.xlane.xlu0 %1576
    %v1578 = vrcp.pop %v1574
    %v1579 = vrcp.pop %v1577
    %v1580 = vmul.f32 %v1569, %v1578
    %v1581 = vmul.f32 %v1571, %v1579
    %v1582 = vpack.c.bf16 %v1581, %v1580
    %v1584 = vsel %vm1559, %v1582, 0
    %1586 = vmatpush.bf16.msra.mxu0 0
    %1587 = vmatpush.bf16.msra.mxu0 0
    %1588 = vmatpush.bf16.msra.mxu0 0
    %1589 = vmatpush.bf16.msra.mxu0 0
    %1590 = vmatpush.bf16.msra.mxu0 0
    %1591 = vmatpush.bf16.msra.mxu0 0
    %1592 = vmatpush.bf16.msra.mxu0 0
    %1593 = vmatpush.bf16.msra.mxu0 %v1544
    %1594 = vmatmul.bf16.gmra.mxu0 %v1584
    %v1595 = vpop.f32.mrf.mxu0
    %v1596 = vadd.f32 0.0, %v1595
    %v1597 = vpop.f32.mrf.mxu0
    %v1598 = vadd.f32 0.0, %v1597
    %1599 = vdwg.mxu0
    %v1600 = vpack.c.bf16 %v1598, %v1596
    %v1601 = vld [vmem:[#allocation13] sm:$0xff]
    %v1602 = vld [vmem:[#allocation13 + $0x8] sm:$0xff]
    %v1603 = vld [vmem:[#allocation13 + $0x10] sm:$0xff]
    %v1604 = vld [vmem:[#allocation13 + $0x18] sm:$0xff]
    %v1605 = vld [vmem:[#allocation13 + $0x20] sm:$0xff]
    %v1606 = vld [vmem:[#allocation13 + $0x28] sm:$0xff]
    %v1607 = vld [vmem:[#allocation13 + $0x30] sm:$0xff]
    %v1608 = vld [vmem:[#allocation13 + $0x38] sm:$0xff]
    %v1609 = vld [vmem:[#allocation13 + $0x40] sm:$0xff]
    %v1610 = vld [vmem:[#allocation13 + $0x48] sm:$0xff]
    %v1611 = vld [vmem:[#allocation13 + $0x50] sm:$0xff]
    %v1612 = vld [vmem:[#allocation13 + $0x58] sm:$0xff]
    %v1613 = vld [vmem:[#allocation13 + $0x60] sm:$0xff]
    %v1614 = vld [vmem:[#allocation13 + $0x68] sm:$0xff]
    %v1615 = vld [vmem:[#allocation13 + $0x70] sm:$0xff]
    %v1616 = vld [vmem:[#allocation13 + $0x78] sm:$0xff]
    %v1617 = vpack.c.bf16 %v1519, %v1517
    %v1618 = vpack.c.bf16 %v1539, %v1537
    %v1619 = vpack.c.bf16 %v1386, %v1384
    %1620 = vmatpush.bf16.xpose.msra.mxu0 0
    %1621 = vmatpush.bf16.xpose.msra.mxu0 0
    %1622 = vmatpush.bf16.xpose.msra.mxu0 0
    %1623 = vmatpush.bf16.xpose.msra.mxu0 0
    %1624 = vmatpush.bf16.xpose.msra.mxu0 0
    %1625 = vmatpush.bf16.xpose.msra.mxu0 0
    %1626 = vmatpush.bf16.xpose.msra.mxu0 0
    %1627 = vmatpush.bf16.xpose.msra.mxu0 %v1618
    %1628 = vmatmul.bf16.gmra.mxu0 %v1617
    %v1629 = vpop.f32.mrf.mxu0
    %v1630 = vadd.f32 %v1540, %v1629
    %v1631 = vpop.f32.mrf.mxu0
    %v1632 = vadd.f32 %v1541, %v1631
    %1633 = vdwg.mxu0
    %v1634 = vsel %vm1559, %v1630, -inf
    %1635 = vmax.xlane.f32.xlu0 %v1634
    %v1636 = vpop.xlane.xlu0 %1635
    %v1637 = vsel %vm1559, %v1632, -inf
    %1638 = vmax.xlane.f32.xlu0 %v1637
    %v1639 = vpop.xlane.xlu0 %1638
    %v1640 = vsub.f32 %v1630, %v1636
    %v1641 = vsub.f32 %v1632, %v1639
    %v1642 = vmul.f32 %v1640, 1.442695
    %v1643 = vpow.pop %v1642
    %v1644 = vmul.f32 %v1641, 1.442695
    %v1645 = vpow.pop %v1644
    %v1646 = vsel %vm1559, %v1643, 0.0
    %1647 = vadd.xlane.f32.xlu0 %v1646
    %v1648 = vpop.xlane.xlu0 %1647
    %v1649 = vsel %vm1559, %v1645, 0.0
    %1650 = vadd.xlane.f32.xlu0 %v1649
    %v1651 = vpop.xlane.xlu0 %1650
    %v1652 = vrcp.pop %v1648
    %v1653 = vrcp.pop %v1651
    %v1654 = vmul.f32 %v1643, %v1652
    %v1655 = vmul.f32 %v1645, %v1653
    %v1656 = vpack.c.bf16 %v1655, %v1654
    %v1658 = vsel %vm1559, %v1656, 0
    %1660 = vmatpush.bf16.msra.mxu0 0
    %1661 = vmatpush.bf16.msra.mxu0 0
    %1662 = vmatpush.bf16.msra.mxu0 0
    %1663 = vmatpush.bf16.msra.mxu0 0
    %1664 = vmatpush.bf16.msra.mxu0 0
    %1665 = vmatpush.bf16.msra.mxu0 0
    %1666 = vmatpush.bf16.msra.mxu0 0
    %1667 = vmatpush.bf16.msra.mxu0 %v1619
    %1668 = vmatmul.bf16.gmra.mxu0 %v1658
    %v1669 = vpop.f32.mrf.mxu0
    %v1670 = vadd.f32 0.0, %v1669
    %v1671 = vpop.f32.mrf.mxu0
    %v1672 = vadd.f32 0.0, %v1671
    %1673 = vdwg.mxu0
    %v1674 = vpack.c.bf16 %v1672, %v1670
    %v1675 = vld [vmem:[#allocation13 + $0x80] sm:$0xff]
    %v1676 = vld [vmem:[#allocation13 + $0x88] sm:$0xff]
    %v1677 = vld [vmem:[#allocation13 + $0x90] sm:$0xff]
    %v1678 = vld [vmem:[#allocation13 + $0x98] sm:$0xff]
    %v1679 = vld [vmem:[#allocation13 + $0xa0] sm:$0xff]
    %v1680 = vld [vmem:[#allocation13 + $0xa8] sm:$0xff]
    %v1681 = vld [vmem:[#allocation13 + $0xb0] sm:$0xff]
    %v1682 = vld [vmem:[#allocation13 + $0xb8] sm:$0xff]
    %v1683 = vld [vmem:[#allocation13 + $0xc0] sm:$0xff]
    %v1684 = vld [vmem:[#allocation13 + $0xc8] sm:$0xff]
    %v1685 = vld [vmem:[#allocation13 + $0xd0] sm:$0xff]
    %v1686 = vld [vmem:[#allocation13 + $0xd8] sm:$0xff]
    %v1687 = vld [vmem:[#allocation13 + $0xe0] sm:$0xff]
    %v1688 = vld [vmem:[#allocation13 + $0xe8] sm:$0xff]
    %v1689 = vld [vmem:[#allocation13 + $0xf0] sm:$0xff]
    %v1690 = vld [vmem:[#allocation13 + $0xf8] sm:$0xff]
    %v1707 = vunpack.c.l.b16 %v1675
    %v1708 = vunpack.c.h.b16 %v1675
    %v1709 = vunpack.c.l.b16 %v1676
    %v1710 = vunpack.c.h.b16 %v1676
    %v1711 = vunpack.c.l.b16 %v1677
    %v1712 = vunpack.c.h.b16 %v1677
    %v1713 = vunpack.c.l.b16 %v1678
    %v1714 = vunpack.c.h.b16 %v1678
    %v1715 = vunpack.c.l.b16 %v1679
    %v1716 = vunpack.c.h.b16 %v1679
    %v1717 = vunpack.c.l.b16 %v1680
    %v1718 = vunpack.c.h.b16 %v1680
    %v1719 = vunpack.c.l.b16 %v1681
    %v1720 = vunpack.c.h.b16 %v1681
    %v1721 = vunpack.c.l.b16 %v1682
    %v1722 = vunpack.c.h.b16 %v1682
    %v1723 = vunpack.c.l.b16 %v1683
    %v1724 = vunpack.c.h.b16 %v1683
    %v1725 = vunpack.c.l.b16 %v1684
    %v1726 = vunpack.c.h.b16 %v1684
    %v1727 = vunpack.c.l.b16 %v1685
    %v1728 = vunpack.c.h.b16 %v1685
    %v1729 = vunpack.c.l.b16 %v1686
    %v1730 = vunpack.c.h.b16 %v1686
    %v1731 = vunpack.c.l.b16 %v1687
    %v1732 = vunpack.c.h.b16 %v1687
    %v1733 = vunpack.c.l.b16 %v1688
    %v1734 = vunpack.c.h.b16 %v1688
    %v1735 = vunpack.c.l.b16 %v1689
    %v1736 = vunpack.c.h.b16 %v1689
    %v1737 = vunpack.c.l.b16 %v1690
    %v1738 = vunpack.c.h.b16 %v1690
    %v1739 = vpack.c.b16 %v1709, %v1707
    %v1740 = vpack.c.b16 %v1710, %v1708
    %v1741 = vpack.c.b16 %v1713, %v1711
    %v1742 = vpack.c.b16 %v1714, %v1712
    %v1743 = vpack.c.b16 %v1717, %v1715
    %v1744 = vpack.c.b16 %v1718, %v1716
    %v1745 = vpack.c.b16 %v1721, %v1719
    %v1746 = vpack.c.b16 %v1722, %v1720
    %v1747 = vpack.c.b16 %v1725, %v1723
    %v1748 = vpack.c.b16 %v1726, %v1724
    %v1749 = vpack.c.b16 %v1729, %v1727
    %v1750 = vpack.c.b16 %v1730, %v1728
    %v1751 = vpack.c.b16 %v1733, %v1731
    %v1752 = vpack.c.b16 %v1734, %v1732
    %v1753 = vpack.c.b16 %v1737, %v1735
    %v1754 = vpack.c.b16 %v1738, %v1736
    %1771 = vmatpush.bf16.msra.mxu0 %v1753
    %1772 = vmatpush.bf16.msra.mxu0 %v1751
    %1773 = vmatpush.bf16.msra.mxu0 %v1749
    %1774 = vmatpush.bf16.msra.mxu0 %v1747
    %1775 = vmatpush.bf16.msra.mxu0 %v1745
    %1776 = vmatpush.bf16.msra.mxu0 %v1743
    %1777 = vmatpush.bf16.msra.mxu0 %v1741
    %1778 = vmatpush.bf16.msra.mxu0 %v1739
    %1779 = vmatmul.bf16.gmra.mxu0 %v1674
    %v1780 = vpop.f32.mrf.mxu0
    %v1781 = vadd.f32 0.0, %v1780
    %v1782 = vpop.f32.mrf.mxu0
    %v1783 = vadd.f32 0.0, %v1782
    %1784 = vdwg.mxu0
    %1785 = vmatpush.bf16.msra.mxu0 %v1754
    %1786 = vmatpush.bf16.msra.mxu0 %v1752
    %1787 = vmatpush.bf16.msra.mxu0 %v1750
    %1788 = vmatpush.bf16.msra.mxu0 %v1748
    %1789 = vmatpush.bf16.msra.mxu0 %v1746
    %1790 = vmatpush.bf16.msra.mxu0 %v1744
    %1791 = vmatpush.bf16.msra.mxu0 %v1742
    %1792 = vmatpush.bf16.msra.mxu0 %v1740
    %1793 = vmatmul.bf16.gmra.mxu0 %v1674
    %v1794 = vpop.f32.mrf.mxu0
    %v1795 = vadd.f32 0.0, %v1794
    %v1796 = vpop.f32.mrf.mxu0
    %v1797 = vadd.f32 0.0, %v1796
    %1798 = vdwg.mxu0
    %v1815 = vunpack.c.l.b16 %v1601
    %v1816 = vunpack.c.h.b16 %v1601
    %v1817 = vunpack.c.l.b16 %v1602
    %v1818 = vunpack.c.h.b16 %v1602
    %v1819 = vunpack.c.l.b16 %v1603
    %v1820 = vunpack.c.h.b16 %v1603
    %v1821 = vunpack.c.l.b16 %v1604
    %v1822 = vunpack.c.h.b16 %v1604
    %v1823 = vunpack.c.l.b16 %v1605
    %v1824 = vunpack.c.h.b16 %v1605
    %v1825 = vunpack.c.l.b16 %v1606
    %v1826 = vunpack.c.h.b16 %v1606
    %v1827 = vunpack.c.l.b16 %v1607
    %v1828 = vunpack.c.h.b16 %v1607
    %v1829 = vunpack.c.l.b16 %v1608
    %v1830 = vunpack.c.h.b16 %v1608
    %v1831 = vunpack.c.l.b16 %v1609
    %v1832 = vunpack.c.h.b16 %v1609
    %v1833 = vunpack.c.l.b16 %v1610
    %v1834 = vunpack.c.h.b16 %v1610
    %v1835 = vunpack.c.l.b16 %v1611
    %v1836 = vunpack.c.h.b16 %v1611
    %v1837 = vunpack.c.l.b16 %v1612
    %v1838 = vunpack.c.h.b16 %v1612
    %v1839 = vunpack.c.l.b16 %v1613
    %v1840 = vunpack.c.h.b16 %v1613
    %v1841 = vunpack.c.l.b16 %v1614
    %v1842 = vunpack.c.h.b16 %v1614
    %v1843 = vunpack.c.l.b16 %v1615
    %v1844 = vunpack.c.h.b16 %v1615
    %v1845 = vunpack.c.l.b16 %v1616
    %v1846 = vunpack.c.h.b16 %v1616
    %v1847 = vpack.c.b16 %v1817, %v1815
    %v1848 = vpack.c.b16 %v1818, %v1816
    %v1849 = vpack.c.b16 %v1821, %v1819
    %v1850 = vpack.c.b16 %v1822, %v1820
    %v1851 = vpack.c.b16 %v1825, %v1823
    %v1852 = vpack.c.b16 %v1826, %v1824
    %v1853 = vpack.c.b16 %v1829, %v1827
    %v1854 = vpack.c.b16 %v1830, %v1828
    %v1855 = vpack.c.b16 %v1833, %v1831
    %v1856 = vpack.c.b16 %v1834, %v1832
    %v1857 = vpack.c.b16 %v1837, %v1835
    %v1858 = vpack.c.b16 %v1838, %v1836
    %v1859 = vpack.c.b16 %v1841, %v1839
    %v1860 = vpack.c.b16 %v1842, %v1840
    %v1861 = vpack.c.b16 %v1845, %v1843
    %v1862 = vpack.c.b16 %v1846, %v1844
    %1879 = vmatpush.bf16.msra.mxu0 %v1861
    %1880 = vmatpush.bf16.msra.mxu0 %v1859
    %1881 = vmatpush.bf16.msra.mxu0 %v1857
    %1882 = vmatpush.bf16.msra.mxu0 %v1855
    %1883 = vmatpush.bf16.msra.mxu0 %v1853
    %1884 = vmatpush.bf16.msra.mxu0 %v1851
    %1885 = vmatpush.bf16.msra.mxu0 %v1849
    %1886 = vmatpush.bf16.msra.mxu0 %v1847
    %1887 = vmatmul.bf16.gmra.mxu0 %v1600
    %v1888 = vpop.f32.mrf.mxu0
    %v1889 = vadd.f32 %v1781, %v1888
    %v1890 = vpop.f32.mrf.mxu0
    %v1891 = vadd.f32 %v1783, %v1890
    %1892 = vdwg.mxu0
    %1893 = vmatpush.bf16.msra.mxu0 %v1862
    %1894 = vmatpush.bf16.msra.mxu0 %v1860
    %1895 = vmatpush.bf16.msra.mxu0 %v1858
    %1896 = vmatpush.bf16.msra.mxu0 %v1856
    %1897 = vmatpush.bf16.msra.mxu0 %v1854
    %1898 = vmatpush.bf16.msra.mxu0 %v1852
    %1899 = vmatpush.bf16.msra.mxu0 %v1850
    %1900 = vmatpush.bf16.msra.mxu0 %v1848
    %1901 = vmatmul.bf16.gmra.mxu0 %v1600
    %v1902 = vpop.f32.mrf.mxu0
    %v1903 = vadd.f32 %v1795, %v1902
    %v1904 = vpop.f32.mrf.mxu0
    %v1905 = vadd.f32 %v1797, %v1904
    %1906 = vdwg.mxu0
    %v1907 = vadd.f32 %v199, %v1889
    %v1908 = vadd.f32 %v200, %v1903
    %v1909 = vadd.f32 %v201, %v1891
    %v1910 = vadd.f32 %v202, %v1905
    %v1911 = vld [vmem:[%s10] sm:$0x3]
    %v1912 = vmul.f32 %v1907, %v1907
    %v1913 = vmul.f32 %v1908, %v1908
    %v1914 = vmul.f32 %v1909, %v1909
    %v1915 = vmul.f32 %v1910, %v1910
    %v1916 = vadd.f32 %v1912, %v1913
    %1917 = vadd.xlane.f32.xlu0 %v1916
    %v1918 = vpop.xlane.xlu0 %1917
    %v1919 = vadd.f32 %v1914, %v1915
    %1920 = vadd.xlane.f32.xlu0 %v1919
    %v1921 = vpop.xlane.xlu0 %1920
    %v1922 = vmul.f32 %v1918, %v220
    %v1923 = vmul.f32 %v1921, %v220
    %v1924 = vadd.f32 %v1922, 1e-05
    %v1925 = vadd.f32 %v1923, 1e-05
    %v1926 = vrsqrt.pop %v1924
    %v1927 = vmul.f32 %v1926, %v1924
    %v1928 = vmul.f32 %v1927, %v1926
    %v1929 = vmul.f32 0.5, %v1928
    %v1930 = vsub.f32 1.5, %v1929
    %v1931 = vmul.f32 %v1926, %v1930
    %vm1932 = vweird.f32 %v1924
    %vm1933 = vweird.f32 %v1926
    %vm1934 = vmor %vm1932, %vm1933
    %v1935 = vsel %vm1934, %v1926, %v1931
    %v1936 = vrsqrt.pop %v1925
    %v1937 = vmul.f32 %v1936, %v1925
    %v1938 = vmul.f32 %v1937, %v1936
    %v1939 = vmul.f32 0.5, %v1938
    %v1940 = vsub.f32 1.5, %v1939
    %v1941 = vmul.f32 %v1936, %v1940
    %vm1942 = vweird.f32 %v1925
    %vm1943 = vweird.f32 %v1936
    %vm1944 = vmor %vm1942, %vm1943
    %v1945 = vsel %vm1944, %v1936, %v1941
    %v1946 = vmul.f32 %v1907, %v1935
    %v1947 = vmul.f32 %v1908, %v1935
    %v1948 = vmul.f32 %v1909, %v1945
    %v1949 = vmul.f32 %v1910, %v1945
    %v1951 = vperm.slane %v1911, 0
    %v1952 = vperm.slane %v1911, 1
    %v1955 = vmul.f32 %v1946, %v1951
    %v1956 = vmul.f32 %v1947, %v1952
    %v1957 = vmul.f32 %v1948, %v1951
    %v1958 = vmul.f32 %v1949, %v1952
    %v1959 = vpack.c.bf16 %v1957, %v1955
    %v1960 = vpack.c.bf16 %v1958, %v1956
    %v1961 = vld [vmem:[#allocation14] sm:$0xff]
    %v1962 = vld [vmem:[#allocation14 + $0x8] sm:$0xff]
    %v1963 = vld [vmem:[#allocation14 + $0x10] sm:$0xff]
    %v1964 = vld [vmem:[#allocation14 + $0x18] sm:$0xff]
    %v1965 = vld [vmem:[#allocation14 + $0x20] sm:$0xff]
    %v1966 = vld [vmem:[#allocation14 + $0x28] sm:$0xff]
    %v1967 = vld [vmem:[#allocation14 + $0x30] sm:$0xff]
    %v1968 = vld [vmem:[#allocation14 + $0x38] sm:$0xff]
    %v1969 = vld [vmem:[#allocation14 + $0x40] sm:$0xff]
    %v1970 = vld [vmem:[#allocation14 + $0x48] sm:$0xff]
    %v1971 = vld [vmem:[#allocation14 + $0x50] sm:$0xff]
    %v1972 = vld [vmem:[#allocation14 + $0x58] sm:$0xff]
    %v1973 = vld [vmem:[#allocation14 + $0x60] sm:$0xff]
    %v1974 = vld [vmem:[#allocation14 + $0x68] sm:$0xff]
    %v1975 = vld [vmem:[#allocation14 + $0x70] sm:$0xff]
    %v1976 = vld [vmem:[#allocation14 + $0x78] sm:$0xff]
    %v1977 = vld [vmem:[#allocation14 + $0x80] sm:$0xff]
    %v1978 = vld [vmem:[#allocation14 + $0x88] sm:$0xff]
    %v1979 = vld [vmem:[#allocation14 + $0x90] sm:$0xff]
    %v1980 = vld [vmem:[#allocation14 + $0x98] sm:$0xff]
    %v1981 = vld [vmem:[#allocation14 + $0xa0] sm:$0xff]
    %v1982 = vld [vmem:[#allocation14 + $0xa8] sm:$0xff]
    %v1983 = vld [vmem:[#allocation14 + $0xb0] sm:$0xff]
    %v1984 = vld [vmem:[#allocation14 + $0xb8] sm:$0xff]
    %v1985 = vld [vmem:[#allocation14 + $0xc0] sm:$0xff]
    %v1986 = vld [vmem:[#allocation14 + $0xc8] sm:$0xff]
    %v1987 = vld [vmem:[#allocation14 + $0xd0] sm:$0xff]
    %v1988 = vld [vmem:[#allocation14 + $0xd8] sm:$0xff]
    %v1989 = vld [vmem:[#allocation14 + $0xe0] sm:$0xff]
    %v1990 = vld [vmem:[#allocation14 + $0xe8] sm:$0xff]
    %v1991 = vld [vmem:[#allocation14 + $0xf0] sm:$0xff]
    %v1992 = vld [vmem:[#allocation14 + $0xf8] sm:$0xff]
    %v1993 = vld [vmem:[#allocation14 + $0x100] sm:$0xff]
    %v1994 = vld [vmem:[#allocation14 + $0x108] sm:$0xff]
    %v1995 = vld [vmem:[#allocation14 + $0x110] sm:$0xff]
    %v1996 = vld [vmem:[#allocation14 + $0x118] sm:$0xff]
    %v1997 = vld [vmem:[#allocation14 + $0x120] sm:$0xff]
    %v1998 = vld [vmem:[#allocation14 + $0x128] sm:$0xff]
    %v1999 = vld [vmem:[#allocation14 + $0x130] sm:$0xff]
    %v2000 = vld [vmem:[#allocation14 + $0x138] sm:$0xff]
    %v2001 = vld [vmem:[#allocation14 + $0x140] sm:$0xff]
    %v2002 = vld [vmem:[#allocation14 + $0x148] sm:$0xff]
    %v2003 = vld [vmem:[#allocation14 + $0x150] sm:$0xff]
    %v2004 = vld [vmem:[#allocation14 + $0x158] sm:$0xff]
    %v2005 = vld [vmem:[#allocation14 + $0x160] sm:$0xff]
    %v2006 = vld [vmem:[#allocation14 + $0x168] sm:$0xff]
    %v2007 = vld [vmem:[#allocation14 + $0x170] sm:$0xff]
    %v2008 = vld [vmem:[#allocation14 + $0x178] sm:$0xff]
    %v2009 = vld [vmem:[#allocation14 + $0x180] sm:$0xff]
    %v2010 = vld [vmem:[#allocation14 + $0x188] sm:$0xff]
    %v2011 = vld [vmem:[#allocation14 + $0x190] sm:$0xff]
    %v2012 = vld [vmem:[#allocation14 + $0x198] sm:$0xff]
    %v2013 = vld [vmem:[#allocation14 + $0x1a0] sm:$0xff]
    %v2014 = vld [vmem:[#allocation14 + $0x1a8] sm:$0xff]
    %v2015 = vld [vmem:[#allocation14 + $0x1b0] sm:$0xff]
    %v2016 = vld [vmem:[#allocation14 + $0x1b8] sm:$0xff]
    %v2017 = vld [vmem:[#allocation14 + $0x1c0] sm:$0xff]
    %v2018 = vld [vmem:[#allocation14 + $0x1c8] sm:$0xff]
    %v2019 = vld [vmem:[#allocation14 + $0x1d0] sm:$0xff]
    %v2020 = vld [vmem:[#allocation14 + $0x1d8] sm:$0xff]
    %v2021 = vld [vmem:[#allocation14 + $0x1e0] sm:$0xff]
    %v2022 = vld [vmem:[#allocation14 + $0x1e8] sm:$0xff]
    %v2023 = vld [vmem:[#allocation14 + $0x1f0] sm:$0xff]
    %v2024 = vld [vmem:[#allocation14 + $0x1f8] sm:$0xff]
    %v2025 = vld [vmem:[#allocation14 + $0x200] sm:$0xff]
    %v2026 = vld [vmem:[#allocation14 + $0x208] sm:$0xff]
    %v2027 = vld [vmem:[#allocation14 + $0x210] sm:$0xff]
    %v2028 = vld [vmem:[#allocation14 + $0x218] sm:$0xff]
    %v2029 = vld [vmem:[#allocation14 + $0x220] sm:$0xff]
    %v2030 = vld [vmem:[#allocation14 + $0x228] sm:$0xff]
    %v2031 = vld [vmem:[#allocation14 + $0x230] sm:$0xff]
    %v2032 = vld [vmem:[#allocation14 + $0x238] sm:$0xff]
    %v2033 = vld [vmem:[#allocation14 + $0x240] sm:$0xff]
    %v2034 = vld [vmem:[#allocation14 + $0x248] sm:$0xff]
    %v2035 = vld [vmem:[#allocation14 + $0x250] sm:$0xff]
    %v2036 = vld [vmem:[#allocation14 + $0x258] sm:$0xff]
    %v2037 = vld [vmem:[#allocation14 + $0x260] sm:$0xff]
    %v2038 = vld [vmem:[#allocation14 + $0x268] sm:$0xff]
    %v2039 = vld [vmem:[#allocation14 + $0x270] sm:$0xff]
    %v2040 = vld [vmem:[#allocation14 + $0x278] sm:$0xff]
    %v2041 = vld [vmem:[#allocation14 + $0x280] sm:$0xff]
    %v2042 = vld [vmem:[#allocation14 + $0x288] sm:$0xff]
    %v2043 = vld [vmem:[#allocation14 + $0x290] sm:$0xff]
    %v2044 = vld [vmem:[#allocation14 + $0x298] sm:$0xff]
    %v2045 = vld [vmem:[#allocation14 + $0x2a0] sm:$0xff]
    %v2046 = vld [vmem:[#allocation14 + $0x2a8] sm:$0xff]
    %v2047 = vld [vmem:[#allocation14 + $0x2b0] sm:$0xff]
    %v2048 = vld [vmem:[#allocation14 + $0x2b8] sm:$0xff]
    %v2049 = vld [vmem:[#allocation14 + $0x2c0] sm:$0xff]
    %v2050 = vld [vmem:[#allocation14 + $0x2c8] sm:$0xff]
    %v2051 = vld [vmem:[#allocation14 + $0x2d0] sm:$0xff]
    %v2052 = vld [vmem:[#allocation14 + $0x2d8] sm:$0xff]
    %v2053 = vld [vmem:[#allocation14 + $0x2e0] sm:$0xff]
    %v2054 = vld [vmem:[#allocation14 + $0x2e8] sm:$0xff]
    %v2055 = vld [vmem:[#allocation14 + $0x2f0] sm:$0xff]
    %v2056 = vld [vmem:[#allocation14 + $0x2f8] sm:$0xff]
    %v2057 = vld [vmem:[#allocation14 + $0x300] sm:$0xff]
    %v2058 = vld [vmem:[#allocation14 + $0x308] sm:$0xff]
    %v2059 = vld [vmem:[#allocation14 + $0x310] sm:$0xff]
    %v2060 = vld [vmem:[#allocation14 + $0x318] sm:$0xff]
    %v2061 = vld [vmem:[#allocation14 + $0x320] sm:$0xff]
    %v2062 = vld [vmem:[#allocation14 + $0x328] sm:$0xff]
    %v2063 = vld [vmem:[#allocation14 + $0x330] sm:$0xff]
    %v2064 = vld [vmem:[#allocation14 + $0x338] sm:$0xff]
    %v2065 = vld [vmem:[#allocation14 + $0x340] sm:$0xff]
    %v2066 = vld [vmem:[#allocation14 + $0x348] sm:$0xff]
    %v2067 = vld [vmem:[#allocation14 + $0x350] sm:$0xff]
    %v2068 = vld [vmem:[#allocation14 + $0x358] sm:$0xff]
    %v2069 = vld [vmem:[#allocation14 + $0x360] sm:$0xff]
    %v2070 = vld [vmem:[#allocation14 + $0x368] sm:$0xff]
    %v2071 = vld [vmem:[#allocation14 + $0x370] sm:$0xff]
    %v2072 = vld [vmem:[#allocation14 + $0x378] sm:$0xff]
    %v2073 = vld [vmem:[#allocation14 + $0x380] sm:$0xff]
    %v2074 = vld [vmem:[#allocation14 + $0x388] sm:$0xff]
    %v2075 = vld [vmem:[#allocation14 + $0x390] sm:$0xff]
    %v2076 = vld [vmem:[#allocation14 + $0x398] sm:$0xff]
    %v2077 = vld [vmem:[#allocation14 + $0x3a0] sm:$0xff]
    %v2078 = vld [vmem:[#allocation14 + $0x3a8] sm:$0xff]
    %v2079 = vld [vmem:[#allocation14 + $0x3b0] sm:$0xff]
    %v2080 = vld [vmem:[#allocation14 + $0x3b8] sm:$0xff]
    %v2081 = vld [vmem:[#allocation14 + $0x3c0] sm:$0xff]
    %v2082 = vld [vmem:[#allocation14 + $0x3c8] sm:$0xff]
    %v2083 = vld [vmem:[#allocation14 + $0x3d0] sm:$0xff]
    %v2084 = vld [vmem:[#allocation14 + $0x3d8] sm:$0xff]
    %v2085 = vld [vmem:[#allocation14 + $0x3e0] sm:$0xff]
    %v2086 = vld [vmem:[#allocation14 + $0x3e8] sm:$0xff]
    %v2087 = vld [vmem:[#allocation14 + $0x3f0] sm:$0xff]
    %v2088 = vld [vmem:[#allocation14 + $0x3f8] sm:$0xff]
    %v2089 = vld [vmem:[#allocation14 + $0x400] sm:$0xff]
    %v2090 = vld [vmem:[#allocation14 + $0x408] sm:$0xff]
    %v2091 = vld [vmem:[#allocation14 + $0x410] sm:$0xff]
    %v2092 = vld [vmem:[#allocation14 + $0x418] sm:$0xff]
    %v2093 = vld [vmem:[#allocation14 + $0x420] sm:$0xff]
    %v2094 = vld [vmem:[#allocation14 + $0x428] sm:$0xff]
    %v2095 = vld [vmem:[#allocation14 + $0x430] sm:$0xff]
    %v2096 = vld [vmem:[#allocation14 + $0x438] sm:$0xff]
    %v2097 = vld [vmem:[#allocation14 + $0x440] sm:$0xff]
    %v2098 = vld [vmem:[#allocation14 + $0x448] sm:$0xff]
    %v2099 = vld [vmem:[#allocation14 + $0x450] sm:$0xff]
    %v2100 = vld [vmem:[#allocation14 + $0x458] sm:$0xff]
    %v2101 = vld [vmem:[#allocation14 + $0x460] sm:$0xff]
    %v2102 = vld [vmem:[#allocation14 + $0x468] sm:$0xff]
    %v2103 = vld [vmem:[#allocation14 + $0x470] sm:$0xff]
    %v2104 = vld [vmem:[#allocation14 + $0x478] sm:$0xff]
    %v2105 = vld [vmem:[#allocation14 + $0x480] sm:$0xff]
    %v2106 = vld [vmem:[#allocation14 + $0x488] sm:$0xff]
    %v2107 = vld [vmem:[#allocation14 + $0x490] sm:$0xff]
    %v2108 = vld [vmem:[#allocation14 + $0x498] sm:$0xff]
    %v2109 = vld [vmem:[#allocation14 + $0x4a0] sm:$0xff]
    %v2110 = vld [vmem:[#allocation14 + $0x4a8] sm:$0xff]
    %v2111 = vld [vmem:[#allocation14 + $0x4b0] sm:$0xff]
    %v2112 = vld [vmem:[#allocation14 + $0x4b8] sm:$0xff]
    %v2113 = vld [vmem:[#allocation14 + $0x4c0] sm:$0xff]
    %v2114 = vld [vmem:[#allocation14 + $0x4c8] sm:$0xff]
    %v2115 = vld [vmem:[#allocation14 + $0x4d0] sm:$0xff]
    %v2116 = vld [vmem:[#allocation14 + $0x4d8] sm:$0xff]
    %v2117 = vld [vmem:[#allocation14 + $0x4e0] sm:$0xff]
    %v2118 = vld [vmem:[#allocation14 + $0x4e8] sm:$0xff]
    %v2119 = vld [vmem:[#allocation14 + $0x4f0] sm:$0xff]
    %v2120 = vld [vmem:[#allocation14 + $0x4f8] sm:$0xff]
    %v2121 = vld [vmem:[#allocation14 + $0x500] sm:$0xff]
    %v2122 = vld [vmem:[#allocation14 + $0x508] sm:$0xff]
    %v2123 = vld [vmem:[#allocation14 + $0x510] sm:$0xff]
    %v2124 = vld [vmem:[#allocation14 + $0x518] sm:$0xff]
    %v2125 = vld [vmem:[#allocation14 + $0x520] sm:$0xff]
    %v2126 = vld [vmem:[#allocation14 + $0x528] sm:$0xff]
    %v2127 = vld [vmem:[#allocation14 + $0x530] sm:$0xff]
    %v2128 = vld [vmem:[#allocation14 + $0x538] sm:$0xff]
    %v2129 = vld [vmem:[#allocation14 + $0x540] sm:$0xff]
    %v2130 = vld [vmem:[#allocation14 + $0x548] sm:$0xff]
    %v2131 = vld [vmem:[#allocation14 + $0x550] sm:$0xff]
    %v2132 = vld [vmem:[#allocation14 + $0x558] sm:$0xff]
    %v2133 = vld [vmem:[#allocation14 + $0x560] sm:$0xff]
    %v2134 = vld [vmem:[#allocation14 + $0x568] sm:$0xff]
    %v2135 = vld [vmem:[#allocation14 + $0x570] sm:$0xff]
    %v2136 = vld [vmem:[#allocation14 + $0x578] sm:$0xff]
    %v2137 = vld [vmem:[#allocation14 + $0x580] sm:$0xff]
    %v2138 = vld [vmem:[#allocation14 + $0x588] sm:$0xff]
    %v2139 = vld [vmem:[#allocation14 + $0x590] sm:$0xff]
    %v2140 = vld [vmem:[#allocation14 + $0x598] sm:$0xff]
    %v2141 = vld [vmem:[#allocation14 + $0x5a0] sm:$0xff]
    %v2142 = vld [vmem:[#allocation14 + $0x5a8] sm:$0xff]
    %v2143 = vld [vmem:[#allocation14 + $0x5b0] sm:$0xff]
    %v2144 = vld [vmem:[#allocation14 + $0x5b8] sm:$0xff]
    %v2145 = vld [vmem:[#allocation14 + $0x5c0] sm:$0xff]
    %v2146 = vld [vmem:[#allocation14 + $0x5c8] sm:$0xff]
    %v2147 = vld [vmem:[#allocation14 + $0x5d0] sm:$0xff]
    %v2148 = vld [vmem:[#allocation14 + $0x5d8] sm:$0xff]
    %v2149 = vld [vmem:[#allocation14 + $0x5e0] sm:$0xff]
    %v2150 = vld [vmem:[#allocation14 + $0x5e8] sm:$0xff]
    %v2151 = vld [vmem:[#allocation14 + $0x5f0] sm:$0xff]
    %v2152 = vld [vmem:[#allocation14 + $0x5f8] sm:$0xff]
    %v2345 = vunpack.c.l.b16 %v1961
    %v2346 = vunpack.c.h.b16 %v1961
    %v2347 = vunpack.c.l.b16 %v1962
    %v2348 = vunpack.c.h.b16 %v1962
    %v2349 = vunpack.c.l.b16 %v1963
    %v2350 = vunpack.c.h.b16 %v1963
    %v2351 = vunpack.c.l.b16 %v1964
    %v2352 = vunpack.c.h.b16 %v1964
    %v2353 = vunpack.c.l.b16 %v1965
    %v2354 = vunpack.c.h.b16 %v1965
    %v2355 = vunpack.c.l.b16 %v1966
    %v2356 = vunpack.c.h.b16 %v1966
    %v2357 = vunpack.c.l.b16 %v1967
    %v2358 = vunpack.c.h.b16 %v1967
    %v2359 = vunpack.c.l.b16 %v1968
    %v2360 = vunpack.c.h.b16 %v1968
    %v2361 = vunpack.c.l.b16 %v1969
    %v2362 = vunpack.c.h.b16 %v1969
    %v2363 = vunpack.c.l.b16 %v1970
    %v2364 = vunpack.c.h.b16 %v1970
    %v2365 = vunpack.c.l.b16 %v1971
    %v2366 = vunpack.c.h.b16 %v1971
    %v2367 = vunpack.c.l.b16 %v1972
    %v2368 = vunpack.c.h.b16 %v1972
    %v2369 = vunpack.c.l.b16 %v1973
    %v2370 = vunpack.c.h.b16 %v1973
    %v2371 = vunpack.c.l.b16 %v1974
    %v2372 = vunpack.c.h.b16 %v1974
    %v2373 = vunpack.c.l.b16 %v1975
    %v2374 = vunpack.c.h.b16 %v1975
    %v2375 = vunpack.c.l.b16 %v1976
    %v2376 = vunpack.c.h.b16 %v1976
    %v2377 = vunpack.c.l.b16 %v1977
    %v2378 = vunpack.c.h.b16 %v1977
    %v2379 = vunpack.c.l.b16 %v1978
    %v2380 = vunpack.c.h.b16 %v1978
    %v2381 = vunpack.c.l.b16 %v1979
    %v2382 = vunpack.c.h.b16 %v1979
    %v2383 = vunpack.c.l.b16 %v1980
    %v2384 = vunpack.c.h.b16 %v1980
    %v2385 = vunpack.c.l.b16 %v1981
    %v2386 = vunpack.c.h.b16 %v1981
    %v2387 = vunpack.c.l.b16 %v1982
    %v2388 = vunpack.c.h.b16 %v1982
    %v2389 = vunpack.c.l.b16 %v1983
    %v2390 = vunpack.c.h.b16 %v1983
    %v2391 = vunpack.c.l.b16 %v1984
    %v2392 = vunpack.c.h.b16 %v1984
    %v2393 = vunpack.c.l.b16 %v1985
    %v2394 = vunpack.c.h.b16 %v1985
    %v2395 = vunpack.c.l.b16 %v1986
    %v2396 = vunpack.c.h.b16 %v1986
    %v2397 = vunpack.c.l.b16 %v1987
    %v2398 = vunpack.c.h.b16 %v1987
    %v2399 = vunpack.c.l.b16 %v1988
    %v2400 = vunpack.c.h.b16 %v1988
    %v2401 = vunpack.c.l.b16 %v1989
    %v2402 = vunpack.c.h.b16 %v1989
    %v2403 = vunpack.c.l.b16 %v1990
    %v2404 = vunpack.c.h.b16 %v1990
    %v2405 = vunpack.c.l.b16 %v1991
    %v2406 = vunpack.c.h.b16 %v1991
    %v2407 = vunpack.c.l.b16 %v1992
    %v2408 = vunpack.c.h.b16 %v1992
    %v2409 = vunpack.c.l.b16 %v1993
    %v2410 = vunpack.c.h.b16 %v1993
    %v2411 = vunpack.c.l.b16 %v1994
    %v2412 = vunpack.c.h.b16 %v1994
    %v2413 = vunpack.c.l.b16 %v1995
    %v2414 = vunpack.c.h.b16 %v1995
    %v2415 = vunpack.c.l.b16 %v1996
    %v2416 = vunpack.c.h.b16 %v1996
    %v2417 = vunpack.c.l.b16 %v1997
    %v2418 = vunpack.c.h.b16 %v1997
    %v2419 = vunpack.c.l.b16 %v1998
    %v2420 = vunpack.c.h.b16 %v1998
    %v2421 = vunpack.c.l.b16 %v1999
    %v2422 = vunpack.c.h.b16 %v1999
    %v2423 = vunpack.c.l.b16 %v2000
    %v2424 = vunpack.c.h.b16 %v2000
    %v2425 = vunpack.c.l.b16 %v2001
    %v2426 = vunpack.c.h.b16 %v2001
    %v2427 = vunpack.c.l.b16 %v2002
    %v2428 = vunpack.c.h.b16 %v2002
    %v2429 = vunpack.c.l.b16 %v2003
    %v2430 = vunpack.c.h.b16 %v2003
    %v2431 = vunpack.c.l.b16 %v2004
    %v2432 = vunpack.c.h.b16 %v2004
    %v2433 = vunpack.c.l.b16 %v2005
    %v2434 = vunpack.c.h.b16 %v2005
    %v2435 = vunpack.c.l.b16 %v2006
    %v2436 = vunpack.c.h.b16 %v2006
    %v2437 = vunpack.c.l.b16 %v2007
    %v2438 = vunpack.c.h.b16 %v2007
    %v2439 = vunpack.c.l.b16 %v2008
    %v2440 = vunpack.c.h.b16 %v2008
    %v2441 = vunpack.c.l.b16 %v2009
    %v2442 = vunpack.c.h.b16 %v2009
    %v2443 = vunpack.c.l.b16 %v2010
    %v2444 = vunpack.c.h.b16 %v2010
    %v2445 = vunpack.c.l.b16 %v2011
    %v2446 = vunpack.c.h.b16 %v2011
    %v2447 = vunpack.c.l.b16 %v2012
    %v2448 = vunpack.c.h.b16 %v2012
    %v2449 = vunpack.c.l.b16 %v2013
    %v2450 = vunpack.c.h.b16 %v2013
    %v2451 = vunpack.c.l.b16 %v2014
    %v2452 = vunpack.c.h.b16 %v2014
    %v2453 = vunpack.c.l.b16 %v2015
    %v2454 = vunpack.c.h.b16 %v2015
    %v2455 = vunpack.c.l.b16 %v2016
    %v2456 = vunpack.c.h.b16 %v2016
    %v2457 = vunpack.c.l.b16 %v2017
    %v2458 = vunpack.c.h.b16 %v2017
    %v2459 = vunpack.c.l.b16 %v2018
    %v2460 = vunpack.c.h.b16 %v2018
    %v2461 = vunpack.c.l.b16 %v2019
    %v2462 = vunpack.c.h.b16 %v2019
    %v2463 = vunpack.c.l.b16 %v2020
    %v2464 = vunpack.c.h.b16 %v2020
    %v2465 = vunpack.c.l.b16 %v2021
    %v2466 = vunpack.c.h.b16 %v2021
    %v2467 = vunpack.c.l.b16 %v2022
    %v2468 = vunpack.c.h.b16 %v2022
    %v2469 = vunpack.c.l.b16 %v2023
    %v2470 = vunpack.c.h.b16 %v2023
    %v2471 = vunpack.c.l.b16 %v2024
    %v2472 = vunpack.c.h.b16 %v2024
    %v2473 = vunpack.c.l.b16 %v2025
    %v2474 = vunpack.c.h.b16 %v2025
    %v2475 = vunpack.c.l.b16 %v2026
    %v2476 = vunpack.c.h.b16 %v2026
    %v2477 = vunpack.c.l.b16 %v2027
    %v2478 = vunpack.c.h.b16 %v2027
    %v2479 = vunpack.c.l.b16 %v2028
    %v2480 = vunpack.c.h.b16 %v2028
    %v2481 = vunpack.c.l.b16 %v2029
    %v2482 = vunpack.c.h.b16 %v2029
    %v2483 = vunpack.c.l.b16 %v2030
    %v2484 = vunpack.c.h.b16 %v2030
    %v2485 = vunpack.c.l.b16 %v2031
    %v2486 = vunpack.c.h.b16 %v2031
    %v2487 = vunpack.c.l.b16 %v2032
    %v2488 = vunpack.c.h.b16 %v2032
    %v2489 = vunpack.c.l.b16 %v2033
    %v2490 = vunpack.c.h.b16 %v2033
    %v2491 = vunpack.c.l.b16 %v2034
    %v2492 = vunpack.c.h.b16 %v2034
    %v2493 = vunpack.c.l.b16 %v2035
    %v2494 = vunpack.c.h.b16 %v2035
    %v2495 = vunpack.c.l.b16 %v2036
    %v2496 = vunpack.c.h.b16 %v2036
    %v2497 = vunpack.c.l.b16 %v2037
    %v2498 = vunpack.c.h.b16 %v2037
    %v2499 = vunpack.c.l.b16 %v2038
    %v2500 = vunpack.c.h.b16 %v2038
    %v2501 = vunpack.c.l.b16 %v2039
    %v2502 = vunpack.c.h.b16 %v2039
    %v2503 = vunpack.c.l.b16 %v2040
    %v2504 = vunpack.c.h.b16 %v2040
    %v2505 = vunpack.c.l.b16 %v2041
    %v2506 = vunpack.c.h.b16 %v2041
    %v2507 = vunpack.c.l.b16 %v2042
    %v2508 = vunpack.c.h.b16 %v2042
    %v2509 = vunpack.c.l.b16 %v2043
    %v2510 = vunpack.c.h.b16 %v2043
    %v2511 = vunpack.c.l.b16 %v2044
    %v2512 = vunpack.c.h.b16 %v2044
    %v2513 = vunpack.c.l.b16 %v2045
    %v2514 = vunpack.c.h.b16 %v2045
    %v2515 = vunpack.c.l.b16 %v2046
    %v2516 = vunpack.c.h.b16 %v2046
    %v2517 = vunpack.c.l.b16 %v2047
    %v2518 = vunpack.c.h.b16 %v2047
    %v2519 = vunpack.c.l.b16 %v2048
    %v2520 = vunpack.c.h.b16 %v2048
    %v2521 = vunpack.c.l.b16 %v2049
    %v2522 = vunpack.c.h.b16 %v2049
    %v2523 = vunpack.c.l.b16 %v2050
    %v2524 = vunpack.c.h.b16 %v2050
    %v2525 = vunpack.c.l.b16 %v2051
    %v2526 = vunpack.c.h.b16 %v2051
    %v2527 = vunpack.c.l.b16 %v2052
    %v2528 = vunpack.c.h.b16 %v2052
    %v2529 = vunpack.c.l.b16 %v2053
    %v2530 = vunpack.c.h.b16 %v2053
    %v2531 = vunpack.c.l.b16 %v2054
    %v2532 = vunpack.c.h.b16 %v2054
    %v2533 = vunpack.c.l.b16 %v2055
    %v2534 = vunpack.c.h.b16 %v2055
    %v2535 = vunpack.c.l.b16 %v2056
    %v2536 = vunpack.c.h.b16 %v2056
    %v2537 = vunpack.c.l.b16 %v2057
    %v2538 = vunpack.c.h.b16 %v2057
    %v2539 = vunpack.c.l.b16 %v2058
    %v2540 = vunpack.c.h.b16 %v2058
    %v2541 = vunpack.c.l.b16 %v2059
    %v2542 = vunpack.c.h.b16 %v2059
    %v2543 = vunpack.c.l.b16 %v2060
    %v2544 = vunpack.c.h.b16 %v2060
    %v2545 = vunpack.c.l.b16 %v2061
    %v2546 = vunpack.c.h.b16 %v2061
    %v2547 = vunpack.c.l.b16 %v2062
    %v2548 = vunpack.c.h.b16 %v2062
    %v2549 = vunpack.c.l.b16 %v2063
    %v2550 = vunpack.c.h.b16 %v2063
    %v2551 = vunpack.c.l.b16 %v2064
    %v2552 = vunpack.c.h.b16 %v2064
    %v2553 = vunpack.c.l.b16 %v2065
    %v2554 = vunpack.c.h.b16 %v2065
    %v2555 = vunpack.c.l.b16 %v2066
    %v2556 = vunpack.c.h.b16 %v2066
    %v2557 = vunpack.c.l.b16 %v2067
    %v2558 = vunpack.c.h.b16 %v2067
    %v2559 = vunpack.c.l.b16 %v2068
    %v2560 = vunpack.c.h.b16 %v2068
    %v2561 = vunpack.c.l.b16 %v2069
    %v2562 = vunpack.c.h.b16 %v2069
    %v2563 = vunpack.c.l.b16 %v2070
    %v2564 = vunpack.c.h.b16 %v2070
    %v2565 = vunpack.c.l.b16 %v2071
    %v2566 = vunpack.c.h.b16 %v2071
    %v2567 = vunpack.c.l.b16 %v2072
    %v2568 = vunpack.c.h.b16 %v2072
    %v2569 = vunpack.c.l.b16 %v2073
    %v2570 = vunpack.c.h.b16 %v2073
    %v2571 = vunpack.c.l.b16 %v2074
    %v2572 = vunpack.c.h.b16 %v2074
    %v2573 = vunpack.c.l.b16 %v2075
    %v2574 = vunpack.c.h.b16 %v2075
    %v2575 = vunpack.c.l.b16 %v2076
    %v2576 = vunpack.c.h.b16 %v2076
    %v2577 = vunpack.c.l.b16 %v2077
    %v2578 = vunpack.c.h.b16 %v2077
    %v2579 = vunpack.c.l.b16 %v2078
    %v2580 = vunpack.c.h.b16 %v2078
    %v2581 = vunpack.c.l.b16 %v2079
    %v2582 = vunpack.c.h.b16 %v2079
    %v2583 = vunpack.c.l.b16 %v2080
    %v2584 = vunpack.c.h.b16 %v2080
    %v2585 = vunpack.c.l.b16 %v2081
    %v2586 = vunpack.c.h.b16 %v2081
    %v2587 = vunpack.c.l.b16 %v2082
    %v2588 = vunpack.c.h.b16 %v2082
    %v2589 = vunpack.c.l.b16 %v2083
    %v2590 = vunpack.c.h.b16 %v2083
    %v2591 = vunpack.c.l.b16 %v2084
    %v2592 = vunpack.c.h.b16 %v2084
    %v2593 = vunpack.c.l.b16 %v2085
    %v2594 = vunpack.c.h.b16 %v2085
    %v2595 = vunpack.c.l.b16 %v2086
    %v2596 = vunpack.c.h.b16 %v2086
    %v2597 = vunpack.c.l.b16 %v2087
    %v2598 = vunpack.c.h.b16 %v2087
    %v2599 = vunpack.c.l.b16 %v2088
    %v2600 = vunpack.c.h.b16 %v2088
    %v2601 = vunpack.c.l.b16 %v2089
    %v2602 = vunpack.c.h.b16 %v2089
    %v2603 = vunpack.c.l.b16 %v2090
    %v2604 = vunpack.c.h.b16 %v2090
    %v2605 = vunpack.c.l.b16 %v2091
    %v2606 = vunpack.c.h.b16 %v2091
    %v2607 = vunpack.c.l.b16 %v2092
    %v2608 = vunpack.c.h.b16 %v2092
    %v2609 = vunpack.c.l.b16 %v2093
    %v2610 = vunpack.c.h.b16 %v2093
    %v2611 = vunpack.c.l.b16 %v2094
    %v2612 = vunpack.c.h.b16 %v2094
    %v2613 = vunpack.c.l.b16 %v2095
    %v2614 = vunpack.c.h.b16 %v2095
    %v2615 = vunpack.c.l.b16 %v2096
    %v2616 = vunpack.c.h.b16 %v2096
    %v2617 = vunpack.c.l.b16 %v2097
    %v2618 = vunpack.c.h.b16 %v2097
    %v2619 = vunpack.c.l.b16 %v2098
    %v2620 = vunpack.c.h.b16 %v2098
    %v2621 = vunpack.c.l.b16 %v2099
    %v2622 = vunpack.c.h.b16 %v2099
    %v2623 = vunpack.c.l.b16 %v2100
    %v2624 = vunpack.c.h.b16 %v2100
    %v2625 = vunpack.c.l.b16 %v2101
    %v2626 = vunpack.c.h.b16 %v2101
    %v2627 = vunpack.c.l.b16 %v2102
    %v2628 = vunpack.c.h.b16 %v2102
    %v2629 = vunpack.c.l.b16 %v2103
    %v2630 = vunpack.c.h.b16 %v2103
    %v2631 = vunpack.c.l.b16 %v2104
    %v2632 = vunpack.c.h.b16 %v2104
    %v2633 = vunpack.c.l.b16 %v2105
    %v2634 = vunpack.c.h.b16 %v2105
    %v2635 = vunpack.c.l.b16 %v2106
    %v2636 = vunpack.c.h.b16 %v2106
    %v2637 = vunpack.c.l.b16 %v2107
    %v2638 = vunpack.c.h.b16 %v2107
    %v2639 = vunpack.c.l.b16 %v2108
    %v2640 = vunpack.c.h.b16 %v2108
    %v2641 = vunpack.c.l.b16 %v2109
    %v2642 = vunpack.c.h.b16 %v2109
    %v2643 = vunpack.c.l.b16 %v2110
    %v2644 = vunpack.c.h.b16 %v2110
    %v2645 = vunpack.c.l.b16 %v2111
    %v2646 = vunpack.c.h.b16 %v2111
    %v2647 = vunpack.c.l.b16 %v2112
    %v2648 = vunpack.c.h.b16 %v2112
    %v2649 = vunpack.c.l.b16 %v2113
    %v2650 = vunpack.c.h.b16 %v2113
    %v2651 = vunpack.c.l.b16 %v2114
    %v2652 = vunpack.c.h.b16 %v2114
    %v2653 = vunpack.c.l.b16 %v2115
    %v2654 = vunpack.c.h.b16 %v2115
    %v2655 = vunpack.c.l.b16 %v2116
    %v2656 = vunpack.c.h.b16 %v2116
    %v2657 = vunpack.c.l.b16 %v2117
    %v2658 = vunpack.c.h.b16 %v2117
    %v2659 = vunpack.c.l.b16 %v2118
    %v2660 = vunpack.c.h.b16 %v2118
    %v2661 = vunpack.c.l.b16 %v2119
    %v2662 = vunpack.c.h.b16 %v2119
    %v2663 = vunpack.c.l.b16 %v2120
    %v2664 = vunpack.c.h.b16 %v2120
    %v2665 = vunpack.c.l.b16 %v2121
    %v2666 = vunpack.c.h.b16 %v2121
    %v2667 = vunpack.c.l.b16 %v2122
    %v2668 = vunpack.c.h.b16 %v2122
    %v2669 = vunpack.c.l.b16 %v2123
    %v2670 = vunpack.c.h.b16 %v2123
    %v2671 = vunpack.c.l.b16 %v2124
    %v2672 = vunpack.c.h.b16 %v2124
    %v2673 = vunpack.c.l.b16 %v2125
    %v2674 = vunpack.c.h.b16 %v2125
    %v2675 = vunpack.c.l.b16 %v2126
    %v2676 = vunpack.c.h.b16 %v2126
    %v2677 = vunpack.c.l.b16 %v2127
    %v2678 = vunpack.c.h.b16 %v2127
    %v2679 = vunpack.c.l.b16 %v2128
    %v2680 = vunpack.c.h.b16 %v2128
    %v2681 = vunpack.c.l.b16 %v2129
    %v2682 = vunpack.c.h.b16 %v2129
    %v2683 = vunpack.c.l.b16 %v2130
    %v2684 = vunpack.c.h.b16 %v2130
    %v2685 = vunpack.c.l.b16 %v2131
    %v2686 = vunpack.c.h.b16 %v2131
    %v2687 = vunpack.c.l.b16 %v2132
    %v2688 = vunpack.c.h.b16 %v2132
    %v2689 = vunpack.c.l.b16 %v2133
    %v2690 = vunpack.c.h.b16 %v2133
    %v2691 = vunpack.c.l.b16 %v2134
    %v2692 = vunpack.c.h.b16 %v2134
    %v2693 = vunpack.c.l.b16 %v2135
    %v2694 = vunpack.c.h.b16 %v2135
    %v2695 = vunpack.c.l.b16 %v2136
    %v2696 = vunpack.c.h.b16 %v2136
    %v2697 = vunpack.c.l.b16 %v2137
    %v2698 = vunpack.c.h.b16 %v2137
    %v2699 = vunpack.c.l.b16 %v2138
    %v2700 = vunpack.c.h.b16 %v2138
    %v2701 = vunpack.c.l.b16 %v2139
    %v2702 = vunpack.c.h.b16 %v2139
    %v2703 = vunpack.c.l.b16 %v2140
    %v2704 = vunpack.c.h.b16 %v2140
    %v2705 = vunpack.c.l.b16 %v2141
    %v2706 = vunpack.c.h.b16 %v2141
    %v2707 = vunpack.c.l.b16 %v2142
    %v2708 = vunpack.c.h.b16 %v2142
    %v2709 = vunpack.c.l.b16 %v2143
    %v2710 = vunpack.c.h.b16 %v2143
    %v2711 = vunpack.c.l.b16 %v2144
    %v2712 = vunpack.c.h.b16 %v2144
    %v2713 = vunpack.c.l.b16 %v2145
    %v2714 = vunpack.c.h.b16 %v2145
    %v2715 = vunpack.c.l.b16 %v2146
    %v2716 = vunpack.c.h.b16 %v2146
    %v2717 = vunpack.c.l.b16 %v2147
    %v2718 = vunpack.c.h.b16 %v2147
    %v2719 = vunpack.c.l.b16 %v2148
    %v2720 = vunpack.c.h.b16 %v2148
    %v2721 = vunpack.c.l.b16 %v2149
    %v2722 = vunpack.c.h.b16 %v2149
    %v2723 = vunpack.c.l.b16 %v2150
    %v2724 = vunpack.c.h.b16 %v2150
    %v2725 = vunpack.c.l.b16 %v2151
    %v2726 = vunpack.c.h.b16 %v2151
    %v2727 = vunpack.c.l.b16 %v2152
    %v2728 = vunpack.c.h.b16 %v2152
    %v2729 = vpack.c.b16 %v2357, %v2345
    %v2730 = vpack.c.b16 %v2358, %v2346
    %v2731 = vpack.c.b16 %v2359, %v2347
    %v2732 = vpack.c.b16 %v2360, %v2348
    %v2733 = vpack.c.b16 %v2361, %v2349
    %v2734 = vpack.c.b16 %v2362, %v2350
    %v2735 = vpack.c.b16 %v2363, %v2351
    %v2736 = vpack.c.b16 %v2364, %v2352
    %v2737 = vpack.c.b16 %v2365, %v2353
    %v2738 = vpack.c.b16 %v2366, %v2354
    %v2739 = vpack.c.b16 %v2367, %v2355
    %v2740 = vpack.c.b16 %v2368, %v2356
    %v2741 = vpack.c.b16 %v2381, %v2369
    %v2742 = vpack.c.b16 %v2382, %v2370
    %v2743 = vpack.c.b16 %v2383, %v2371
    %v2744 = vpack.c.b16 %v2384, %v2372
    %v2745 = vpack.c.b16 %v2385, %v2373
    %v2746 = vpack.c.b16 %v2386, %v2374
    %v2747 = vpack.c.b16 %v2387, %v2375
    %v2748 = vpack.c.b16 %v2388, %v2376
    %v2749 = vpack.c.b16 %v2389, %v2377
    %v2750 = vpack.c.b16 %v2390, %v2378
    %v2751 = vpack.c.b16 %v2391, %v2379
    %v2752 = vpack.c.b16 %v2392, %v2380
    %v2753 = vpack.c.b16 %v2405, %v2393
    %v2754 = vpack.c.b16 %v2406, %v2394
    %v2755 = vpack.c.b16 %v2407, %v2395
    %v2756 = vpack.c.b16 %v2408, %v2396
    %v2757 = vpack.c.b16 %v2409, %v2397
    %v2758 = vpack.c.b16 %v2410, %v2398
    %v2759 = vpack.c.b16 %v2411, %v2399
    %v2760 = vpack.c.b16 %v2412, %v2400
    %v2761 = vpack.c.b16 %v2413, %v2401
    %v2762 = vpack.c.b16 %v2414, %v2402
    %v2763 = vpack.c.b16 %v2415, %v2403
    %v2764 = vpack.c.b16 %v2416, %v2404
    %v2765 = vpack.c.b16 %v2429, %v2417
    %v2766 = vpack.c.b16 %v2430, %v2418
    %v2767 = vpack.c.b16 %v2431, %v2419
    %v2768 = vpack.c.b16 %v2432, %v2420
    %v2769 = vpack.c.b16 %v2433, %v2421
    %v2770 = vpack.c.b16 %v2434, %v2422
    %v2771 = vpack.c.b16 %v2435, %v2423
    %v2772 = vpack.c.b16 %v2436, %v2424
    %v2773 = vpack.c.b16 %v2437, %v2425
    %v2774 = vpack.c.b16 %v2438, %v2426
    %v2775 = vpack.c.b16 %v2439, %v2427
    %v2776 = vpack.c.b16 %v2440, %v2428
    %v2777 = vpack.c.b16 %v2453, %v2441
    %v2778 = vpack.c.b16 %v2454, %v2442
    %v2779 = vpack.c.b16 %v2455, %v2443
    %v2780 = vpack.c.b16 %v2456, %v2444
    %v2781 = vpack.c.b16 %v2457, %v2445
    %v2782 = vpack.c.b16 %v2458, %v2446
    %v2783 = vpack.c.b16 %v2459, %v2447
    %v2784 = vpack.c.b16 %v2460, %v2448
    %v2785 = vpack.c.b16 %v2461, %v2449
    %v2786 = vpack.c.b16 %v2462, %v2450
    %v2787 = vpack.c.b16 %v2463, %v2451
    %v2788 = vpack.c.b16 %v2464, %v2452
    %v2789 = vpack.c.b16 %v2477, %v2465
    %v2790 = vpack.c.b16 %v2478, %v2466
    %v2791 = vpack.c.b16 %v2479, %v2467
    %v2792 = vpack.c.b16 %v2480, %v2468
    %v2793 = vpack.c.b16 %v2481, %v2469
    %v2794 = vpack.c.b16 %v2482, %v2470
    %v2795 = vpack.c.b16 %v2483, %v2471
    %v2796 = vpack.c.b16 %v2484, %v2472
    %v2797 = vpack.c.b16 %v2485, %v2473
    %v2798 = vpack.c.b16 %v2486, %v2474
    %v2799 = vpack.c.b16 %v2487, %v2475
    %v2800 = vpack.c.b16 %v2488, %v2476
    %v2801 = vpack.c.b16 %v2501, %v2489
    %v2802 = vpack.c.b16 %v2502, %v2490
    %v2803 = vpack.c.b16 %v2503, %v2491
    %v2804 = vpack.c.b16 %v2504, %v2492
    %v2805 = vpack.c.b16 %v2505, %v2493
    %v2806 = vpack.c.b16 %v2506, %v2494
    %v2807 = vpack.c.b16 %v2507, %v2495
    %v2808 = vpack.c.b16 %v2508, %v2496
    %v2809 = vpack.c.b16 %v2509, %v2497
    %v2810 = vpack.c.b16 %v2510, %v2498
    %v2811 = vpack.c.b16 %v2511, %v2499
    %v2812 = vpack.c.b16 %v2512, %v2500
    %v2813 = vpack.c.b16 %v2525, %v2513
    %v2814 = vpack.c.b16 %v2526, %v2514
    %v2815 = vpack.c.b16 %v2527, %v2515
    %v2816 = vpack.c.b16 %v2528, %v2516
    %v2817 = vpack.c.b16 %v2529, %v2517
    %v2818 = vpack.c.b16 %v2530, %v2518
    %v2819 = vpack.c.b16 %v2531, %v2519
    %v2820 = vpack.c.b16 %v2532, %v2520
    %v2821 = vpack.c.b16 %v2533, %v2521
    %v2822 = vpack.c.b16 %v2534, %v2522
    %v2823 = vpack.c.b16 %v2535, %v2523
    %v2824 = vpack.c.b16 %v2536, %v2524
    %v2825 = vpack.c.b16 %v2549, %v2537
    %v2826 = vpack.c.b16 %v2550, %v2538
    %v2827 = vpack.c.b16 %v2551, %v2539
    %v2828 = vpack.c.b16 %v2552, %v2540
    %v2829 = vpack.c.b16 %v2553, %v2541
    %v2830 = vpack.c.b16 %v2554, %v2542
    %v2831 = vpack.c.b16 %v2555, %v2543
    %v2832 = vpack.c.b16 %v2556, %v2544
    %v2833 = vpack.c.b16 %v2557, %v2545
    %v2834 = vpack.c.b16 %v2558, %v2546
    %v2835 = vpack.c.b16 %v2559, %v2547
    %v2836 = vpack.c.b16 %v2560, %v2548
    %v2837 = vpack.c.b16 %v2573, %v2561
    %v2838 = vpack.c.b16 %v2574, %v2562
    %v2839 = vpack.c.b16 %v2575, %v2563
    %v2840 = vpack.c.b16 %v2576, %v2564
    %v2841 = vpack.c.b16 %v2577, %v2565
    %v2842 = vpack.c.b16 %v2578, %v2566
    %v2843 = vpack.c.b16 %v2579, %v2567
    %v2844 = vpack.c.b16 %v2580, %v2568
    %v2845 = vpack.c.b16 %v2581, %v2569
    %v2846 = vpack.c.b16 %v2582, %v2570
    %v2847 = vpack.c.b16 %v2583, %v2571
    %v2848 = vpack.c.b16 %v2584, %v2572
    %v2849 = vpack.c.b16 %v2597, %v2585
    %v2850 = vpack.c.b16 %v2598, %v2586
    %v2851 = vpack.c.b16 %v2599, %v2587
    %v2852 = vpack.c.b16 %v2600, %v2588
    %v2853 = vpack.c.b16 %v2601, %v2589
    %v2854 = vpack.c.b16 %v2602, %v2590
    %v2855 = vpack.c.b16 %v2603, %v2591
    %v2856 = vpack.c.b16 %v2604, %v2592
    %v2857 = vpack.c.b16 %v2605, %v2593
    %v2858 = vpack.c.b16 %v2606, %v2594
    %v2859 = vpack.c.b16 %v2607, %v2595
    %v2860 = vpack.c.b16 %v2608, %v2596
    %v2861 = vpack.c.b16 %v2621, %v2609
    %v2862 = vpack.c.b16 %v2622, %v2610
    %v2863 = vpack.c.b16 %v2623, %v2611
    %v2864 = vpack.c.b16 %v2624, %v2612
    %v2865 = vpack.c.b16 %v2625, %v2613
    %v2866 = vpack.c.b16 %v2626, %v2614
    %v2867 = vpack.c.b16 %v2627, %v2615
    %v2868 = vpack.c.b16 %v2628, %v2616
    %v2869 = vpack.c.b16 %v2629, %v2617
    %v2870 = vpack.c.b16 %v2630, %v2618
    %v2871 = vpack.c.b16 %v2631, %v2619
    %v2872 = vpack.c.b16 %v2632, %v2620
    %v2873 = vpack.c.b16 %v2645, %v2633
    %v2874 = vpack.c.b16 %v2646, %v2634
    %v2875 = vpack.c.b16 %v2647, %v2635
    %v2876 = vpack.c.b16 %v2648, %v2636
    %v2877 = vpack.c.b16 %v2649, %v2637
    %v2878 = vpack.c.b16 %v2650, %v2638
    %v2879 = vpack.c.b16 %v2651, %v2639
    %v2880 = vpack.c.b16 %v2652, %v2640
    %v2881 = vpack.c.b16 %v2653, %v2641
    %v2882 = vpack.c.b16 %v2654, %v2642
    %v2883 = vpack.c.b16 %v2655, %v2643
    %v2884 = vpack.c.b16 %v2656, %v2644
    %v2885 = vpack.c.b16 %v2669, %v2657
    %v2886 = vpack.c.b16 %v2670, %v2658
    %v2887 = vpack.c.b16 %v2671, %v2659
    %v2888 = vpack.c.b16 %v2672, %v2660
    %v2889 = vpack.c.b16 %v2673, %v2661
    %v2890 = vpack.c.b16 %v2674, %v2662
    %v2891 = vpack.c.b16 %v2675, %v2663
    %v2892 = vpack.c.b16 %v2676, %v2664
    %v2893 = vpack.c.b16 %v2677, %v2665
    %v2894 = vpack.c.b16 %v2678, %v2666
    %v2895 = vpack.c.b16 %v2679, %v2667
    %v2896 = vpack.c.b16 %v2680, %v2668
    %v2897 = vpack.c.b16 %v2693, %v2681
    %v2898 = vpack.c.b16 %v2694, %v2682
    %v2899 = vpack.c.b16 %v2695, %v2683
    %v2900 = vpack.c.b16 %v2696, %v2684
    %v2901 = vpack.c.b16 %v2697, %v2685
    %v2902 = vpack.c.b16 %v2698, %v2686
    %v2903 = vpack.c.b16 %v2699, %v2687
    %v2904 = vpack.c.b16 %v2700, %v2688
    %v2905 = vpack.c.b16 %v2701, %v2689
    %v2906 = vpack.c.b16 %v2702, %v2690
    %v2907 = vpack.c.b16 %v2703, %v2691
    %v2908 = vpack.c.b16 %v2704, %v2692
    %v2909 = vpack.c.b16 %v2717, %v2705
    %v2910 = vpack.c.b16 %v2718, %v2706
    %v2911 = vpack.c.b16 %v2719, %v2707
    %v2912 = vpack.c.b16 %v2720, %v2708
    %v2913 = vpack.c.b16 %v2721, %v2709
    %v2914 = vpack.c.b16 %v2722, %v2710
    %v2915 = vpack.c.b16 %v2723, %v2711
    %v2916 = vpack.c.b16 %v2724, %v2712
    %v2917 = vpack.c.b16 %v2725, %v2713
    %v2918 = vpack.c.b16 %v2726, %v2714
    %v2919 = vpack.c.b16 %v2727, %v2715
    %v2920 = vpack.c.b16 %v2728, %v2716
    %3113 = vmatpush.bf16.msra.mxu0 %v2813
    %3114 = vmatpush.bf16.msra.mxu0 %v2801
    %3115 = vmatpush.bf16.msra.mxu0 %v2789
    %3116 = vmatpush.bf16.msra.mxu0 %v2777
    %3117 = vmatpush.bf16.msra.mxu0 %v2765
    %3118 = vmatpush.bf16.msra.mxu0 %v2753
    %3119 = vmatpush.bf16.msra.mxu0 %v2741
    %3120 = vmatpush.bf16.msra.mxu0 %v2729
    %3121 = vmatmul.bf16.gmra.mxu0 %v1959
    %v3122 = vpop.f32.mrf.mxu0
    %v3123 = vadd.f32 0.0, %v3122
    %v3124 = vpop.f32.mrf.mxu0
    %v3125 = vadd.f32 0.0, %v3124
    %3126 = vdwg.mxu0
    %3127 = vmatpush.bf16.msra.mxu0 %v2909
    %3128 = vmatpush.bf16.msra.mxu0 %v2897
    %3129 = vmatpush.bf16.msra.mxu0 %v2885
    %3130 = vmatpush.bf16.msra.mxu0 %v2873
    %3131 = vmatpush.bf16.msra.mxu0 %v2861
    %3132 = vmatpush.bf16.msra.mxu0 %v2849
    %3133 = vmatpush.bf16.msra.mxu0 %v2837
    %3134 = vmatpush.bf16.msra.mxu0 %v2825
    %3135 = vmatmul.bf16.gmra.mxu0 %v1960
    %v3136 = vpop.f32.mrf.mxu0
    %v3137 = vadd.f32 %v3123, %v3136
    %v3138 = vpop.f32.mrf.mxu0
    %v3139 = vadd.f32 %v3125, %v3138
    %3140 = vdwg.mxu0
    %3141 = vmatpush.bf16.msra.mxu0 %v2814
    %3142 = vmatpush.bf16.msra.mxu0 %v2802
    %3143 = vmatpush.bf16.msra.mxu0 %v2790
    %3144 = vmatpush.bf16.msra.mxu0 %v2778
    %3145 = vmatpush.bf16.msra.mxu0 %v2766
    %3146 = vmatpush.bf16.msra.mxu0 %v2754
    %3147 = vmatpush.bf16.msra.mxu0 %v2742
    %3148 = vmatpush.bf16.msra.mxu0 %v2730
    %3149 = vmatmul.bf16.gmra.mxu0 %v1959
    %v3150 = vpop.f32.mrf.mxu0
    %v3151 = vadd.f32 0.0, %v3150
    %v3152 = vpop.f32.mrf.mxu0
    %v3153 = vadd.f32 0.0, %v3152
    %3154 = vdwg.mxu0
    %3155 = vmatpush.bf16.msra.mxu0 %v2910
    %3156 = vmatpush.bf16.msra.mxu0 %v2898
    %3157 = vmatpush.bf16.msra.mxu0 %v2886
    %3158 = vmatpush.bf16.msra.mxu0 %v2874
    %3159 = vmatpush.bf16.msra.mxu0 %v2862
    %3160 = vmatpush.bf16.msra.mxu0 %v2850
    %3161 = vmatpush.bf16.msra.mxu0 %v2838
    %3162 = vmatpush.bf16.msra.mxu0 %v2826
    %3163 = vmatmul.bf16.gmra.mxu0 %v1960
    %v3164 = vpop.f32.mrf.mxu0
    %v3165 = vadd.f32 %v3151, %v3164
    %v3166 = vpop.f32.mrf.mxu0
    %v3167 = vadd.f32 %v3153, %v3166
    %3168 = vdwg.mxu0
    %3169 = vmatpush.bf16.msra.mxu0 %v2815
    %3170 = vmatpush.bf16.msra.mxu0 %v2803
    %3171 = vmatpush.bf16.msra.mxu0 %v2791
    %3172 = vmatpush.bf16.msra.mxu0 %v2779
    %3173 = vmatpush.bf16.msra.mxu0 %v2767
    %3174 = vmatpush.bf16.msra.mxu0 %v2755
    %3175 = vmatpush.bf16.msra.mxu0 %v2743
    %3176 = vmatpush.bf16.msra.mxu0 %v2731
    %3177 = vmatmul.bf16.gmra.mxu0 %v1959
    %v3178 = vpop.f32.mrf.mxu0
    %v3179 = vadd.f32 0.0, %v3178
    %v3180 = vpop.f32.mrf.mxu0
    %v3181 = vadd.f32 0.0, %v3180
    %3182 = vdwg.mxu0
    %3183 = vmatpush.bf16.msra.mxu0 %v2911
    %3184 = vmatpush.bf16.msra.mxu0 %v2899
    %3185 = vmatpush.bf16.msra.mxu0 %v2887
    %3186 = vmatpush.bf16.msra.mxu0 %v2875
    %3187 = vmatpush.bf16.msra.mxu0 %v2863
    %3188 = vmatpush.bf16.msra.mxu0 %v2851
    %3189 = vmatpush.bf16.msra.mxu0 %v2839
    %3190 = vmatpush.bf16.msra.mxu0 %v2827
    %3191 = vmatmul.bf16.gmra.mxu0 %v1960
    %v3192 = vpop.f32.mrf.mxu0
    %v3193 = vadd.f32 %v3179, %v3192
    %v3194 = vpop.f32.mrf.mxu0
    %v3195 = vadd.f32 %v3181, %v3194
    %3196 = vdwg.mxu0
    %3197 = vmatpush.bf16.msra.mxu0 %v2816
    %3198 = vmatpush.bf16.msra.mxu0 %v2804
    %3199 = vmatpush.bf16.msra.mxu0 %v2792
    %3200 = vmatpush.bf16.msra.mxu0 %v2780
    %3201 = vmatpush.bf16.msra.mxu0 %v2768
    %3202 = vmatpush.bf16.msra.mxu0 %v2756
    %3203 = vmatpush.bf16.msra.mxu0 %v2744
    %3204 = vmatpush.bf16.msra.mxu0 %v2732
    %3205 = vmatmul.bf16.gmra.mxu0 %v1959
    %v3206 = vpop.f32.mrf.mxu0
    %v3207 = vadd.f32 0.0, %v3206
    %v3208 = vpop.f32.mrf.mxu0
    %v3209 = vadd.f32 0.0, %v3208
    %3210 = vdwg.mxu0
    %3211 = vmatpush.bf16.msra.mxu0 %v2912
    %3212 = vmatpush.bf16.msra.mxu0 %v2900
    %3213 = vmatpush.bf16.msra.mxu0 %v2888
    %3214 = vmatpush.bf16.msra.mxu0 %v2876
    %3215 = vmatpush.bf16.msra.mxu0 %v2864
    %3216 = vmatpush.bf16.msra.mxu0 %v2852
    %3217 = vmatpush.bf16.msra.mxu0 %v2840
    %3218 = vmatpush.bf16.msra.mxu0 %v2828
    %3219 = vmatmul.bf16.gmra.mxu0 %v1960
    %v3220 = vpop.f32.mrf.mxu0
    %v3221 = vadd.f32 %v3207, %v3220
    %v3222 = vpop.f32.mrf.mxu0
    %v3223 = vadd.f32 %v3209, %v3222
    %3224 = vdwg.mxu0
    %3225 = vmatpush.bf16.msra.mxu0 %v2817
    %3226 = vmatpush.bf16.msra.mxu0 %v2805
    %3227 = vmatpush.bf16.msra.mxu0 %v2793
    %3228 = vmatpush.bf16.msra.mxu0 %v2781
    %3229 = vmatpush.bf16.msra.mxu0 %v2769
    %3230 = vmatpush.bf16.msra.mxu0 %v2757
    %3231 = vmatpush.bf16.msra.mxu0 %v2745
    %3232 = vmatpush.bf16.msra.mxu0 %v2733
    %3233 = vmatmul.bf16.gmra.mxu0 %v1959
    %v3234 = vpop.f32.mrf.mxu0
    %v3235 = vadd.f32 0.0, %v3234
    %v3236 = vpop.f32.mrf.mxu0
    %v3237 = vadd.f32 0.0, %v3236
    %3238 = vdwg.mxu0
    %3239 = vmatpush.bf16.msra.mxu0 %v2913
    %3240 = vmatpush.bf16.msra.mxu0 %v2901
    %3241 = vmatpush.bf16.msra.mxu0 %v2889
    %3242 = vmatpush.bf16.msra.mxu0 %v2877
    %3243 = vmatpush.bf16.msra.mxu0 %v2865
    %3244 = vmatpush.bf16.msra.mxu0 %v2853
    %3245 = vmatpush.bf16.msra.mxu0 %v2841
    %3246 = vmatpush.bf16.msra.mxu0 %v2829
    %3247 = vmatmul.bf16.gmra.mxu0 %v1960
    %v3248 = vpop.f32.mrf.mxu0
    %v3249 = vadd.f32 %v3235, %v3248
    %v3250 = vpop.f32.mrf.mxu0
    %v3251 = vadd.f32 %v3237, %v3250
    %3252 = vdwg.mxu0
    %3253 = vmatpush.bf16.msra.mxu0 %v2818
    %3254 = vmatpush.bf16.msra.mxu0 %v2806
    %3255 = vmatpush.bf16.msra.mxu0 %v2794
    %3256 = vmatpush.bf16.msra.mxu0 %v2782
    %3257 = vmatpush.bf16.msra.mxu0 %v2770
    %3258 = vmatpush.bf16.msra.mxu0 %v2758
    %3259 = vmatpush.bf16.msra.mxu0 %v2746
    %3260 = vmatpush.bf16.msra.mxu0 %v2734
    %3261 = vmatmul.bf16.gmra.mxu0 %v1959
    %v3262 = vpop.f32.mrf.mxu0
    %v3263 = vadd.f32 0.0, %v3262
    %v3264 = vpop.f32.mrf.mxu0
    %v3265 = vadd.f32 0.0, %v3264
    %3266 = vdwg.mxu0
    %3267 = vmatpush.bf16.msra.mxu0 %v2914
    %3268 = vmatpush.bf16.msra.mxu0 %v2902
    %3269 = vmatpush.bf16.msra.mxu0 %v2890
    %3270 = vmatpush.bf16.msra.mxu0 %v2878
    %3271 = vmatpush.bf16.msra.mxu0 %v2866
    %3272 = vmatpush.bf16.msra.mxu0 %v2854
    %3273 = vmatpush.bf16.msra.mxu0 %v2842
    %3274 = vmatpush.bf16.msra.mxu0 %v2830
    %3275 = vmatmul.bf16.gmra.mxu0 %v1960
    %v3276 = vpop.f32.mrf.mxu0
    %v3277 = vadd.f32 %v3263, %v3276
    %v3278 = vpop.f32.mrf.mxu0
    %v3279 = vadd.f32 %v3265, %v3278
    %3280 = vdwg.mxu0
    %3281 = vmatpush.bf16.msra.mxu0 %v2819
    %3282 = vmatpush.bf16.msra.mxu0 %v2807
    %3283 = vmatpush.bf16.msra.mxu0 %v2795
    %3284 = vmatpush.bf16.msra.mxu0 %v2783
    %3285 = vmatpush.bf16.msra.mxu0 %v2771
    %3286 = vmatpush.bf16.msra.mxu0 %v2759
    %3287 = vmatpush.bf16.msra.mxu0 %v2747
    %3288 = vmatpush.bf16.msra.mxu0 %v2735
    %3289 = vmatmul.bf16.gmra.mxu0 %v1959
    %v3290 = vpop.f32.mrf.mxu0
    %v3291 = vadd.f32 0.0, %v3290
    %v3292 = vpop.f32.mrf.mxu0
    %v3293 = vadd.f32 0.0, %v3292
    %3294 = vdwg.mxu0
    %3295 = vmatpush.bf16.msra.mxu0 %v2915
    %3296 = vmatpush.bf16.msra.mxu0 %v2903
    %3297 = vmatpush.bf16.msra.mxu0 %v2891
    %3298 = vmatpush.bf16.msra.mxu0 %v2879
    %3299 = vmatpush.bf16.msra.mxu0 %v2867
    %3300 = vmatpush.bf16.msra.mxu0 %v2855
    %3301 = vmatpush.bf16.msra.mxu0 %v2843
    %3302 = vmatpush.bf16.msra.mxu0 %v2831
    %3303 = vmatmul.bf16.gmra.mxu0 %v1960
    %v3304 = vpop.f32.mrf.mxu0
    %v3305 = vadd.f32 %v3291, %v3304
    %v3306 = vpop.f32.mrf.mxu0
    %v3307 = vadd.f32 %v3293, %v3306
    %3308 = vdwg.mxu0
    %3309 = vmatpush.bf16.msra.mxu0 %v2820
    %3310 = vmatpush.bf16.msra.mxu0 %v2808
    %3311 = vmatpush.bf16.msra.mxu0 %v2796
    %3312 = vmatpush.bf16.msra.mxu0 %v2784
    %3313 = vmatpush.bf16.msra.mxu0 %v2772
    %3314 = vmatpush.bf16.msra.mxu0 %v2760
    %3315 = vmatpush.bf16.msra.mxu0 %v2748
    %3316 = vmatpush.bf16.msra.mxu0 %v2736
    %3317 = vmatmul.bf16.gmra.mxu0 %v1959
    %v3318 = vpop.f32.mrf.mxu0
    %v3319 = vadd.f32 0.0, %v3318
    %v3320 = vpop.f32.mrf.mxu0
    %v3321 = vadd.f32 0.0, %v3320
    %3322 = vdwg.mxu0
    %3323 = vmatpush.bf16.msra.mxu0 %v2916
    %3324 = vmatpush.bf16.msra.mxu0 %v2904
    %3325 = vmatpush.bf16.msra.mxu0 %v2892
    %3326 = vmatpush.bf16.msra.mxu0 %v2880
    %3327 = vmatpush.bf16.msra.mxu0 %v2868
    %3328 = vmatpush.bf16.msra.mxu0 %v2856
    %3329 = vmatpush.bf16.msra.mxu0 %v2844
    %3330 = vmatpush.bf16.msra.mxu0 %v2832
    %3331 = vmatmul.bf16.gmra.mxu0 %v1960
    %v3332 = vpop.f32.mrf.mxu0
    %v3333 = vadd.f32 %v3319, %v3332
    %v3334 = vpop.f32.mrf.mxu0
    %v3335 = vadd.f32 %v3321, %v3334
    %3336 = vdwg.mxu0
    %3337 = vmatpush.bf16.msra.mxu0 %v2821
    %3338 = vmatpush.bf16.msra.mxu0 %v2809
    %3339 = vmatpush.bf16.msra.mxu0 %v2797
    %3340 = vmatpush.bf16.msra.mxu0 %v2785
    %3341 = vmatpush.bf16.msra.mxu0 %v2773
    %3342 = vmatpush.bf16.msra.mxu0 %v2761
    %3343 = vmatpush.bf16.msra.mxu0 %v2749
    %3344 = vmatpush.bf16.msra.mxu0 %v2737
    %3345 = vmatmul.bf16.gmra.mxu0 %v1959
    %v3346 = vpop.f32.mrf.mxu0
    %v3347 = vadd.f32 0.0, %v3346
    %v3348 = vpop.f32.mrf.mxu0
    %v3349 = vadd.f32 0.0, %v3348
    %3350 = vdwg.mxu0
    %3351 = vmatpush.bf16.msra.mxu0 %v2917
    %3352 = vmatpush.bf16.msra.mxu0 %v2905
    %3353 = vmatpush.bf16.msra.mxu0 %v2893
    %3354 = vmatpush.bf16.msra.mxu0 %v2881
    %3355 = vmatpush.bf16.msra.mxu0 %v2869
    %3356 = vmatpush.bf16.msra.mxu0 %v2857
    %3357 = vmatpush.bf16.msra.mxu0 %v2845
    %3358 = vmatpush.bf16.msra.mxu0 %v2833
    %3359 = vmatmul.bf16.gmra.mxu0 %v1960
    %v3360 = vpop.f32.mrf.mxu0
    %v3361 = vadd.f32 %v3347, %v3360
    %v3362 = vpop.f32.mrf.mxu0
    %v3363 = vadd.f32 %v3349, %v3362
    %3364 = vdwg.mxu0
    %3365 = vmatpush.bf16.msra.mxu0 %v2822
    %3366 = vmatpush.bf16.msra.mxu0 %v2810
    %3367 = vmatpush.bf16.msra.mxu0 %v2798
    %3368 = vmatpush.bf16.msra.mxu0 %v2786
    %3369 = vmatpush.bf16.msra.mxu0 %v2774
    %3370 = vmatpush.bf16.msra.mxu0 %v2762
    %3371 = vmatpush.bf16.msra.mxu0 %v2750
    %3372 = vmatpush.bf16.msra.mxu0 %v2738
    %3373 = vmatmul.bf16.gmra.mxu0 %v1959
    %v3374 = vpop.f32.mrf.mxu0
    %v3375 = vadd.f32 0.0, %v3374
    %v3376 = vpop.f32.mrf.mxu0
    %v3377 = vadd.f32 0.0, %v3376
    %3378 = vdwg.mxu0
    %3379 = vmatpush.bf16.msra.mxu0 %v2918
    %3380 = vmatpush.bf16.msra.mxu0 %v2906
    %3381 = vmatpush.bf16.msra.mxu0 %v2894
    %3382 = vmatpush.bf16.msra.mxu0 %v2882
    %3383 = vmatpush.bf16.msra.mxu0 %v2870
    %3384 = vmatpush.bf16.msra.mxu0 %v2858
    %3385 = vmatpush.bf16.msra.mxu0 %v2846
    %3386 = vmatpush.bf16.msra.mxu0 %v2834
    %3387 = vmatmul.bf16.gmra.mxu0 %v1960
    %v3388 = vpop.f32.mrf.mxu0
    %v3389 = vadd.f32 %v3375, %v3388
    %v3390 = vpop.f32.mrf.mxu0
    %v3391 = vadd.f32 %v3377, %v3390
    %3392 = vdwg.mxu0
    %3393 = vmatpush.bf16.msra.mxu0 %v2823
    %3394 = vmatpush.bf16.msra.mxu0 %v2811
    %3395 = vmatpush.bf16.msra.mxu0 %v2799
    %3396 = vmatpush.bf16.msra.mxu0 %v2787
    %3397 = vmatpush.bf16.msra.mxu0 %v2775
    %3398 = vmatpush.bf16.msra.mxu0 %v2763
    %3399 = vmatpush.bf16.msra.mxu0 %v2751
    %3400 = vmatpush.bf16.msra.mxu0 %v2739
    %3401 = vmatmul.bf16.gmra.mxu0 %v1959
    %v3402 = vpop.f32.mrf.mxu0
    %v3403 = vadd.f32 0.0, %v3402
    %v3404 = vpop.f32.mrf.mxu0
    %v3405 = vadd.f32 0.0, %v3404
    %3406 = vdwg.mxu0
    %3407 = vmatpush.bf16.msra.mxu0 %v2919
    %3408 = vmatpush.bf16.msra.mxu0 %v2907
    %3409 = vmatpush.bf16.msra.mxu0 %v2895
    %3410 = vmatpush.bf16.msra.mxu0 %v2883
    %3411 = vmatpush.bf16.msra.mxu0 %v2871
    %3412 = vmatpush.bf16.msra.mxu0 %v2859
    %3413 = vmatpush.bf16.msra.mxu0 %v2847
    %3414 = vmatpush.bf16.msra.mxu0 %v2835
    %3415 = vmatmul.bf16.gmra.mxu0 %v1960
    %v3416 = vpop.f32.mrf.mxu0
    %v3417 = vadd.f32 %v3403, %v3416
    %v3418 = vpop.f32.mrf.mxu0
    %v3419 = vadd.f32 %v3405, %v3418
    %3420 = vdwg.mxu0
    %3421 = vmatpush.bf16.msra.mxu0 %v2824
    %3422 = vmatpush.bf16.msra.mxu0 %v2812
    %3423 = vmatpush.bf16.msra.mxu0 %v2800
    %3424 = vmatpush.bf16.msra.mxu0 %v2788
    %3425 = vmatpush.bf16.msra.mxu0 %v2776
    %3426 = vmatpush.bf16.msra.mxu0 %v2764
    %3427 = vmatpush.bf16.msra.mxu0 %v2752
    %3428 = vmatpush.bf16.msra.mxu0 %v2740
    %3429 = vmatmul.bf16.gmra.mxu0 %v1959
    %v3430 = vpop.f32.mrf.mxu0
    %v3431 = vadd.f32 0.0, %v3430
    %v3432 = vpop.f32.mrf.mxu0
    %v3433 = vadd.f32 0.0, %v3432
    %3434 = vdwg.mxu0
    %3435 = vmatpush.bf16.msra.mxu0 %v2920
    %3436 = vmatpush.bf16.msra.mxu0 %v2908
    %3437 = vmatpush.bf16.msra.mxu0 %v2896
    %3438 = vmatpush.bf16.msra.mxu0 %v2884
    %3439 = vmatpush.bf16.msra.mxu0 %v2872
    %3440 = vmatpush.bf16.msra.mxu0 %v2860
    %3441 = vmatpush.bf16.msra.mxu0 %v2848
    %3442 = vmatpush.bf16.msra.mxu0 %v2836
    %3443 = vmatmul.bf16.gmra.mxu0 %v1960
    %v3444 = vpop.f32.mrf.mxu0
    %v3445 = vadd.f32 %v3431, %v3444
    %v3446 = vpop.f32.mrf.mxu0
    %v3447 = vadd.f32 %v3433, %v3446
    %3448 = vdwg.mxu0
    %v3449 = vxor.u32 %v3137, 2147483648
    %v3450 = vxor.u32 %v3165, 2147483648
    %v3451 = vxor.u32 %v3193, 2147483648
    %v3452 = vxor.u32 %v3221, 2147483648
    %v3453 = vxor.u32 %v3249, 2147483648
    %v3454 = vxor.u32 %v3277, 2147483648
    %v3455 = vxor.u32 %v3139, 2147483648
    %v3456 = vxor.u32 %v3167, 2147483648
    %v3457 = vxor.u32 %v3195, 2147483648
    %v3458 = vxor.u32 %v3223, 2147483648
    %v3459 = vxor.u32 %v3251, 2147483648
    %v3460 = vxor.u32 %v3279, 2147483648
    %v3461 = vmul.f32 %v3449, 1.442695
    %v3462 = vpow.pop %v3461
    %v3463 = vmul.f32 %v3450, 1.442695
    %v3464 = vpow.pop %v3463
    %v3465 = vmul.f32 %v3451, 1.442695
    %v3466 = vpow.pop %v3465
    %v3467 = vmul.f32 %v3452, 1.442695
    %v3468 = vpow.pop %v3467
    %v3469 = vmul.f32 %v3453, 1.442695
    %v3470 = vpow.pop %v3469
    %v3471 = vmul.f32 %v3454, 1.442695
    %v3472 = vpow.pop %v3471
    %v3473 = vmul.f32 %v3455, 1.442695
    %v3474 = vpow.pop %v3473
    %v3475 = vmul.f32 %v3456, 1.442695
    %v3476 = vpow.pop %v3475
    %v3477 = vmul.f32 %v3457, 1.442695
    %v3478 = vpow.pop %v3477
    %v3479 = vmul.f32 %v3458, 1.442695
    %v3480 = vpow.pop %v3479
    %v3481 = vmul.f32 %v3459, 1.442695
    %v3482 = vpow.pop %v3481
    %v3483 = vmul.f32 %v3460, 1.442695
    %v3484 = vpow.pop %v3483
    %v3485 = vadd.f32 %v3462, 1.0
    %v3486 = vadd.f32 %v3464, 1.0
    %v3487 = vadd.f32 %v3466, 1.0
    %v3488 = vadd.f32 %v3468, 1.0
    %v3489 = vadd.f32 %v3470, 1.0
    %v3490 = vadd.f32 %v3472, 1.0
    %v3491 = vadd.f32 %v3474, 1.0
    %v3492 = vadd.f32 %v3476, 1.0
    %v3493 = vadd.f32 %v3478, 1.0
    %v3494 = vadd.f32 %v3480, 1.0
    %v3495 = vadd.f32 %v3482, 1.0
    %v3496 = vadd.f32 %v3484, 1.0
    %v3497 = vrcp.pop %v3485
    %v3498 = vmul.f32 %v3485, %v3497
    %v3499 = vsub.f32 1.0, %v3498
    %v3500 = vmul.f32 %v3497, %v3499
    %v3501 = vadd.f32 %v3497, %v3500
    %vm3502 = vweird.f32 %v3485
    %vm3503 = vweird.f32 %v3497
    %vm3504 = vmor %vm3502, %vm3503
    %v3505 = vsel %vm3504, %v3497, %v3501
    %v3506 = vand.u32 2147483647, %v3485
    %vm3507 = vcmp.eq.f32.partialorder %v3506, 8.507059e+37
    %v3508 = vand.u32 %v3485, 2147483648
    %v3509 = vor.u32 1.1754944e-38, %v3508
    %v3510 = vsel %vm3507, %v3509, %v3505
    %v3511 = vmul.f32 1.0, %v3510
    %v3512 = vrcp.pop %v3486
    %v3513 = vmul.f32 %v3486, %v3512
    %v3514 = vsub.f32 1.0, %v3513
    %v3515 = vmul.f32 %v3512, %v3514
    %v3516 = vadd.f32 %v3512, %v3515
    %vm3517 = vweird.f32 %v3486
    %vm3518 = vweird.f32 %v3512
    %vm3519 = vmor %vm3517, %vm3518
    %v3520 = vsel %vm3519, %v3512, %v3516
    %v3521 = vand.u32 2147483647, %v3486
    %vm3522 = vcmp.eq.f32.partialorder %v3521, 8.507059e+37
    %v3523 = vand.u32 %v3486, 2147483648
    %v3524 = vor.u32 1.1754944e-38, %v3523
    %v3525 = vsel %vm3522, %v3524, %v3520
    %v3526 = vmul.f32 1.0, %v3525
    %v3527 = vrcp.pop %v3487
    %v3528 = vmul.f32 %v3487, %v3527
    %v3529 = vsub.f32 1.0, %v3528
    %v3530 = vmul.f32 %v3527, %v3529
    %v3531 = vadd.f32 %v3527, %v3530
    %vm3532 = vweird.f32 %v3487
    %vm3533 = vweird.f32 %v3527
    %vm3534 = vmor %vm3532, %vm3533
    %v3535 = vsel %vm3534, %v3527, %v3531
    %v3536 = vand.u32 2147483647, %v3487
    %vm3537 = vcmp.eq.f32.partialorder %v3536, 8.507059e+37
    %v3538 = vand.u32 %v3487, 2147483648
    %v3539 = vor.u32 1.1754944e-38, %v3538
    %v3540 = vsel %vm3537, %v3539, %v3535
    %v3541 = vmul.f32 1.0, %v3540
    %v3542 = vrcp.pop %v3488
    %v3543 = vmul.f32 %v3488, %v3542
    %v3544 = vsub.f32 1.0, %v3543
    %v3545 = vmul.f32 %v3542, %v3544
    %v3546 = vadd.f32 %v3542, %v3545
    %vm3547 = vweird.f32 %v3488
    %vm3548 = vweird.f32 %v3542
    %vm3549 = vmor %vm3547, %vm3548
    %v3550 = vsel %vm3549, %v3542, %v3546
    %v3551 = vand.u32 2147483647, %v3488
    %vm3552 = vcmp.eq.f32.partialorder %v3551, 8.507059e+37
    %v3553 = vand.u32 %v3488, 2147483648
    %v3554 = vor.u32 1.1754944e-38, %v3553
    %v3555 = vsel %vm3552, %v3554, %v3550
    %v3556 = vmul.f32 1.0, %v3555
    %v3557 = vrcp.pop %v3489
    %v3558 = vmul.f32 %v3489, %v3557
    %v3559 = vsub.f32 1.0, %v3558
    %v3560 = vmul.f32 %v3557, %v3559
    %v3561 = vadd.f32 %v3557, %v3560
    %vm3562 = vweird.f32 %v3489
    %vm3563 = vweird.f32 %v3557
    %vm3564 = vmor %vm3562, %vm3563
    %v3565 = vsel %vm3564, %v3557, %v3561
    %v3566 = vand.u32 2147483647, %v3489
    %vm3567 = vcmp.eq.f32.partialorder %v3566, 8.507059e+37
    %v3568 = vand.u32 %v3489, 2147483648
    %v3569 = vor.u32 1.1754944e-38, %v3568
    %v3570 = vsel %vm3567, %v3569, %v3565
    %v3571 = vmul.f32 1.0, %v3570
    %v3572 = vrcp.pop %v3490
    %v3573 = vmul.f32 %v3490, %v3572
    %v3574 = vsub.f32 1.0, %v3573
    %v3575 = vmul.f32 %v3572, %v3574
    %v3576 = vadd.f32 %v3572, %v3575
    %vm3577 = vweird.f32 %v3490
    %vm3578 = vweird.f32 %v3572
    %vm3579 = vmor %vm3577, %vm3578
    %v3580 = vsel %vm3579, %v3572, %v3576
    %v3581 = vand.u32 2147483647, %v3490
    %vm3582 = vcmp.eq.f32.partialorder %v3581, 8.507059e+37
    %v3583 = vand.u32 %v3490, 2147483648
    %v3584 = vor.u32 1.1754944e-38, %v3583
    %v3585 = vsel %vm3582, %v3584, %v3580
    %v3586 = vmul.f32 1.0, %v3585
    %v3587 = vrcp.pop %v3491
    %v3588 = vmul.f32 %v3491, %v3587
    %v3589 = vsub.f32 1.0, %v3588
    %v3590 = vmul.f32 %v3587, %v3589
    %v3591 = vadd.f32 %v3587, %v3590
    %vm3592 = vweird.f32 %v3491
    %vm3593 = vweird.f32 %v3587
    %vm3594 = vmor %vm3592, %vm3593
    %v3595 = vsel %vm3594, %v3587, %v3591
    %v3596 = vand.u32 2147483647, %v3491
    %vm3597 = vcmp.eq.f32.partialorder %v3596, 8.507059e+37
    %v3598 = vand.u32 %v3491, 2147483648
    %v3599 = vor.u32 1.1754944e-38, %v3598
    %v3600 = vsel %vm3597, %v3599, %v3595
    %v3601 = vmul.f32 1.0, %v3600
    %v3602 = vrcp.pop %v3492
    %v3603 = vmul.f32 %v3492, %v3602
    %v3604 = vsub.f32 1.0, %v3603
    %v3605 = vmul.f32 %v3602, %v3604
    %v3606 = vadd.f32 %v3602, %v3605
    %vm3607 = vweird.f32 %v3492
    %vm3608 = vweird.f32 %v3602
    %vm3609 = vmor %vm3607, %vm3608
    %v3610 = vsel %vm3609, %v3602, %v3606
    %v3611 = vand.u32 2147483647, %v3492
    %vm3612 = vcmp.eq.f32.partialorder %v3611, 8.507059e+37
    %v3613 = vand.u32 %v3492, 2147483648
    %v3614 = vor.u32 1.1754944e-38, %v3613
    %v3615 = vsel %vm3612, %v3614, %v3610
    %v3616 = vmul.f32 1.0, %v3615
    %v3617 = vrcp.pop %v3493
    %v3618 = vmul.f32 %v3493, %v3617
    %v3619 = vsub.f32 1.0, %v3618
    %v3620 = vmul.f32 %v3617, %v3619
    %v3621 = vadd.f32 %v3617, %v3620
    %vm3622 = vweird.f32 %v3493
    %vm3623 = vweird.f32 %v3617
    %vm3624 = vmor %vm3622, %vm3623
    %v3625 = vsel %vm3624, %v3617, %v3621
    %v3626 = vand.u32 2147483647, %v3493
    %vm3627 = vcmp.eq.f32.partialorder %v3626, 8.507059e+37
    %v3628 = vand.u32 %v3493, 2147483648
    %v3629 = vor.u32 1.1754944e-38, %v3628
    %v3630 = vsel %vm3627, %v3629, %v3625
    %v3631 = vmul.f32 1.0, %v3630
    %v3632 = vrcp.pop %v3494
    %v3633 = vmul.f32 %v3494, %v3632
    %v3634 = vsub.f32 1.0, %v3633
    %v3635 = vmul.f32 %v3632, %v3634
    %v3636 = vadd.f32 %v3632, %v3635
    %vm3637 = vweird.f32 %v3494
    %vm3638 = vweird.f32 %v3632
    %vm3639 = vmor %vm3637, %vm3638
    %v3640 = vsel %vm3639, %v3632, %v3636
    %v3641 = vand.u32 2147483647, %v3494
    %vm3642 = vcmp.eq.f32.partialorder %v3641, 8.507059e+37
    %v3643 = vand.u32 %v3494, 2147483648
    %v3644 = vor.u32 1.1754944e-38, %v3643
    %v3645 = vsel %vm3642, %v3644, %v3640
    %v3646 = vmul.f32 1.0, %v3645
    %v3647 = vrcp.pop %v3495
    %v3648 = vmul.f32 %v3495, %v3647
    %v3649 = vsub.f32 1.0, %v3648
    %v3650 = vmul.f32 %v3647, %v3649
    %v3651 = vadd.f32 %v3647, %v3650
    %vm3652 = vweird.f32 %v3495
    %vm3653 = vweird.f32 %v3647
    %vm3654 = vmor %vm3652, %vm3653
    %v3655 = vsel %vm3654, %v3647, %v3651
    %v3656 = vand.u32 2147483647, %v3495
    %vm3657 = vcmp.eq.f32.partialorder %v3656, 8.507059e+37
    %v3658 = vand.u32 %v3495, 2147483648
    %v3659 = vor.u32 1.1754944e-38, %v3658
    %v3660 = vsel %vm3657, %v3659, %v3655
    %v3661 = vmul.f32 1.0, %v3660
    %v3662 = vrcp.pop %v3496
    %v3663 = vmul.f32 %v3496, %v3662
    %v3664 = vsub.f32 1.0, %v3663
    %v3665 = vmul.f32 %v3662, %v3664
    %v3666 = vadd.f32 %v3662, %v3665
    %vm3667 = vweird.f32 %v3496
    %vm3668 = vweird.f32 %v3662
    %vm3669 = vmor %vm3667, %vm3668
    %v3670 = vsel %vm3669, %v3662, %v3666
    %v3671 = vand.u32 2147483647, %v3496
    %vm3672 = vcmp.eq.f32.partialorder %v3671, 8.507059e+37
    %v3673 = vand.u32 %v3496, 2147483648
    %v3674 = vor.u32 1.1754944e-38, %v3673
    %v3675 = vsel %vm3672, %v3674, %v3670
    %v3676 = vmul.f32 1.0, %v3675
    %v3677 = vmul.f32 %v3137, %v3511
    %v3678 = vmul.f32 %v3165, %v3526
    %v3679 = vmul.f32 %v3193, %v3541
    %v3680 = vmul.f32 %v3221, %v3556
    %v3681 = vmul.f32 %v3249, %v3571
    %v3682 = vmul.f32 %v3277, %v3586
    %v3683 = vmul.f32 %v3139, %v3601
    %v3684 = vmul.f32 %v3167, %v3616
    %v3685 = vmul.f32 %v3195, %v3631
    %v3686 = vmul.f32 %v3223, %v3646
    %v3687 = vmul.f32 %v3251, %v3661
    %v3688 = vmul.f32 %v3279, %v3676
    %v3689 = vmul.f32 %v3677, %v3305
    %v3690 = vmul.f32 %v3678, %v3333
    %v3691 = vmul.f32 %v3679, %v3361
    %v3692 = vmul.f32 %v3680, %v3389
    %v3693 = vmul.f32 %v3681, %v3417
    %v3694 = vmul.f32 %v3682, %v3445
    %v3695 = vmul.f32 %v3683, %v3307
    %v3696 = vmul.f32 %v3684, %v3335
    %v3697 = vmul.f32 %v3685, %v3363
    %v3698 = vmul.f32 %v3686, %v3391
    %v3699 = vmul.f32 %v3687, %v3419
    %v3700 = vmul.f32 %v3688, %v3447
    %v3701 = vpack.c.bf16 %v3695, %v3689
    %v3702 = vpack.c.bf16 %v3696, %v3690
    %v3703 = vpack.c.bf16 %v3697, %v3691
    %v3704 = vpack.c.bf16 %v3698, %v3692
    %v3705 = vpack.c.bf16 %v3699, %v3693
    %v3706 = vpack.c.bf16 %v3700, %v3694
    %v3707 = vld [vmem:[#allocation16] sm:$0xff]
    %v3708 = vld [vmem:[#allocation16 + $0x8] sm:$0xff]
    %v3709 = vld [vmem:[#allocation16 + $0x10] sm:$0xff]
    %v3710 = vld [vmem:[#allocation16 + $0x18] sm:$0xff]
    %v3711 = vld [vmem:[#allocation16 + $0x20] sm:$0xff]
    %v3712 = vld [vmem:[#allocation16 + $0x28] sm:$0xff]
    %v3713 = vld [vmem:[#allocation16 + $0x30] sm:$0xff]
    %v3714 = vld [vmem:[#allocation16 + $0x38] sm:$0xff]
    %v3715 = vld [vmem:[#allocation16 + $0x40] sm:$0xff]
    %v3716 = vld [vmem:[#allocation16 + $0x48] sm:$0xff]
    %v3717 = vld [vmem:[#allocation16 + $0x50] sm:$0xff]
    %v3718 = vld [vmem:[#allocation16 + $0x58] sm:$0xff]
    %v3719 = vld [vmem:[#allocation16 + $0x60] sm:$0xff]
    %v3720 = vld [vmem:[#allocation16 + $0x68] sm:$0xff]
    %v3721 = vld [vmem:[#allocation16 + $0x70] sm:$0xff]
    %v3722 = vld [vmem:[#allocation16 + $0x78] sm:$0xff]
    %v3723 = vld [vmem:[#allocation16 + $0x80] sm:$0xff]
    %v3724 = vld [vmem:[#allocation16 + $0x88] sm:$0xff]
    %v3725 = vld [vmem:[#allocation16 + $0x90] sm:$0xff]
    %v3726 = vld [vmem:[#allocation16 + $0x98] sm:$0xff]
    %v3727 = vld [vmem:[#allocation16 + $0xa0] sm:$0xff]
    %v3728 = vld [vmem:[#allocation16 + $0xa8] sm:$0xff]
    %v3729 = vld [vmem:[#allocation16 + $0xb0] sm:$0xff]
    %v3730 = vld [vmem:[#allocation16 + $0xb8] sm:$0xff]
    %v3731 = vld [vmem:[#allocation16 + $0xc0] sm:$0xff]
    %v3732 = vld [vmem:[#allocation16 + $0xc8] sm:$0xff]
    %v3733 = vld [vmem:[#allocation16 + $0xd0] sm:$0xff]
    %v3734 = vld [vmem:[#allocation16 + $0xd8] sm:$0xff]
    %v3735 = vld [vmem:[#allocation16 + $0xe0] sm:$0xff]
    %v3736 = vld [vmem:[#allocation16 + $0xe8] sm:$0xff]
    %v3737 = vld [vmem:[#allocation16 + $0xf0] sm:$0xff]
    %v3738 = vld [vmem:[#allocation16 + $0xf8] sm:$0xff]
    %v3739 = vld [vmem:[#allocation16 + $0x100] sm:$0xff]
    %v3740 = vld [vmem:[#allocation16 + $0x108] sm:$0xff]
    %v3741 = vld [vmem:[#allocation16 + $0x110] sm:$0xff]
    %v3742 = vld [vmem:[#allocation16 + $0x118] sm:$0xff]
    %v3743 = vld [vmem:[#allocation16 + $0x120] sm:$0xff]
    %v3744 = vld [vmem:[#allocation16 + $0x128] sm:$0xff]
    %v3745 = vld [vmem:[#allocation16 + $0x130] sm:$0xff]
    %v3746 = vld [vmem:[#allocation16 + $0x138] sm:$0xff]
    %v3747 = vld [vmem:[#allocation16 + $0x140] sm:$0xff]
    %v3748 = vld [vmem:[#allocation16 + $0x148] sm:$0xff]
    %v3749 = vld [vmem:[#allocation16 + $0x150] sm:$0xff]
    %v3750 = vld [vmem:[#allocation16 + $0x158] sm:$0xff]
    %v3751 = vld [vmem:[#allocation16 + $0x160] sm:$0xff]
    %v3752 = vld [vmem:[#allocation16 + $0x168] sm:$0xff]
    %v3753 = vld [vmem:[#allocation16 + $0x170] sm:$0xff]
    %v3754 = vld [vmem:[#allocation16 + $0x178] sm:$0xff]
    %v3755 = vld [vmem:[#allocation16 + $0x180] sm:$0xff]
    %v3756 = vld [vmem:[#allocation16 + $0x188] sm:$0xff]
    %v3757 = vld [vmem:[#allocation16 + $0x190] sm:$0xff]
    %v3758 = vld [vmem:[#allocation16 + $0x198] sm:$0xff]
    %v3759 = vld [vmem:[#allocation16 + $0x1a0] sm:$0xff]
    %v3760 = vld [vmem:[#allocation16 + $0x1a8] sm:$0xff]
    %v3761 = vld [vmem:[#allocation16 + $0x1b0] sm:$0xff]
    %v3762 = vld [vmem:[#allocation16 + $0x1b8] sm:$0xff]
    %v3763 = vld [vmem:[#allocation16 + $0x1c0] sm:$0xff]
    %v3764 = vld [vmem:[#allocation16 + $0x1c8] sm:$0xff]
    %v3765 = vld [vmem:[#allocation16 + $0x1d0] sm:$0xff]
    %v3766 = vld [vmem:[#allocation16 + $0x1d8] sm:$0xff]
    %v3767 = vld [vmem:[#allocation16 + $0x1e0] sm:$0xff]
    %v3768 = vld [vmem:[#allocation16 + $0x1e8] sm:$0xff]
    %v3769 = vld [vmem:[#allocation16 + $0x1f0] sm:$0xff]
    %v3770 = vld [vmem:[#allocation16 + $0x1f8] sm:$0xff]
    %v3771 = vld [vmem:[#allocation16 + $0x200] sm:$0xff]
    %v3772 = vld [vmem:[#allocation16 + $0x208] sm:$0xff]
    %v3773 = vld [vmem:[#allocation16 + $0x210] sm:$0xff]
    %v3774 = vld [vmem:[#allocation16 + $0x218] sm:$0xff]
    %v3775 = vld [vmem:[#allocation16 + $0x220] sm:$0xff]
    %v3776 = vld [vmem:[#allocation16 + $0x228] sm:$0xff]
    %v3777 = vld [vmem:[#allocation16 + $0x230] sm:$0xff]
    %v3778 = vld [vmem:[#allocation16 + $0x238] sm:$0xff]
    %v3779 = vld [vmem:[#allocation16 + $0x240] sm:$0xff]
    %v3780 = vld [vmem:[#allocation16 + $0x248] sm:$0xff]
    %v3781 = vld [vmem:[#allocation16 + $0x250] sm:$0xff]
    %v3782 = vld [vmem:[#allocation16 + $0x258] sm:$0xff]
    %v3783 = vld [vmem:[#allocation16 + $0x260] sm:$0xff]
    %v3784 = vld [vmem:[#allocation16 + $0x268] sm:$0xff]
    %v3785 = vld [vmem:[#allocation16 + $0x270] sm:$0xff]
    %v3786 = vld [vmem:[#allocation16 + $0x278] sm:$0xff]
    %v3787 = vld [vmem:[#allocation16 + $0x280] sm:$0xff]
    %v3788 = vld [vmem:[#allocation16 + $0x288] sm:$0xff]
    %v3789 = vld [vmem:[#allocation16 + $0x290] sm:$0xff]
    %v3790 = vld [vmem:[#allocation16 + $0x298] sm:$0xff]
    %v3791 = vld [vmem:[#allocation16 + $0x2a0] sm:$0xff]
    %v3792 = vld [vmem:[#allocation16 + $0x2a8] sm:$0xff]
    %v3793 = vld [vmem:[#allocation16 + $0x2b0] sm:$0xff]
    %v3794 = vld [vmem:[#allocation16 + $0x2b8] sm:$0xff]
    %v3795 = vld [vmem:[#allocation16 + $0x2c0] sm:$0xff]
    %v3796 = vld [vmem:[#allocation16 + $0x2c8] sm:$0xff]
    %v3797 = vld [vmem:[#allocation16 + $0x2d0] sm:$0xff]
    %v3798 = vld [vmem:[#allocation16 + $0x2d8] sm:$0xff]
    %v3799 = vld [vmem:[#allocation16 + $0x2e0] sm:$0xff]
    %v3800 = vld [vmem:[#allocation16 + $0x2e8] sm:$0xff]
    %v3801 = vld [vmem:[#allocation16 + $0x2f0] sm:$0xff]
    %v3802 = vld [vmem:[#allocation16 + $0x2f8] sm:$0xff]
    %v3899 = vunpack.c.l.b16 %v3707
    %v3900 = vunpack.c.h.b16 %v3707
    %v3901 = vunpack.c.l.b16 %v3708
    %v3902 = vunpack.c.h.b16 %v3708
    %v3903 = vunpack.c.l.b16 %v3709
    %v3904 = vunpack.c.h.b16 %v3709
    %v3905 = vunpack.c.l.b16 %v3710
    %v3906 = vunpack.c.h.b16 %v3710
    %v3907 = vunpack.c.l.b16 %v3711
    %v3908 = vunpack.c.h.b16 %v3711
    %v3909 = vunpack.c.l.b16 %v3712
    %v3910 = vunpack.c.h.b16 %v3712
    %v3911 = vunpack.c.l.b16 %v3713
    %v3912 = vunpack.c.h.b16 %v3713
    %v3913 = vunpack.c.l.b16 %v3714
    %v3914 = vunpack.c.h.b16 %v3714
    %v3915 = vunpack.c.l.b16 %v3715
    %v3916 = vunpack.c.h.b16 %v3715
    %v3917 = vunpack.c.l.b16 %v3716
    %v3918 = vunpack.c.h.b16 %v3716
    %v3919 = vunpack.c.l.b16 %v3717
    %v3920 = vunpack.c.h.b16 %v3717
    %v3921 = vunpack.c.l.b16 %v3718
    %v3922 = vunpack.c.h.b16 %v3718
    %v3923 = vunpack.c.l.b16 %v3719
    %v3924 = vunpack.c.h.b16 %v3719
    %v3925 = vunpack.c.l.b16 %v3720
    %v3926 = vunpack.c.h.b16 %v3720
    %v3927 = vunpack.c.l.b16 %v3721
    %v3928 = vunpack.c.h.b16 %v3721
    %v3929 = vunpack.c.l.b16 %v3722
    %v3930 = vunpack.c.h.b16 %v3722
    %v3931 = vunpack.c.l.b16 %v3723
    %v3932 = vunpack.c.h.b16 %v3723
    %v3933 = vunpack.c.l.b16 %v3724
    %v3934 = vunpack.c.h.b16 %v3724
    %v3935 = vunpack.c.l.b16 %v3725
    %v3936 = vunpack.c.h.b16 %v3725
    %v3937 = vunpack.c.l.b16 %v3726
    %v3938 = vunpack.c.h.b16 %v3726
    %v3939 = vunpack.c.l.b16 %v3727
    %v3940 = vunpack.c.h.b16 %v3727
    %v3941 = vunpack.c.l.b16 %v3728
    %v3942 = vunpack.c.h.b16 %v3728
    %v3943 = vunpack.c.l.b16 %v3729
    %v3944 = vunpack.c.h.b16 %v3729
    %v3945 = vunpack.c.l.b16 %v3730
    %v3946 = vunpack.c.h.b16 %v3730
    %v3947 = vunpack.c.l.b16 %v3731
    %v3948 = vunpack.c.h.b16 %v3731
    %v3949 = vunpack.c.l.b16 %v3732
    %v3950 = vunpack.c.h.b16 %v3732
    %v3951 = vunpack.c.l.b16 %v3733
    %v3952 = vunpack.c.h.b16 %v3733
    %v3953 = vunpack.c.l.b16 %v3734
    %v3954 = vunpack.c.h.b16 %v3734
    %v3955 = vunpack.c.l.b16 %v3735
    %v3956 = vunpack.c.h.b16 %v3735
    %v3957 = vunpack.c.l.b16 %v3736
    %v3958 = vunpack.c.h.b16 %v3736
    %v3959 = vunpack.c.l.b16 %v3737
    %v3960 = vunpack.c.h.b16 %v3737
    %v3961 = vunpack.c.l.b16 %v3738
    %v3962 = vunpack.c.h.b16 %v3738
    %v3963 = vunpack.c.l.b16 %v3739
    %v3964 = vunpack.c.h.b16 %v3739
    %v3965 = vunpack.c.l.b16 %v3740
    %v3966 = vunpack.c.h.b16 %v3740
    %v3967 = vunpack.c.l.b16 %v3741
    %v3968 = vunpack.c.h.b16 %v3741
    %v3969 = vunpack.c.l.b16 %v3742
    %v3970 = vunpack.c.h.b16 %v3742
    %v3971 = vunpack.c.l.b16 %v3743
    %v3972 = vunpack.c.h.b16 %v3743
    %v3973 = vunpack.c.l.b16 %v3744
    %v3974 = vunpack.c.h.b16 %v3744
    %v3975 = vunpack.c.l.b16 %v3745
    %v3976 = vunpack.c.h.b16 %v3745
    %v3977 = vunpack.c.l.b16 %v3746
    %v3978 = vunpack.c.h.b16 %v3746
    %v3979 = vunpack.c.l.b16 %v3747
    %v3980 = vunpack.c.h.b16 %v3747
    %v3981 = vunpack.c.l.b16 %v3748
    %v3982 = vunpack.c.h.b16 %v3748
    %v3983 = vunpack.c.l.b16 %v3749
    %v3984 = vunpack.c.h.b16 %v3749
    %v3985 = vunpack.c.l.b16 %v3750
    %v3986 = vunpack.c.h.b16 %v3750
    %v3987 = vunpack.c.l.b16 %v3751
    %v3988 = vunpack.c.h.b16 %v3751
    %v3989 = vunpack.c.l.b16 %v3752
    %v3990 = vunpack.c.h.b16 %v3752
    %v3991 = vunpack.c.l.b16 %v3753
    %v3992 = vunpack.c.h.b16 %v3753
    %v3993 = vunpack.c.l.b16 %v3754
    %v3994 = vunpack.c.h.b16 %v3754
    %v3995 = vunpack.c.l.b16 %v3755
    %v3996 = vunpack.c.h.b16 %v3755
    %v3997 = vunpack.c.l.b16 %v3756
    %v3998 = vunpack.c.h.b16 %v3756
    %v3999 = vunpack.c.l.b16 %v3757
    %v4000 = vunpack.c.h.b16 %v3757
    %v4001 = vunpack.c.l.b16 %v3758
    %v4002 = vunpack.c.h.b16 %v3758
    %v4003 = vunpack.c.l.b16 %v3759
    %v4004 = vunpack.c.h.b16 %v3759
    %v4005 = vunpack.c.l.b16 %v3760
    %v4006 = vunpack.c.h.b16 %v3760
    %v4007 = vunpack.c.l.b16 %v3761
    %v4008 = vunpack.c.h.b16 %v3761
    %v4009 = vunpack.c.l.b16 %v3762
    %v4010 = vunpack.c.h.b16 %v3762
    %v4011 = vunpack.c.l.b16 %v3763
    %v4012 = vunpack.c.h.b16 %v3763
    %v4013 = vunpack.c.l.b16 %v3764
    %v4014 = vunpack.c.h.b16 %v3764
    %v4015 = vunpack.c.l.b16 %v3765
    %v4016 = vunpack.c.h.b16 %v3765
    %v4017 = vunpack.c.l.b16 %v3766
    %v4018 = vunpack.c.h.b16 %v3766
    %v4019 = vunpack.c.l.b16 %v3767
    %v4020 = vunpack.c.h.b16 %v3767
    %v4021 = vunpack.c.l.b16 %v3768
    %v4022 = vunpack.c.h.b16 %v3768
    %v4023 = vunpack.c.l.b16 %v3769
    %v4024 = vunpack.c.h.b16 %v3769
    %v4025 = vunpack.c.l.b16 %v3770
    %v4026 = vunpack.c.h.b16 %v3770
    %v4027 = vunpack.c.l.b16 %v3771
    %v4028 = vunpack.c.h.b16 %v3771
    %v4029 = vunpack.c.l.b16 %v3772
    %v4030 = vunpack.c.h.b16 %v3772
    %v4031 = vunpack.c.l.b16 %v3773
    %v4032 = vunpack.c.h.b16 %v3773
    %v4033 = vunpack.c.l.b16 %v3774
    %v4034 = vunpack.c.h.b16 %v3774
    %v4035 = vunpack.c.l.b16 %v3775
    %v4036 = vunpack.c.h.b16 %v3775
    %v4037 = vunpack.c.l.b16 %v3776
    %v4038 = vunpack.c.h.b16 %v3776
    %v4039 = vunpack.c.l.b16 %v3777
    %v4040 = vunpack.c.h.b16 %v3777
    %v4041 = vunpack.c.l.b16 %v3778
    %v4042 = vunpack.c.h.b16 %v3778
    %v4043 = vunpack.c.l.b16 %v3779
    %v4044 = vunpack.c.h.b16 %v3779
    %v4045 = vunpack.c.l.b16 %v3780
    %v4046 = vunpack.c.h.b16 %v3780
    %v4047 = vunpack.c.l.b16 %v3781
    %v4048 = vunpack.c.h.b16 %v3781
    %v4049 = vunpack.c.l.b16 %v3782
    %v4050 = vunpack.c.h.b16 %v3782
    %v4051 = vunpack.c.l.b16 %v3783
    %v4052 = vunpack.c.h.b16 %v3783
    %v4053 = vunpack.c.l.b16 %v3784
    %v4054 = vunpack.c.h.b16 %v3784
    %v4055 = vunpack.c.l.b16 %v3785
    %v4056 = vunpack.c.h.b16 %v3785
    %v4057 = vunpack.c.l.b16 %v3786
    %v4058 = vunpack.c.h.b16 %v3786
    %v4059 = vunpack.c.l.b16 %v3787
    %v4060 = vunpack.c.h.b16 %v3787
    %v4061 = vunpack.c.l.b16 %v3788
    %v4062 = vunpack.c.h.b16 %v3788
    %v4063 = vunpack.c.l.b16 %v3789
    %v4064 = vunpack.c.h.b16 %v3789
    %v4065 = vunpack.c.l.b16 %v3790
    %v4066 = vunpack.c.h.b16 %v3790
    %v4067 = vunpack.c.l.b16 %v3791
    %v4068 = vunpack.c.h.b16 %v3791
    %v4069 = vunpack.c.l.b16 %v3792
    %v4070 = vunpack.c.h.b16 %v3792
    %v4071 = vunpack.c.l.b16 %v3793
    %v4072 = vunpack.c.h.b16 %v3793
    %v4073 = vunpack.c.l.b16 %v3794
    %v4074 = vunpack.c.h.b16 %v3794
    %v4075 = vunpack.c.l.b16 %v3795
    %v4076 = vunpack.c.h.b16 %v3795
    %v4077 = vunpack.c.l.b16 %v3796
    %v4078 = vunpack.c.h.b16 %v3796
    %v4079 = vunpack.c.l.b16 %v3797
    %v4080 = vunpack.c.h.b16 %v3797
    %v4081 = vunpack.c.l.b16 %v3798
    %v4082 = vunpack.c.h.b16 %v3798
    %v4083 = vunpack.c.l.b16 %v3799
    %v4084 = vunpack.c.h.b16 %v3799
    %v4085 = vunpack.c.l.b16 %v3800
    %v4086 = vunpack.c.h.b16 %v3800
    %v4087 = vunpack.c.l.b16 %v3801
    %v4088 = vunpack.c.h.b16 %v3801
    %v4089 = vunpack.c.l.b16 %v3802
    %v4090 = vunpack.c.h.b16 %v3802
    %v4091 = vpack.c.b16 %v3901, %v3899
    %v4092 = vpack.c.b16 %v3902, %v3900
    %v4093 = vpack.c.b16 %v3905, %v3903
    %v4094 = vpack.c.b16 %v3906, %v3904
    %v4095 = vpack.c.b16 %v3909, %v3907
    %v4096 = vpack.c.b16 %v3910, %v3908
    %v4097 = vpack.c.b16 %v3913, %v3911
    %v4098 = vpack.c.b16 %v3914, %v3912
    %v4099 = vpack.c.b16 %v3917, %v3915
    %v4100 = vpack.c.b16 %v3918, %v3916
    %v4101 = vpack.c.b16 %v3921, %v3919
    %v4102 = vpack.c.b16 %v3922, %v3920
    %v4103 = vpack.c.b16 %v3925, %v3923
    %v4104 = vpack.c.b16 %v3926, %v3924
    %v4105 = vpack.c.b16 %v3929, %v3927
    %v4106 = vpack.c.b16 %v3930, %v3928
    %v4107 = vpack.c.b16 %v3933, %v3931
    %v4108 = vpack.c.b16 %v3934, %v3932
    %v4109 = vpack.c.b16 %v3937, %v3935
    %v4110 = vpack.c.b16 %v3938, %v3936
    %v4111 = vpack.c.b16 %v3941, %v3939
    %v4112 = vpack.c.b16 %v3942, %v3940
    %v4113 = vpack.c.b16 %v3945, %v3943
    %v4114 = vpack.c.b16 %v3946, %v3944
    %v4115 = vpack.c.b16 %v3949, %v3947
    %v4116 = vpack.c.b16 %v3950, %v3948
    %v4117 = vpack.c.b16 %v3953, %v3951
    %v4118 = vpack.c.b16 %v3954, %v3952
    %v4119 = vpack.c.b16 %v3957, %v3955
    %v4120 = vpack.c.b16 %v3958, %v3956
    %v4121 = vpack.c.b16 %v3961, %v3959
    %v4122 = vpack.c.b16 %v3962, %v3960
    %v4123 = vpack.c.b16 %v3965, %v3963
    %v4124 = vpack.c.b16 %v3966, %v3964
    %v4125 = vpack.c.b16 %v3969, %v3967
    %v4126 = vpack.c.b16 %v3970, %v3968
    %v4127 = vpack.c.b16 %v3973, %v3971
    %v4128 = vpack.c.b16 %v3974, %v3972
    %v4129 = vpack.c.b16 %v3977, %v3975
    %v4130 = vpack.c.b16 %v3978, %v3976
    %v4131 = vpack.c.b16 %v3981, %v3979
    %v4132 = vpack.c.b16 %v3982, %v3980
    %v4133 = vpack.c.b16 %v3985, %v3983
    %v4134 = vpack.c.b16 %v3986, %v3984
    %v4135 = vpack.c.b16 %v3989, %v3987
    %v4136 = vpack.c.b16 %v3990, %v3988
    %v4137 = vpack.c.b16 %v3993, %v3991
    %v4138 = vpack.c.b16 %v3994, %v3992
    %v4139 = vpack.c.b16 %v3997, %v3995
    %v4140 = vpack.c.b16 %v3998, %v3996
    %v4141 = vpack.c.b16 %v4001, %v3999
    %v4142 = vpack.c.b16 %v4002, %v4000
    %v4143 = vpack.c.b16 %v4005, %v4003
    %v4144 = vpack.c.b16 %v4006, %v4004
    %v4145 = vpack.c.b16 %v4009, %v4007
    %v4146 = vpack.c.b16 %v4010, %v4008
    %v4147 = vpack.c.b16 %v4013, %v4011
    %v4148 = vpack.c.b16 %v4014, %v4012
    %v4149 = vpack.c.b16 %v4017, %v4015
    %v4150 = vpack.c.b16 %v4018, %v4016
    %v4151 = vpack.c.b16 %v4021, %v4019
    %v4152 = vpack.c.b16 %v4022, %v4020
    %v4153 = vpack.c.b16 %v4025, %v4023
    %v4154 = vpack.c.b16 %v4026, %v4024
    %v4155 = vpack.c.b16 %v4029, %v4027
    %v4156 = vpack.c.b16 %v4030, %v4028
    %v4157 = vpack.c.b16 %v4033, %v4031
    %v4158 = vpack.c.b16 %v4034, %v4032
    %v4159 = vpack.c.b16 %v4037, %v4035
    %v4160 = vpack.c.b16 %v4038, %v4036
    %v4161 = vpack.c.b16 %v4041, %v4039
    %v4162 = vpack.c.b16 %v4042, %v4040
    %v4163 = vpack.c.b16 %v4045, %v4043
    %v4164 = vpack.c.b16 %v4046, %v4044
    %v4165 = vpack.c.b16 %v4049, %v4047
    %v4166 = vpack.c.b16 %v4050, %v4048
    %v4167 = vpack.c.b16 %v4053, %v4051
    %v4168 = vpack.c.b16 %v4054, %v4052
    %v4169 = vpack.c.b16 %v4057, %v4055
    %v4170 = vpack.c.b16 %v4058, %v4056
    %v4171 = vpack.c.b16 %v4061, %v4059
    %v4172 = vpack.c.b16 %v4062, %v4060
    %v4173 = vpack.c.b16 %v4065, %v4063
    %v4174 = vpack.c.b16 %v4066, %v4064
    %v4175 = vpack.c.b16 %v4069, %v4067
    %v4176 = vpack.c.b16 %v4070, %v4068
    %v4177 = vpack.c.b16 %v4073, %v4071
    %v4178 = vpack.c.b16 %v4074, %v4072
    %v4179 = vpack.c.b16 %v4077, %v4075
    %v4180 = vpack.c.b16 %v4078, %v4076
    %v4181 = vpack.c.b16 %v4081, %v4079
    %v4182 = vpack.c.b16 %v4082, %v4080
    %v4183 = vpack.c.b16 %v4085, %v4083
    %v4184 = vpack.c.b16 %v4086, %v4084
    %v4185 = vpack.c.b16 %v4089, %v4087
    %v4186 = vpack.c.b16 %v4090, %v4088
    %4283 = vmatpush.bf16.msra.mxu0 %v4105
    %4284 = vmatpush.bf16.msra.mxu0 %v4103
    %4285 = vmatpush.bf16.msra.mxu0 %v4101
    %4286 = vmatpush.bf16.msra.mxu0 %v4099
    %4287 = vmatpush.bf16.msra.mxu0 %v4097
    %4288 = vmatpush.bf16.msra.mxu0 %v4095
    %4289 = vmatpush.bf16.msra.mxu0 %v4093
    %4290 = vmatpush.bf16.msra.mxu0 %v4091
    %4291 = vmatmul.bf16.gmra.mxu0 %v3701
    %v4292 = vpop.f32.mrf.mxu0
    %v4293 = vadd.f32 0.0, %v4292
    %v4294 = vpop.f32.mrf.mxu0
    %v4295 = vadd.f32 0.0, %v4294
    %4296 = vdwg.mxu0
    %4297 = vmatpush.bf16.msra.mxu0 %v4121
    %4298 = vmatpush.bf16.msra.mxu0 %v4119
    %4299 = vmatpush.bf16.msra.mxu0 %v4117
    %4300 = vmatpush.bf16.msra.mxu0 %v4115
    %4301 = vmatpush.bf16.msra.mxu0 %v4113
    %4302 = vmatpush.bf16.msra.mxu0 %v4111
    %4303 = vmatpush.bf16.msra.mxu0 %v4109
    %4304 = vmatpush.bf16.msra.mxu0 %v4107
    %4305 = vmatmul.bf16.gmra.mxu0 %v3702
    %v4306 = vpop.f32.mrf.mxu0
    %v4307 = vadd.f32 %v4293, %v4306
    %v4308 = vpop.f32.mrf.mxu0
    %v4309 = vadd.f32 %v4295, %v4308
    %4310 = vdwg.mxu0
    %4311 = vmatpush.bf16.msra.mxu0 %v4137
    %4312 = vmatpush.bf16.msra.mxu0 %v4135
    %4313 = vmatpush.bf16.msra.mxu0 %v4133
    %4314 = vmatpush.bf16.msra.mxu0 %v4131
    %4315 = vmatpush.bf16.msra.mxu0 %v4129
    %4316 = vmatpush.bf16.msra.mxu0 %v4127
    %4317 = vmatpush.bf16.msra.mxu0 %v4125
    %4318 = vmatpush.bf16.msra.mxu0 %v4123
    %4319 = vmatmul.bf16.gmra.mxu0 %v3703
    %v4320 = vpop.f32.mrf.mxu0
    %v4321 = vadd.f32 %v4307, %v4320
    %v4322 = vpop.f32.mrf.mxu0
    %v4323 = vadd.f32 %v4309, %v4322
    %4324 = vdwg.mxu0
    %4325 = vmatpush.bf16.msra.mxu0 %v4153
    %4326 = vmatpush.bf16.msra.mxu0 %v4151
    %4327 = vmatpush.bf16.msra.mxu0 %v4149
    %4328 = vmatpush.bf16.msra.mxu0 %v4147
    %4329 = vmatpush.bf16.msra.mxu0 %v4145
    %4330 = vmatpush.bf16.msra.mxu0 %v4143
    %4331 = vmatpush.bf16.msra.mxu0 %v4141
    %4332 = vmatpush.bf16.msra.mxu0 %v4139
    %4333 = vmatmul.bf16.gmra.mxu0 %v3704
    %v4334 = vpop.f32.mrf.mxu0
    %v4335 = vadd.f32 %v4321, %v4334
    %v4336 = vpop.f32.mrf.mxu0
    %v4337 = vadd.f32 %v4323, %v4336
    %4338 = vdwg.mxu0
    %4339 = vmatpush.bf16.msra.mxu0 %v4169
    %4340 = vmatpush.bf16.msra.mxu0 %v4167
    %4341 = vmatpush.bf16.msra.mxu0 %v4165
    %4342 = vmatpush.bf16.msra.mxu0 %v4163
    %4343 = vmatpush.bf16.msra.mxu0 %v4161
    %4344 = vmatpush.bf16.msra.mxu0 %v4159
    %4345 = vmatpush.bf16.msra.mxu0 %v4157
    %4346 = vmatpush.bf16.msra.mxu0 %v4155
    %4347 = vmatmul.bf16.gmra.mxu0 %v3705
    %v4348 = vpop.f32.mrf.mxu0
    %v4349 = vadd.f32 %v4335, %v4348
    %v4350 = vpop.f32.mrf.mxu0
    %v4351 = vadd.f32 %v4337, %v4350
    %4352 = vdwg.mxu0
    %4353 = vmatpush.bf16.msra.mxu0 %v4185
    %4354 = vmatpush.bf16.msra.mxu0 %v4183
    %4355 = vmatpush.bf16.msra.mxu0 %v4181
    %4356 = vmatpush.bf16.msra.mxu0 %v4179
    %4357 = vmatpush.bf16.msra.mxu0 %v4177
    %4358 = vmatpush.bf16.msra.mxu0 %v4175
    %4359 = vmatpush.bf16.msra.mxu0 %v4173
    %4360 = vmatpush.bf16.msra.mxu0 %v4171
    %4361 = vmatmul.bf16.gmra.mxu0 %v3706
    %v4362 = vpop.f32.mrf.mxu0
    %v4363 = vadd.f32 %v4349, %v4362
    %v4364 = vpop.f32.mrf.mxu0
    %v4365 = vadd.f32 %v4351, %v4364
    %4366 = vdwg.mxu0
    %4367 = vmatpush.bf16.msra.mxu0 %v4106
    %4368 = vmatpush.bf16.msra.mxu0 %v4104
    %4369 = vmatpush.bf16.msra.mxu0 %v4102
    %4370 = vmatpush.bf16.msra.mxu0 %v4100
    %4371 = vmatpush.bf16.msra.mxu0 %v4098
    %4372 = vmatpush.bf16.msra.mxu0 %v4096
    %4373 = vmatpush.bf16.msra.mxu0 %v4094
    %4374 = vmatpush.bf16.msra.mxu0 %v4092
    %4375 = vmatmul.bf16.gmra.mxu0 %v3701
    %v4376 = vpop.f32.mrf.mxu0
    %v4377 = vadd.f32 0.0, %v4376
    %v4378 = vpop.f32.mrf.mxu0
    %v4379 = vadd.f32 0.0, %v4378
    %4380 = vdwg.mxu0
    %4381 = vmatpush.bf16.msra.mxu0 %v4122
    %4382 = vmatpush.bf16.msra.mxu0 %v4120
    %4383 = vmatpush.bf16.msra.mxu0 %v4118
    %4384 = vmatpush.bf16.msra.mxu0 %v4116
    %4385 = vmatpush.bf16.msra.mxu0 %v4114
    %4386 = vmatpush.bf16.msra.mxu0 %v4112
    %4387 = vmatpush.bf16.msra.mxu0 %v4110
    %4388 = vmatpush.bf16.msra.mxu0 %v4108
    %4389 = vmatmul.bf16.gmra.mxu0 %v3702
    %v4390 = vpop.f32.mrf.mxu0
    %v4391 = vadd.f32 %v4377, %v4390
    %v4392 = vpop.f32.mrf.mxu0
    %v4393 = vadd.f32 %v4379, %v4392
    %4394 = vdwg.mxu0
    %4395 = vmatpush.bf16.msra.mxu0 %v4138
    %4396 = vmatpush.bf16.msra.mxu0 %v4136
    %4397 = vmatpush.bf16.msra.mxu0 %v4134
    %4398 = vmatpush.bf16.msra.mxu0 %v4132
    %4399 = vmatpush.bf16.msra.mxu0 %v4130
    %4400 = vmatpush.bf16.msra.mxu0 %v4128
    %4401 = vmatpush.bf16.msra.mxu0 %v4126
    %4402 = vmatpush.bf16.msra.mxu0 %v4124
    %4403 = vmatmul.bf16.gmra.mxu0 %v3703
    %v4404 = vpop.f32.mrf.mxu0
    %v4405 = vadd.f32 %v4391, %v4404
    %v4406 = vpop.f32.mrf.mxu0
    %v4407 = vadd.f32 %v4393, %v4406
    %4408 = vdwg.mxu0
    %4409 = vmatpush.bf16.msra.mxu0 %v4154
    %4410 = vmatpush.bf16.msra.mxu0 %v4152
    %4411 = vmatpush.bf16.msra.mxu0 %v4150
    %4412 = vmatpush.bf16.msra.mxu0 %v4148
    %4413 = vmatpush.bf16.msra.mxu0 %v4146
    %4414 = vmatpush.bf16.msra.mxu0 %v4144
    %4415 = vmatpush.bf16.msra.mxu0 %v4142
    %4416 = vmatpush.bf16.msra.mxu0 %v4140
    %4417 = vmatmul.bf16.gmra.mxu0 %v3704
    %v4418 = vpop.f32.mrf.mxu0
    %v4419 = vadd.f32 %v4405, %v4418
    %v4420 = vpop.f32.mrf.mxu0
    %v4421 = vadd.f32 %v4407, %v4420
    %4422 = vdwg.mxu0
    %4423 = vmatpush.bf16.msra.mxu0 %v4170
    %4424 = vmatpush.bf16.msra.mxu0 %v4168
    %4425 = vmatpush.bf16.msra.mxu0 %v4166
    %4426 = vmatpush.bf16.msra.mxu0 %v4164
    %4427 = vmatpush.bf16.msra.mxu0 %v4162
    %4428 = vmatpush.bf16.msra.mxu0 %v4160
    %4429 = vmatpush.bf16.msra.mxu0 %v4158
    %4430 = vmatpush.bf16.msra.mxu0 %v4156
    %4431 = vmatmul.bf16.gmra.mxu0 %v3705
    %v4432 = vpop.f32.mrf.mxu0
    %v4433 = vadd.f32 %v4419, %v4432
    %v4434 = vpop.f32.mrf.mxu0
    %v4435 = vadd.f32 %v4421, %v4434
    %4436 = vdwg.mxu0
    %4437 = vmatpush.bf16.msra.mxu0 %v4186
    %4438 = vmatpush.bf16.msra.mxu0 %v4184
    %4439 = vmatpush.bf16.msra.mxu0 %v4182
    %4440 = vmatpush.bf16.msra.mxu0 %v4180
    %4441 = vmatpush.bf16.msra.mxu0 %v4178
    %4442 = vmatpush.bf16.msra.mxu0 %v4176
    %4443 = vmatpush.bf16.msra.mxu0 %v4174
    %4444 = vmatpush.bf16.msra.mxu0 %v4172
    %4445 = vmatmul.bf16.gmra.mxu0 %v3706
    %v4446 = vpop.f32.mrf.mxu0
    %v4447 = vadd.f32 %v4433, %v4446
    %v4448 = vpop.f32.mrf.mxu0
    %v4449 = vadd.f32 %v4435, %v4448
    %4450 = vdwg.mxu0
    %v4451 = vadd.f32 %v1907, %v4363
    %v4452 = vadd.f32 %v1908, %v4447
    %v4453 = vadd.f32 %v1909, %v4365
    %v4454 = vadd.f32 %v1910, %v4449
    %4455 = vst [vmem:[#allocation19] sm:$0xff] %v4451
    %4456 = vst [vmem:[#allocation19 + $0x8] sm:$0xff] %v4452
    %4457 = vst [vmem:[#allocation19 + $0x10] sm:$0xff] %v4453
    %4458 = vst [vmem:[#allocation19 + $0x18] sm:$0xff] %v4454
    // Predicated region
    $region90: #{tpu_custom_call.1} parent=1 // pred_check
      _
    $region91: #{tpu_custom_call.1} parent=1 // pred_check_branch
      %4460 = sbr.rel (0) target = $region93
    $region92: #{tpu_custom_call.1} parent=1 // pred_region
      %4462 = vsyncadd [#allocation4], 0
      %s4463 = sshll.u32 [#allocation19], 4
      %s4464 = int_to_ptr.vmem [resolvable:$true] %s4463
      %s4465 = sshll.u32 %s12, 4
      %s4466 = int_to_ptr.hbm [resolvable:$true] %s4465
      %4471 = dma.vmem_to_hbm [thread:$0]  %s4464, 512, %s4466, [#allocation4], 256, 256, 16
    $region93: #{tpu_custom_call.1} parent=1 // pred_fallthru
      _
    // Predicated region
    $region94: #{tpu_custom_call.1} parent=1 // pred_check
      _
    $region95: #{tpu_custom_call.1} parent=1 // pred_check_branch
      %4473 = sbr.rel (0) target = $region97
    $region96: #{tpu_custom_call.1} parent=1 // pred_region
      %4475 = dma.done [#allocation4], 512
    $region97: #{tpu_custom_call.1} parent=1 // pred_fallthru
      _
    %4476 = vsyncpa [#allocation3], 1
    %4477 = vsyncpa [#allocation6], 1
    %4478 = vsyncpa [#allocation9], 1
    %4479 = vsyncpa [#allocation12], 1
    %4480 = vsyncpa [#allocation15], 1
    %4481 = vsyncpa [#allocation18], 1
    %4482 = vsyncpa [#allocation4], 1

</llo_original>
